<compile_context>
chip_gen: v5e
topology: v5e:2x2
jax: 0.10.0
libtpu: 0.0.40
codegen_flags: <defaults>
</compile_context>

<pallas_src>
import functools

import jax
import jax.numpy as jnp
from jax import lax
from jax.experimental import pallas as pl
from jax.experimental.pallas import tpu as pltpu

HEAD_SIZE = 64  # RUN_CUDA_RWKV7g_Torch hard-codes head size 64


# ----------------------------------------------------------------------------
# Pallas kernels 1: tiled dense projections with fused elementwise prologue
# ----------------------------------------------------------------------------
def _matmul_tiles(M, K, N):
    """MXU-native tiles + M padding (no degenerate full-M fallback tiles)."""
    if M >= 512:
        tm = 512
    elif M >= 256:
        tm = 256
    else:
        tm = max(8, ((M + 7) // 8) * 8)
    m_pad = ((M + tm - 1) // tm) * tm
    if N % 256 == 0:
        tn = 256
    elif N % 128 == 0:
        tn = 128
    else:
        tn = N          # small / odd N (e.g. LoRA dims): full-dim block is legal
    if K % 512 == 0:
        tk = 512
    elif K % 256 == 0:
        tk = 256
    elif K % 128 == 0:
        tk = 128
    else:
        tk = K
    return tm, tn, tk, m_pad


def _mix_matmul_kernel(x_ref, xx_ref, mix_ref, w_ref, o_ref, acc_ref):
    # o = (x + xx * mix) @ W   -- time-shift mix fused, bf16 MXU operands, f32 acc
    @pl.when(pl.program_id(2) == 0)
    def _():
        acc_ref[...] = jnp.zeros_like(acc_ref)

    xm = (x_ref[...] + xx_ref[...] * mix_ref[...]).astype(jnp.bfloat16)
    acc_ref[...] += jnp.dot(xm, w_ref[...], preferred_element_type=jnp.float32)

    @pl.when(pl.program_id(2) == pl.num_programs(2) - 1)
    def _():
        o_ref[...] = acc_ref[...].astype(o_ref.dtype)


def _gate_matmul_kernel(x_ref, g_ref, w_ref, o_ref, acc_ref):
    # o = (x * g) @ W   -- output gate fused, bf16 MXU operands, f32 acc
    @pl.when(pl.program_id(2) == 0)
    def _():
        acc_ref[...] = jnp.zeros_like(acc_ref)

    xm = (x_ref[...] * g_ref[...]).astype(jnp.bfloat16)
    acc_ref[...] += jnp.dot(xm, w_ref[...], preferred_element_type=jnp.float32)

    @pl.when(pl.program_id(2) == pl.num_programs(2) - 1)
    def _():
        o_ref[...] = acc_ref[...].astype(o_ref.dtype)


_MM_COMPILER_PARAMS = pltpu.CompilerParams(
    dimension_semantics=("parallel", "parallel", "arbitrary"),
    vmem_limit_bytes=48 * 1024 * 1024,   # v7x-safe (64 MiB physical VMEM)
)


def _fused_matmul(kernel, a2d, b2d, row, w_bf16, out_dtype=jnp.float32):
    """Shared tiled wrapper: out = f(a, b[, row]) @ W over (M//tm, N//tn, K//tk)."""
    M, K = a2d.shape
    K2, N = w_bf16.shape
    assert K == K2
    tm, tn, tk, m_pad = _matmul_tiles(M, K, N)
    if m_pad != M:
        pad = ((0, m_pad - M), (0, 0))
        a2d = jnp.pad(a2d, pad)
        b2d = jnp.pad(b2d, pad)
    grid = (m_pad // tm, N // tn, K // tk)

    act_spec = pl.BlockSpec((tm, tk), lambda i, j, k: (i, k))
    in_specs = [act_spec, act_spec]
    operands = [a2d, b2d]
    if row is not None:
        in_specs.append(pl.BlockSpec((1, tk), lambda i, j, k: (0, k)))
        operands.append(row)
    in_specs.append(pl.BlockSpec((tk, tn), lambda i, j, k: (k, j)))
    operands.append(w_bf16)

    cost = pl.CostEstimate(
        flops=int(2 * m_pad * K * N),
        transcendentals=0,
        bytes_accessed=int((2 * m_pad * K + m_pad * N) * 4 + K * N * 2),
    )
    out = pl.pallas_call(
        kernel,
        out_shape=jax.ShapeDtypeStruct((m_pad, N), out_dtype),
        grid=grid,
        in_specs=in_specs,
        out_specs=pl.BlockSpec((tm, tn), lambda i, j, k: (i, j)),
        scratch_shapes=[pltpu.VMEM((tm, tn), jnp.float32)],
        compiler_params=_MM_COMPILER_PARAMS,
        cost_estimate=cost,
    )(*operands)
    return out[:M] if m_pad != M else out


def pallas_mix_matmul(x2d, xx2d, mix_row, w_bf16, out_dtype=jnp.float32):
    """(x + xx * mix) @ W  -- time-shift mix fused into the projection kernel."""
    return _fused_matmul(_mix_matmul_kernel, x2d, xx2d, mix_row, w_bf16, out_dtype)


def pallas_gate_matmul(x2d, g2d, w_bf16, out_dtype=jnp.float32):
    """(x * g) @ W  -- output gate fused into the projection kernel."""
    return _fused_matmul(_gate_matmul_kernel, x2d, g2d, None, w_bf16, out_dtype)


# ----------------------------------------------------------------------------
# Pallas kernel 2: RWKV7 WKV recurrence (forward of WindBacksteppingFunction)
# ----------------------------------------------------------------------------
def _wkv_kernel(q_ref, w_ref, k_ref, v_ref, kk_ref, a_ref, y_ref,
                state_ref, qT_ref, vT_ref, aT_ref, *, head_size):
    """Recurrence on a (1, Tc, G*N) block; G heads packed along 128 lanes.

    State layout (transposed + packed): state_ref[j, g*N + i] = S_g[i, j].
    Per step, per head:
        sa[i]  = z[i] * rowsum[i],   rowsum[i] = sum_j S[i, j]   (carried, VPU)
        S[i,j] = S[i,j]*w[i] + sa[i]*a[j] + k[i]*v[j]
        y[i]   = sum_j S[i,j]*q[j]
    with z = -kk and a = kk * a_gate computed in-kernel.
    """
    N = head_size
    Tc = q_ref.shape[1]
    GN = q_ref.shape[2]
    G = GN // N
    assert G in (1, 2)

    # Reset the recurrent state at the start of every (batch, head-group)
    # sequence (the time-chunk axis is the innermost, "arbitrary", grid axis).
    @pl.when(pl.program_id(2) == 0)
    def _():
        state_ref[...] = jnp.zeros_like(state_ref)

    # Lane / sublane masks for the packed two-head layout (hoisted constants).
    lane_lo = lax.broadcasted_iota(jnp.int32, (N, GN), 1) < N
    lane_lo8 = lax.broadcasted_iota(jnp.int32, (8, GN), 1) < N
    sub_ids = lax.broadcasted_iota(jnp.int32, (8, GN), 0)

    def head_sums(blk):
        # per-head lane-segment sum of an (8, GN) block, broadcast back per head
        if G == 1:
            return jnp.broadcast_to(jnp.sum(blk, axis=1, keepdims=True), (8, GN))
        s0 = jnp.broadcast_to(jnp.sum(blk[:, :N], axis=1, keepdims=True), (8, GN))
        s1 = jnp.broadcast_to(jnp.sum(blk[:, N:], axis=1, keepdims=True), (8, GN))
        return jnp.where(lane_lo8, s0, s1)

    def col_pack(t_ref, tt):
        # (N, GN) j-indexed operand from the (GN, 8) scratch: [j, g*N+i] = t_g[j]
        if G == 1:
            return jnp.broadcast_to(t_ref[:, tt:tt + 1], (N, GN))
        c0 = jnp.broadcast_to(t_ref[:N, tt:tt + 1], (N, GN))
        c1 = jnp.broadcast_to(t_ref[N:, tt:tt + 1], (N, GN))
        return jnp.where(lane_lo, c0, c1)

    n_micro = Tc // 8

    @pl.loop(0, n_micro)
    def _(c):
        base = pl.multiple_of(c * 8, 8)

        # Whole (8, GN) lane-dense block loads, once per micro-chunk (no per-step
        # masked vlds); decay via EUP on the full block.
        w_blk = jnp.exp(-jnp.exp(w_ref[0, pl.ds(base, 8), :]))
        q_blk = q_ref[0, pl.ds(base, 8), :]
        k_blk = k_ref[0, pl.ds(base, 8), :]
        v_blk = v_ref[0, pl.ds(base, 8), :]
        kk_blk = kk_ref[0, pl.ds(base, 8), :]
        z_blk = -kk_blk                                   # z = -kk (in-kernel)
        a_blk = kk_blk * a_ref[0, pl.ds(base, 8), :]      # a = kk*gate (in-kernel)

        asum_blk = head_sums(a_blk)     # sum_j a[j] per head / step
        vsum_blk = head_sums(v_blk)     # sum_j v[j] per head / step

        # One XLU transpose per tensor per micro-chunk -> j-indexed layouts.
        qT_ref[...] = q_blk.T
        vT_ref[...] = v_blk.T
        aT_ref[...] = a_blk.T

        ST = state_ref[...]                               # (N, GN)
        # Refresh rowsum from the state once per micro-chunk (bounds the f32
        # drift of the incremental update below); after this it stays on the VPU.
        rowsum = jnp.sum(ST, axis=0, keepdims=True)       # (1, GN)

        y_blk = jnp.zeros((8, GN), jnp.float32)
        for tt in range(8):                               # statically unrolled
            w_row = w_blk[tt:tt + 1, :]
            k_row = k_blk[tt:tt + 1, :]
            z_row = z_blk[tt:tt + 1, :]
            asum_row = asum_blk[tt:tt + 1, :]
            vsum_row = vsum_blk[tt:tt + 1, :]
            a_colP = col_pack(aT_ref, tt)
            v_colP = col_pack(vT_ref, tt)
            q_colP = col_pack(qT_ref, tt)

            # sa[i] = z[i] * rowsum[i]            (no per-step full-state reduce)
            sa_row = z_row * rowsum
            # incremental rowsum update (exact; refreshed every micro-chunk)
            rowsum = w_row * rowsum + sa_row * asum_row + k_row * vsum_row
            # S[i,j] = S[i,j]*w[i] + sa[i]*a[j] + k[i]*v[j]  (transposed, packed)
            ST = ST * w_row + a_colP * sa_row + v_colP * k_row
            # y[i] = sum_j S[i,j]*q[j]
            y_row = jnp.sum(ST * q_colP, axis=0, keepdims=True)
            y_blk = jnp.where(sub_ids == tt, y_row, y_blk)

        state_ref[...] = ST
        # Single lane-dense (8, GN) store per micro-chunk.
        y_ref[0, pl.ds(base, 8), :] = y_blk


def _choose_time_chunk(t_pad):
    for c in (512, 256, 128, 64, 32, 16, 8):
        if t_pad % c == 0:
            return c
    return t_pad


def wkv_pallas(q, w, k, v, kk, a_gate, head_size=HEAD_SIZE):
    """Forward of WindBacksteppingFunction with z=-kk, a=kk*a_gate fused in-kernel."""
    B, T, C = q.shape
    N = head_size
    H = C // N
    orig_T = T

    # Pair heads (G=2 -> 128-lane blocks) whenever H is even; the kernel then
    # indexes the (B, T, C) layout directly (no host-side transposes).
    G = 2 if (H % 2 == 0 and H >= 2) else 1
    if G == 2:
        ins = (q, w, k, v, kk, a_gate)
        BB, HG = B, H // 2
    else:
        # Odd head count: correct but slower fallback (64-lane blocks + 6
        # transposed HBM copies).  TODO(synk): pad H to an even count instead.
        def to_heads(t):
            return t.reshape(B, T, H, N).transpose(0, 2, 1, 3).reshape(B * H, T, N)
        ins = tuple(map(to_heads, (q, w, k, v, kk, a_gate)))
        BB, HG = B * H, 1
    GN = G * N

    # Pad T to a multiple of 8 (the kernel micro-chunk).  Padded steps are causal
    # no-ops for the real outputs and are sliced away afterwards.
    T_pad = ((T + 7) // 8) * 8
    if T_pad != T:
        pad = ((0, 0), (0, T_pad - T), (0, 0))
        ins = tuple(jnp.pad(t, pad) for t in ins)

    Tc = _choose_time_chunk(T_pad)
    n_tc = T_pad // Tc

    spec = pl.BlockSpec((1, Tc, GN), lambda b, g, c: (b, c, g))
    cost = pl.CostEstimate(
        flops=int(BB * HG * G * T_pad * 8 * N * N),
        transcendentals=int(2 * BB * T_pad * HG * GN),
        bytes_accessed=int(7 * BB * T_pad * HG * GN * 4),
    )
    # NOTE(v7x): megacore parallelism comes from the (BB, HG) "parallel" axes;
    # if B*(H//2) == 1 one TensorCore idles (split the batch upstream if so).
    y = pl.pallas_call(
        functools.partial(_wkv_kernel, head_size=N),
        out_shape=jax.ShapeDtypeStruct((BB, T_pad, HG * GN), jnp.float32),
        grid=(BB, HG, n_tc),
        in_specs=[spec] * 6,
        out_specs=spec,
        scratch_shapes=[
            pltpu.VMEM((N, GN), jnp.float32),   # packed transposed state ST[j, g*N+i]
            pltpu.VMEM((GN, 8), jnp.float32),   # qT micro-chunk
            pltpu.VMEM((GN, 8), jnp.float32),   # vT micro-chunk
            pltpu.VMEM((GN, 8), jnp.float32),   # aT micro-chunk
        ],
        compiler_params=pltpu.CompilerParams(
            dimension_semantics=("parallel", "parallel", "arbitrary"),
            vmem_limit_bytes=48 * 1024 * 1024,
        ),
        cost_estimate=cost,
    )(*ins)

    y = y[:, :orig_T, :]
    if G == 1:
        y = y.reshape(B, H, orig_T, N).transpose(0, 2, 1, 3).reshape(B, orig_T, C)
    return y
    # TODO(synk): a chunked (MXU block-matmul) reformulation of the recurrence is
    # the long-term v6e/v7x win; left out because of the nonstandard sa term.


# ----------------------------------------------------------------------------
# Pure-JAX reference of the WKV recurrence (for numerical verification)
# ----------------------------------------------------------------------------
def wkv_ref(q, w, k, v, z, a, head_size=HEAD_SIZE):
    B, T, HC = q.shape
    H = HC // head_size
    N = head_size

    def hsplit(t):
        return t.reshape(B, T, H, N).transpose(1, 0, 2, 3)  # (T, B, H, N)

    qt, wt, kt, vt, zt, at = map(hsplit, (q, w, k, v, z, a))
    wt = jnp.exp(-jnp.exp(wt))

    def step(S, inp):
        q_t, w_t, k_t, v_t, z_t, a_t = inp
        sa = z_t * jnp.sum(S, axis=-1)
        S = (S * w_t[..., :, None]
             + sa[..., :, None] * a_t[..., None, :]
             + k_t[..., :, None] * v_t[..., None, :])
        y = jnp.sum(S * q_t[..., None, :], axis=-1)
        return S, y

    S0 = jnp.zeros((B, H, N, N), jnp.float32)
    _, ys = lax.scan(step, S0, (qt, wt, kt, vt, zt, at))
    return ys.transpose(1, 0, 2, 3).reshape(B, T, HC)


# ----------------------------------------------------------------------------
# Module glue (time-shift mixing, LoRAs, GroupNorm, gating)
# ----------------------------------------------------------------------------
def group_norm(x2d, H, eps, weight, bias):
    M, C = x2d.shape
    xg = x2d.reshape(M, H, C // H)
    mean = jnp.mean(xg, axis=-1, keepdims=True)
    var = jnp.mean((xg - mean) ** 2, axis=-1, keepdims=True)
    xn = (xg - mean) / jnp.sqrt(var + eps)
    return xn.reshape(M, C) * weight + bias


def init_params(key, C, H, N, group_id, loops_per_group,
                num_hidden_groups, inner_group_num):
    num_all_layers = num_hidden_groups * inner_group_num
    ratio_0_to_1 = group_id * loops_per_group / (num_all_layers - 1)
    ratio_1_to_almost0 = 1.0 - group_id * loops_per_group / num_all_layers

    idx = jnp.arange(C)
    i = idx.astype(jnp.float32)
    ddd = (i / C).reshape(1, 1, C)

    p = {}
    p["x_r"] = 1.0 - ddd ** (0.2 * ratio_1_to_almost0)
    p["x_w"] = 1.0 - ddd ** (0.9 * ratio_1_to_almost0)
    p["x_k"] = 1.0 - ddd ** (0.7 * ratio_1_to_almost0)
    p["x_v"] = 1.0 - ddd ** (0.7 * ratio_1_to_almost0)
    p["x_a"] = 1.0 - ddd ** (0.9 * ratio_1_to_almost0)
    p["x_g"] = 1.0 - ddd ** (0.2 * ratio_1_to_almost0)

    linear = i / (C - 1) - 0.5
    zig = ((idx % N).astype(jnp.float32) - (N - 1) / 2) / ((N - 1) / 2)
    zigzag = zig * jnp.abs(zig)
    www = -6.0 + 6.0 * (i / (C - 1)) ** (1 + 1 * ratio_0_to_1 ** 0.3)

    p["w0"] = (www + 0.5 + zigzag * 2.5).reshape(1, 1, C)
    p["a0"] = (-0.19 + zigzag * 0.3 + linear * 0.4).reshape(1, 1, C)
    p["v0"] = (0.73 - linear * 0.4).reshape(1, 1, C)
    p["k_k"] = (0.71 - linear * 0.1).reshape(1, 1, C)
    p["k_a"] = jnp.full((1, 1, C), 1.02, jnp.float32)
    p["r_k"] = jnp.full((H, N), -0.04, jnp.float32)

    D_DECAY = max(32, int(round(1.8 * C ** 0.5 / 32) * 32))
    D_AAA = max(32, int(round(1.8 * C ** 0.5 / 32) * 32))
    D_MV = max(32, int(round(1.3 * C ** 0.5 / 32) * 32))
    D_GATE = max(32, int(round(0.6 * C ** 0.8 / 32) * 32))

    keys = jax.random.split(key, 12)

    def rnd(k, shape, scale):
        return scale * jax.random.normal(k, shape, jnp.float32)

    # LoRA matrices (module zero-inits the *1 matrices; use small random instead).
    p["w1"] = rnd(keys[0], (C, D_DECAY), 0.02)
    p["w2"] = rnd(keys[1], (D_DECAY, C), 0.1)
    p["a1"] = rnd(keys[2], (C, D_AAA), 0.02)
    p["a2"] = rnd(keys[3], (D_AAA, C), 0.1)
    p["v1"] = rnd(keys[4], (C, D_MV), 0.02)
    p["v2"] = rnd(keys[5], (D_MV, C), 0.1)
    p["g1"] = rnd(keys[6], (C, D_GATE), 0.02)
    p["g2"] = rnd(keys[7], (D_GATE, C), 0.1)

    # Dense projections, stored already transposed as (in, out) so y = x @ W.
    # Persisted in bf16 (MXU operand dtype) so no per-call cast passes are needed.
    s = C ** -0.5
    p["Wr"] = rnd(keys[8], (C, C), 0.5 * s).astype(jnp.bfloat16)
    p["Wk"] = rnd(keys[9], (C, C), 0.05 * s).astype(jnp.bfloat16)
    p["Wv"] = rnd(keys[10], (C, C), 0.5 * s).astype(jnp.bfloat16)
    p["Wo"] = rnd(keys[11], (C, C), 0.5 * s).astype(jnp.bfloat16)  # module zero-inits; random for a non-trivial test

    p["ln_w"] = jnp.ones((C,), jnp.float32)
    p["ln_b"] = jnp.zeros((C,), jnp.float32)
    return p


def tmix_forward(params, x, v_first, *, group_id, loops_per_group,
                 head_size=HEAD_SIZE, use_pallas=True):
    B, T, C = x.shape
    H = C // head_size
    p = params

    flat = lambda t: t.reshape(B * T, C)
    unflat = lambda t: t.reshape(B, T, C)

    # time_shift (ZeroPad2d((0,0,1,-1))): xx[t] = x[t-1] - x[t], with x[-1] = 0
    xx = jnp.concatenate([jnp.zeros((B, 1, C), x.dtype), x[:, :-1, :]], axis=1) - x

    # Small LoRA paths stay in plain JAX (tiny matmuls).
    # TODO(synk): these mixes/matmuls could also be fused into a Pallas kernel;
    # only the three C x C projections and the output projection are fused here.
    xw = x + xx * p["x_w"]
    xa = x + xx * p["x_a"]
    xg = x + xx * p["x_g"]

    if use_pallas:
        def mix_mm(mix, W):
            return unflat(pallas_mix_matmul(flat(x), flat(xx), mix.reshape(1, C), W))
        r = mix_mm(p["x_r"], p["Wr"])
        k = mix_mm(p["x_k"], p["Wk"])
        v = mix_mm(p["x_v"], p["Wv"])
    else:
        def mm(t2d, W):
            return t2d @ W.astype(jnp.float32)
        r = unflat(mm(flat(x + xx * p["x_r"]), p["Wr"]))
        k = unflat(mm(flat(x + xx * p["x_k"]), p["Wk"]))
        v = unflat(mm(flat(x + xx * p["x_v"]), p["Wv"]))

    w = -jax.nn.softplus(-(p["w0"] + jnp.tanh(xw @ p["w1"]) @ p["w2"])) - 0.5

    if group_id * loops_per_group == 0:
        v_first = v
    else:
        xv = x + xx * p["x_v"]
        gate_v = jax.nn.sigmoid(p["v0"] + xv @ p["v1"] @ p["v2"])
        v = v + gate_v * (v_first - v)  # torch.lerp(v, v_first, gate_v)

    a = jax.nn.sigmoid(p["a0"] + xa @ p["a1"] @ p["a2"])
    g = jax.nn.sigmoid(xg @ p["g1"]) @ p["g2"]

    kk = k * p["k_k"]
    kkh = kk.reshape(B, T, H, head_size)
    kkh = kkh / jnp.maximum(jnp.sqrt(jnp.sum(kkh * kkh, axis=-1, keepdims=True)), 1e-12)
    kk = kkh.reshape(B, T, C)

    k = k * (1.0 + (a - 1.0) * p["k_a"])

    if use_pallas:
        # z = -kk and a_wkv = kk*a are computed inside the kernel.
        y = wkv_pallas(r, w, k, v, kk, a, head_size)
    else:
        y = wkv_ref(r, w, k, v, -kk, kk * a, head_size)

    xo = group_norm(y.reshape(B * T, C), H, 0.00064,
                    p["ln_w"], p["ln_b"]).reshape(B, T, C)
    rk = (r.reshape(B, T, H, head_size) * k.reshape(B, T, H, head_size)
          * p["r_k"]).sum(axis=-1, keepdims=True)
    xo = xo + (rk * v.reshape(B, T, H, head_size)).reshape(B, T, C)

    if use_pallas:
        out = unflat(pallas_gate_matmul(flat(xo), flat(g), p["Wo"]))
    else:
        out = unflat((flat(xo) * flat(g)) @ p["Wo"].astype(jnp.float32))
    return out, v_first
    # TODO(synk): only the forward pass is implemented; the custom backward of
    # WindBacksteppingFunction_Torch (autograd) is out of scope for this kernel.


if __name__ == "__main__":
    B, T, C = 2, 8, 128              # n_embd = dim_att = 128, head_size = 64 -> H = 2
    H = C // HEAD_SIZE
    group_id, loops_per_group = 1, 1  # exercises the v_first lerp branch
    num_hidden_groups, inner_group_num = 2, 1

    key = jax.random.PRNGKey(0)
    kp, kx, kv = jax.random.split(key, 3)
    params = init_params(kp, C, H, HEAD_SIZE, group_id, loops_per_group,
                         num_hidden_groups, inner_group_num)
    x = jax.random.normal(kx, (B, T, C), jnp.float32)
    v_first = jax.random.normal(kv, (B, T, C), jnp.float32)

    # 1) Direct check of the WKV recurrence kernel (f32 in/out, tight tolerance).
    ks = jax.random.split(jax.random.PRNGKey(1), 6)
    qd = 0.5 * jax.random.normal(ks[0], (B, T, C), jnp.float32)
    wd = -0.6 - jax.nn.softplus(jax.random.normal(ks[1], (B, T, C), jnp.float32))
    kd = 0.3 * jax.random.normal(ks[2], (B, T, C), jnp.float32)
    vd = 0.5 * jax.random.normal(ks[3], (B, T, C), jnp.float32)
    kkd = 0.3 * jax.random.normal(ks[4], (B, T, C), jnp.float32)
    agd = jax.nn.sigmoid(jax.random.normal(ks[5], (B, T, C), jnp.float32))
    y_pl = wkv_pallas(qd, wd, kd, vd, kkd, agd)
    y_rf = wkv_ref(qd, wd, kd, vd, -kkd, kkd * agd)
    jax.block_until_ready((y_pl, y_rf))
    assert jnp.allclose(y_pl, y_rf, rtol=1e-3, atol=1e-3), "WKV kernel mismatch"

    # 2) Full forward: Pallas path (fused bf16 MXU projections + WKV kernel) vs pure JAX.
    out, v_first_out = tmix_forward(
        params, x, v_first,
        group_id=group_id, loops_per_group=loops_per_group, use_pallas=True)
    jax.block_until_ready((out, v_first_out))

    ref_out, ref_vf = tmix_forward(
        params, x, v_first,
        group_id=group_id, loops_per_group=loops_per_group, use_pallas=False)
    jax.block_until_ready((ref_out, ref_vf))
    assert jnp.allclose(out, ref_out, rtol=2e-2, atol=2e-2)
    assert jnp.allclose(v_first_out, ref_vf, rtol=2e-2, atol=2e-2)

    print("KERNEL_OK")
</pallas_src>

<mosaic_0001>
module attributes {stable_mosaic.version = 11 : i64} {
  func.func @_wkv_kernel(%arg0: i32, %arg1: i32, %arg2: i32, %arg3: memref<1x8x128xf32, #tpu.memory_space<vmem>>, %arg4: memref<1x8x128xf32, #tpu.memory_space<vmem>>, %arg5: memref<1x8x128xf32, #tpu.memory_space<vmem>>, %arg6: memref<1x8x128xf32, #tpu.memory_space<vmem>>, %arg7: memref<1x8x128xf32, #tpu.memory_space<vmem>>, %arg8: memref<1x8x128xf32, #tpu.memory_space<vmem>>, %arg9: memref<1x8x128xf32, #tpu.memory_space<vmem>>, %arg10: memref<64x128xf32, #tpu.memory_space<vmem>>, %arg11: memref<128x8xf32, #tpu.memory_space<vmem>>, %arg12: memref<128x8xf32, #tpu.memory_space<vmem>>, %arg13: memref<128x8xf32, #tpu.memory_space<vmem>>) attributes {dimension_semantics = [#tpu.dimension_semantics<parallel>, #tpu.dimension_semantics<parallel>, #tpu.dimension_semantics<arbitrary>], iteration_bounds = array<i64: 2, 1, 1>, scalar_prefetch = 0 : i64, scratch_operands = 4 : i64, tpu.core_type = #tpu.core_type<tc>, window_params = [{transform_indices = @transform_0, window_bounds = array<i64: 1, 8, 128>}, {transform_indices = @transform_1, window_bounds = array<i64: 1, 8, 128>}, {transform_indices = @transform_2, window_bounds = array<i64: 1, 8, 128>}, {transform_indices = @transform_3, window_bounds = array<i64: 1, 8, 128>}, {transform_indices = @transform_4, window_bounds = array<i64: 1, 8, 128>}, {transform_indices = @transform_5, window_bounds = array<i64: 1, 8, 128>}, {transform_indices = @transform_6, window_bounds = array<i64: 1, 8, 128>}]} {
    %c0_i32 = arith.constant 0 : i32
    %0 = arith.cmpi eq, %arg2, %c0_i32 : i32
    %1 = arith.extui %0 : i1 to i32
    %c0_i32_0 = arith.constant 0 : i32
    %2 = arith.cmpi ne, %1, %c0_i32_0 : i32
    scf.if %2 {
      %cst_133 = arith.constant 0.000000e+00 : f32
      %453 = vector.broadcast %cst_133 : f32 to vector<64x128xf32>
      %c0_134 = arith.constant 0 : index
      %c0_135 = arith.constant 0 : index
      %454 = vector.load %arg10[%c0_134, %c0_135] : memref<64x128xf32, #tpu.memory_space<vmem>>, vector<64x128xf32>
      tpu.vector_store %arg10[%c0_134, %c0_135], %453 {strides = array<i32>} : memref<64x128xf32, #tpu.memory_space<vmem>>, vector<64x128xf32>,
    } else {
    }
    %3 = tpu.iota {dimensions = array<i32: 1>} : vector<64x128xi32>
    %c64_i32 = arith.constant 64 : i32
    %4 = vector.broadcast %c64_i32 : i32 to vector<64x128xi32>
    %5 = arith.cmpi slt, %3, %4 : vector<64x128xi32>
    %6 = tpu.iota {dimensions = array<i32: 1>} : vector<8x128xi32>
    %c64_i32_1 = arith.constant 64 : i32
    %7 = vector.broadcast %c64_i32_1 : i32 to vector<8x128xi32>
    %8 = arith.cmpi slt, %6, %7 : vector<8x128xi32>
    %9 = tpu.iota {dimensions = array<i32: 0>} : vector<8x128xi32>
    %c0_i32_2 = arith.constant 0 : i32
    %c1_i32 = arith.constant 1 : i32
    %10 = arith.muli %c0_i32_2, %c1_i32 : i32
    %c0_i32_3 = arith.constant 0 : i32
    %11 = arith.addi %c0_i32_3, %10 : i32
    %c8_i32 = arith.constant 8 : i32
    %12 = arith.muli %11, %c8_i32 : i32
    %13 = tpu.assume_multiple %12, 8 : i32
    %c0 = arith.constant 0 : index
    %14 = arith.index_cast %13 : i32 to index
    %c0_4 = arith.constant 0 : index
    %15 = vector.load %arg4[%c0, %14, %c0_4] : memref<1x8x128xf32, #tpu.memory_space<vmem>>, vector<1x8x128xf32>
    %16 = vector.shape_cast %15 : vector<1x8x128xf32> to vector<8x128xf32>
    %17 = math.exp %16 : vector<8x128xf32>
    %cst = arith.constant 0.000000e+00 : f32
    %18 = vector.broadcast %cst : f32 to vector<8x128xf32>
    %19 = arith.subf %18, %17 : vector<8x128xf32>
    %20 = math.exp %19 : vector<8x128xf32>
    %c0_5 = arith.constant 0 : index
    %21 = arith.index_cast %13 : i32 to index
    %c0_6 = arith.constant 0 : index
    %22 = vector.load %arg3[%c0_5, %21, %c0_6] : memref<1x8x128xf32, #tpu.memory_space<vmem>>, vector<1x8x128xf32>
    %23 = vector.shape_cast %22 : vector<1x8x128xf32> to vector<8x128xf32>
    %c0_7 = arith.constant 0 : index
    %24 = arith.index_cast %13 : i32 to index
    %c0_8 = arith.constant 0 : index
    %25 = vector.load %arg5[%c0_7, %24, %c0_8] : memref<1x8x128xf32, #tpu.memory_space<vmem>>, vector<1x8x128xf32>
    %26 = vector.shape_cast %25 : vector<1x8x128xf32> to vector<8x128xf32>
    %c0_9 = arith.constant 0 : index
    %27 = arith.index_cast %13 : i32 to index
    %c0_10 = arith.constant 0 : index
    %28 = vector.load %arg6[%c0_9, %27, %c0_10] : memref<1x8x128xf32, #tpu.memory_space<vmem>>, vector<1x8x128xf32>
    %29 = vector.shape_cast %28 : vector<1x8x128xf32> to vector<8x128xf32>
    %c0_11 = arith.constant 0 : index
    %30 = arith.index_cast %13 : i32 to index
    %c0_12 = arith.constant 0 : index
    %31 = vector.load %arg7[%c0_11, %30, %c0_12] : memref<1x8x128xf32, #tpu.memory_space<vmem>>, vector<1x8x128xf32>
    %32 = vector.shape_cast %31 : vector<1x8x128xf32> to vector<8x128xf32>
    %cst_13 = arith.constant 0.000000e+00 : f32
    %33 = vector.broadcast %cst_13 : f32 to vector<8x128xf32>
    %34 = arith.subf %33, %32 : vector<8x128xf32>
    %c0_14 = arith.constant 0 : index
    %35 = arith.index_cast %13 : i32 to index
    %c0_15 = arith.constant 0 : index
    %36 = vector.load %arg8[%c0_14, %35, %c0_15] : memref<1x8x128xf32, #tpu.memory_space<vmem>>, vector<1x8x128xf32>
    %37 = vector.shape_cast %36 : vector<1x8x128xf32> to vector<8x128xf32>
    %38 = arith.mulf %32, %37 : vector<8x128xf32>
    %39 = vector.extract_strided_slice %38 {offsets = [0, 0], sizes = [8, 64], strides = [1, 1]} : vector<8x128xf32> to vector<8x64xf32>
    %cst_16 = arith.constant dense<0.000000e+00> : vector<8xf32>
    %40 = vector.multi_reduction <add>, %39, %cst_16 [1] : vector<8x64xf32> to vector<8xf32>
    %41 = vector.shape_cast %40 : vector<8xf32> to vector<8x1xf32>
    %42 = vector.shape_cast %41 : vector<8x1xf32> to vector<8x1xf32>
    %43 = vector.broadcast %42 : vector<8x1xf32> to vector<8x128xf32>
    %44 = vector.extract_strided_slice %38 {offsets = [0, 64], sizes = [8, 64], strides = [1, 1]} : vector<8x128xf32> to vector<8x64xf32>
    %cst_17 = arith.constant dense<0.000000e+00> : vector<8xf32>
    %45 = vector.multi_reduction <add>, %44, %cst_17 [1] : vector<8x64xf32> to vector<8xf32>
    %46 = vector.shape_cast %45 : vector<8xf32> to vector<8x1xf32>
    %47 = vector.shape_cast %46 : vector<8x1xf32> to vector<8x1xf32>
    %48 = vector.broadcast %47 : vector<8x1xf32> to vector<8x128xf32>
    %49 = arith.select %8, %43, %48 : vector<8x128xi1>, vector<8x128xf32>
    %50 = vector.extract_strided_slice %29 {offsets = [0, 0], sizes = [8, 64], strides = [1, 1]} : vector<8x128xf32> to vector<8x64xf32>
    %cst_18 = arith.constant dense<0.000000e+00> : vector<8xf32>
    %51 = vector.multi_reduction <add>, %50, %cst_18 [1] : vector<8x64xf32> to vector<8xf32>
    %52 = vector.shape_cast %51 : vector<8xf32> to vector<8x1xf32>
    %53 = vector.shape_cast %52 : vector<8x1xf32> to vector<8x1xf32>
    %54 = vector.broadcast %53 : vector<8x1xf32> to vector<8x128xf32>
    %55 = vector.extract_strided_slice %29 {offsets = [0, 64], sizes = [8, 64], strides = [1, 1]} : vector<8x128xf32> to vector<8x64xf32>
    %cst_19 = arith.constant dense<0.000000e+00> : vector<8xf32>
    %56 = vector.multi_reduction <add>, %55, %cst_19 [1] : vector<8x64xf32> to vector<8xf32>
    %57 = vector.shape_cast %56 : vector<8xf32> to vector<8x1xf32>
    %58 = vector.shape_cast %57 : vector<8x1xf32> to vector<8x1xf32>
    %59 = vector.broadcast %58 : vector<8x1xf32> to vector<8x128xf32>
    %60 = arith.select %8, %54, %59 : vector<8x128xi1>, vector<8x128xf32>
    %61 = tpu.transpose %23, [1, 0] : vector<8x128xf32> -> vector<128x8xf32>
    %c0_20 = arith.constant 0 : index
    %c0_21 = arith.constant 0 : index
    %62 = vector.load %arg11[%c0_20, %c0_21] : memref<128x8xf32, #tpu.memory_space<vmem>>, vector<128x8xf32>
    tpu.vector_store %arg11[%c0_20, %c0_21], %61 {strides = array<i32>} : memref<128x8xf32, #tpu.memory_space<vmem>>, vector<128x8xf32>,
    %63 = tpu.transpose %29, [1, 0] : vector<8x128xf32> -> vector<128x8xf32>
    %c0_22 = arith.constant 0 : index
    %c0_23 = arith.constant 0 : index
    %64 = vector.load %arg12[%c0_22, %c0_23] : memref<128x8xf32, #tpu.memory_space<vmem>>, vector<128x8xf32>
    tpu.vector_store %arg12[%c0_22, %c0_23], %63 {strides = array<i32>} : memref<128x8xf32, #tpu.memory_space<vmem>>, vector<128x8xf32>,
    %65 = tpu.transpose %38, [1, 0] : vector<8x128xf32> -> vector<128x8xf32>
    %c0_24 = arith.constant 0 : index
    %c0_25 = arith.constant 0 : index
    %66 = vector.load %arg13[%c0_24, %c0_25] : memref<128x8xf32, #tpu.memory_space<vmem>>, vector<128x8xf32>
    tpu.vector_store %arg13[%c0_24, %c0_25], %65 {strides = array<i32>} : memref<128x8xf32, #tpu.memory_space<vmem>>, vector<128x8xf32>,
    %c0_26 = arith.constant 0 : index
    %c0_27 = arith.constant 0 : index
    %67 = vector.load %arg10[%c0_26, %c0_27] : memref<64x128xf32, #tpu.memory_space<vmem>>, vector<64x128xf32>
    %cst_28 = arith.constant dense<0.000000e+00> : vector<128xf32>
    %68 = vector.multi_reduction <add>, %67, %cst_28 [0] : vector<64x128xf32> to vector<128xf32>
    %69 = vector.shape_cast %68 : vector<128xf32> to vector<1x128xf32>
    %cst_29 = arith.constant 0.000000e+00 : f32
    %70 = vector.broadcast %cst_29 : f32 to vector<8x128xf32>
    %71 = vector.extract_strided_slice %20 {offsets = [0, 0], sizes = [1, 128], strides = [1, 1]} : vector<8x128xf32> to vector<1x128xf32>
    %72 = vector.extract_strided_slice %26 {offsets = [0, 0], sizes = [1, 128], strides = [1, 1]} : vector<8x128xf32> to vector<1x128xf32>
    %73 = vector.extract_strided_slice %34 {offsets = [0, 0], sizes = [1, 128], strides = [1, 1]} : vector<8x128xf32> to vector<1x128xf32>
    %74 = vector.extract_strided_slice %49 {offsets = [0, 0], sizes = [1, 128], strides = [1, 1]} : vector<8x128xf32> to vector<1x128xf32>
    %75 = vector.extract_strided_slice %60 {offsets = [0, 0], sizes = [1, 128], strides = [1, 1]} : vector<8x128xf32> to vector<1x128xf32>
    %c0_30 = arith.constant 0 : index
    %c0_31 = arith.constant 0 : index
    %76 = vector.load %arg13[%c0_30, %c0_31] : memref<128x8xf32, #tpu.memory_space<vmem>>, vector<64x1xf32>
    %77 = vector.shape_cast %76 : vector<64x1xf32> to vector<64x1xf32>
    %78 = vector.broadcast %77 : vector<64x1xf32> to vector<64x128xf32>
    %c64 = arith.constant 64 : index
    %c0_32 = arith.constant 0 : index
    %79 = vector.load %arg13[%c64, %c0_32] : memref<128x8xf32, #tpu.memory_space<vmem>>, vector<64x1xf32>
    %80 = vector.shape_cast %79 : vector<64x1xf32> to vector<64x1xf32>
    %81 = vector.broadcast %80 : vector<64x1xf32> to vector<64x128xf32>
    %82 = arith.select %5, %78, %81 : vector<64x128xi1>, vector<64x128xf32>
    %c0_33 = arith.constant 0 : index
    %c0_34 = arith.constant 0 : index
    %83 = vector.load %arg12[%c0_33, %c0_34] : memref<128x8xf32, #tpu.memory_space<vmem>>, vector<64x1xf32>
    %84 = vector.shape_cast %83 : vector<64x1xf32> to vector<64x1xf32>
    %85 = vector.broadcast %84 : vector<64x1xf32> to vector<64x128xf32>
    %c64_35 = arith.constant 64 : index
    %c0_36 = arith.constant 0 : index
    %86 = vector.load %arg12[%c64_35, %c0_36] : memref<128x8xf32, #tpu.memory_space<vmem>>, vector<64x1xf32>
    %87 = vector.shape_cast %86 : vector<64x1xf32> to vector<64x1xf32>
    %88 = vector.broadcast %87 : vector<64x1xf32> to vector<64x128xf32>
    %89 = arith.select %5, %85, %88 : vector<64x128xi1>, vector<64x128xf32>
    %c0_37 = arith.constant 0 : index
    %c0_38 = arith.constant 0 : index
    %90 = vector.load %arg11[%c0_37, %c0_38] : memref<128x8xf32, #tpu.memory_space<vmem>>, vector<64x1xf32>
    %91 = vector.shape_cast %90 : vector<64x1xf32> to vector<64x1xf32>
    %92 = vector.broadcast %91 : vector<64x1xf32> to vector<64x128xf32>
    %c64_39 = arith.constant 64 : index
    %c0_40 = arith.constant 0 : index
    %93 = vector.load %arg11[%c64_39, %c0_40] : memref<128x8xf32, #tpu.memory_space<vmem>>, vector<64x1xf32>
    %94 = vector.shape_cast %93 : vector<64x1xf32> to vector<64x1xf32>
    %95 = vector.broadcast %94 : vector<64x1xf32> to vector<64x128xf32>
    %96 = arith.select %5, %92, %95 : vector<64x128xi1>, vector<64x128xf32>
    %97 = arith.mulf %73, %69 : vector<1x128xf32>
    %98 = arith.mulf %71, %69 : vector<1x128xf32>
    %99 = arith.mulf %97, %74 : vector<1x128xf32>
    %100 = arith.addf %98, %99 : vector<1x128xf32>
    %101 = arith.mulf %72, %75 : vector<1x128xf32>
    %102 = arith.addf %100, %101 : vector<1x128xf32>
    %103 = vector.broadcast %71 : vector<1x128xf32> to vector<64x128xf32>
    %104 = arith.mulf %67, %103 : vector<64x128xf32>
    %105 = vector.broadcast %97 : vector<1x128xf32> to vector<64x128xf32>
    %106 = arith.mulf %82, %105 : vector<64x128xf32>
    %107 = arith.addf %104, %106 : vector<64x128xf32>
    %108 = vector.broadcast %72 : vector<1x128xf32> to vector<64x128xf32>
    %109 = arith.mulf %89, %108 : vector<64x128xf32>
    %110 = arith.addf %107, %109 : vector<64x128xf32>
    %111 = arith.mulf %110, %96 : vector<64x128xf32>
    %cst_41 = arith.constant dense<0.000000e+00> : vector<128xf32>
    %112 = vector.multi_reduction <add>, %111, %cst_41 [0] : vector<64x128xf32> to vector<128xf32>
    %113 = vector.shape_cast %112 : vector<128xf32> to vector<1x128xf32>
    %c0_i32_42 = arith.constant 0 : i32
    %114 = vector.broadcast %c0_i32_42 : i32 to vector<8x128xi32>
    %115 = arith.cmpi eq, %9, %114 : vector<8x128xi32>
    %116 = vector.shape_cast %113 : vector<1x128xf32> to vector<1x128xf32>
    %117 = vector.broadcast %116 : vector<1x128xf32> to vector<8x128xf32>
    %118 = arith.select %115, %117, %70 : vector<8x128xi1>, vector<8x128xf32>
    %119 = vector.extract_strided_slice %20 {offsets = [1, 0], sizes = [1, 128], strides = [1, 1]} : vector<8x128xf32> to vector<1x128xf32>
    %120 = vector.extract_strided_slice %26 {offsets = [1, 0], sizes = [1, 128], strides = [1, 1]} : vector<8x128xf32> to vector<1x128xf32>
    %121 = vector.extract_strided_slice %34 {offsets = [1, 0], sizes = [1, 128], strides = [1, 1]} : vector<8x128xf32> to vector<1x128xf32>
    %122 = vector.extract_strided_slice %49 {offsets = [1, 0], sizes = [1, 128], strides = [1, 1]} : vector<8x128xf32> to vector<1x128xf32>
    %123 = vector.extract_strided_slice %60 {offsets = [1, 0], sizes = [1, 128], strides = [1, 1]} : vector<8x128xf32> to vector<1x128xf32>
    %c0_43 = arith.constant 0 : index
    %c1 = arith.constant 1 : index
    %124 = vector.load %arg13[%c0_43, %c1] : memref<128x8xf32, #tpu.memory_space<vmem>>, vector<64x1xf32>
    %125 = vector.shape_cast %124 : vector<64x1xf32> to vector<64x1xf32>
    %126 = vector.broadcast %125 : vector<64x1xf32> to vector<64x128xf32>
    %c64_44 = arith.constant 64 : index
    %c1_45 = arith.constant 1 : index
    %127 = vector.load %arg13[%c64_44, %c1_45] : memref<128x8xf32, #tpu.memory_space<vmem>>, vector<64x1xf32>
    %128 = vector.shape_cast %127 : vector<64x1xf32> to vector<64x1xf32>
    %129 = vector.broadcast %128 : vector<64x1xf32> to vector<64x128xf32>
    %130 = arith.select %5, %126, %129 : vector<64x128xi1>, vector<64x128xf32>
    %c0_46 = arith.constant 0 : index
    %c1_47 = arith.constant 1 : index
    %131 = vector.load %arg12[%c0_46, %c1_47] : memref<128x8xf32, #tpu.memory_space<vmem>>, vector<64x1xf32>
    %132 = vector.shape_cast %131 : vector<64x1xf32> to vector<64x1xf32>
    %133 = vector.broadcast %132 : vector<64x1xf32> to vector<64x128xf32>
    %c64_48 = arith.constant 64 : index
    %c1_49 = arith.constant 1 : index
    %134 = vector.load %arg12[%c64_48, %c1_49] : memref<128x8xf32, #tpu.memory_space<vmem>>, vector<64x1xf32>
    %135 = vector.shape_cast %134 : vector<64x1xf32> to vector<64x1xf32>
    %136 = vector.broadcast %135 : vector<64x1xf32> to vector<64x128xf32>
    %137 = arith.select %5, %133, %136 : vector<64x128xi1>, vector<64x128xf32>
    %c0_50 = arith.constant 0 : index
    %c1_51 = arith.constant 1 : index
    %138 = vector.load %arg11[%c0_50, %c1_51] : memref<128x8xf32, #tpu.memory_space<vmem>>, vector<64x1xf32>
    %139 = vector.shape_cast %138 : vector<64x1xf32> to vector<64x1xf32>
    %140 = vector.broadcast %139 : vector<64x1xf32> to vector<64x128xf32>
    %c64_52 = arith.constant 64 : index
    %c1_53 = arith.constant 1 : index
    %141 = vector.load %arg11[%c64_52, %c1_53] : memref<128x8xf32, #tpu.memory_space<vmem>>, vector<64x1xf32>
    %142 = vector.shape_cast %141 : vector<64x1xf32> to vector<64x1xf32>
    %143 = vector.broadcast %142 : vector<64x1xf32> to vector<64x128xf32>
    %144 = arith.select %5, %140, %143 : vector<64x128xi1>, vector<64x128xf32>
    %145 = arith.mulf %121, %102 : vector<1x128xf32>
    %146 = arith.mulf %119, %102 : vector<1x128xf32>
    %147 = arith.mulf %145, %122 : vector<1x128xf32>
    %148 = arith.addf %146, %147 : vector<1x128xf32>
    %149 = arith.mulf %120, %123 : vector<1x128xf32>
    %150 = arith.addf %148, %149 : vector<1x128xf32>
    %151 = vector.broadcast %119 : vector<1x128xf32> to vector<64x128xf32>
    %152 = arith.mulf %110, %151 : vector<64x128xf32>
    %153 = vector.broadcast %145 : vector<1x128xf32> to vector<64x128xf32>
    %154 = arith.mulf %130, %153 : vector<64x128xf32>
    %155 = arith.addf %152, %154 : vector<64x128xf32>
    %156 = vector.broadcast %120 : vector<1x128xf32> to vector<64x128xf32>
    %157 = arith.mulf %137, %156 : vector<64x128xf32>
    %158 = arith.addf %155, %157 : vector<64x128xf32>
    %159 = arith.mulf %158, %144 : vector<64x128xf32>
    %cst_54 = arith.constant dense<0.000000e+00> : vector<128xf32>
    %160 = vector.multi_reduction <add>, %159, %cst_54 [0] : vector<64x128xf32> to vector<128xf32>
    %161 = vector.shape_cast %160 : vector<128xf32> to vector<1x128xf32>
    %c1_i32_55 = arith.constant 1 : i32
    %162 = vector.broadcast %c1_i32_55 : i32 to vector<8x128xi32>
    %163 = arith.cmpi eq, %9, %162 : vector<8x128xi32>
    %164 = vector.shape_cast %161 : vector<1x128xf32> to vector<1x128xf32>
    %165 = vector.broadcast %164 : vector<1x128xf32> to vector<8x128xf32>
    %166 = arith.select %163, %165, %118 : vector<8x128xi1>, vector<8x128xf32>
    %167 = vector.extract_strided_slice %20 {offsets = [2, 0], sizes = [1, 128], strides = [1, 1]} : vector<8x128xf32> to vector<1x128xf32>
    %168 = vector.extract_strided_slice %26 {offsets = [2, 0], sizes = [1, 128], strides = [1, 1]} : vector<8x128xf32> to vector<1x128xf32>
    %169 = vector.extract_strided_slice %34 {offsets = [2, 0], sizes = [1, 128], strides = [1, 1]} : vector<8x128xf32> to vector<1x128xf32>
    %170 = vector.extract_strided_slice %49 {offsets = [2, 0], sizes = [1, 128], strides = [1, 1]} : vector<8x128xf32> to vector<1x128xf32>
    %171 = vector.extract_strided_slice %60 {offsets = [2, 0], sizes = [1, 128], strides = [1, 1]} : vector<8x128xf32> to vector<1x128xf32>
    %c0_56 = arith.constant 0 : index
    %c2 = arith.constant 2 : index
    %172 = vector.load %arg13[%c0_56, %c2] : memref<128x8xf32, #tpu.memory_space<vmem>>, vector<64x1xf32>
    %173 = vector.shape_cast %172 : vector<64x1xf32> to vector<64x1xf32>
    %174 = vector.broadcast %173 : vector<64x1xf32> to vector<64x128xf32>
    %c64_57 = arith.constant 64 : index
    %c2_58 = arith.constant 2 : index
    %175 = vector.load %arg13[%c64_57, %c2_58] : memref<128x8xf32, #tpu.memory_space<vmem>>, vector<64x1xf32>
    %176 = vector.shape_cast %175 : vector<64x1xf32> to vector<64x1xf32>
    %177 = vector.broadcast %176 : vector<64x1xf32> to vector<64x128xf32>
    %178 = arith.select %5, %174, %177 : vector<64x128xi1>, vector<64x128xf32>
    %c0_59 = arith.constant 0 : index
    %c2_60 = arith.constant 2 : index
    %179 = vector.load %arg12[%c0_59, %c2_60] : memref<128x8xf32, #tpu.memory_space<vmem>>, vector<64x1xf32>
    %180 = vector.shape_cast %179 : vector<64x1xf32> to vector<64x1xf32>
    %181 = vector.broadcast %180 : vector<64x1xf32> to vector<64x128xf32>
    %c64_61 = arith.constant 64 : index
    %c2_62 = arith.constant 2 : index
    %182 = vector.load %arg12[%c64_61, %c2_62] : memref<128x8xf32, #tpu.memory_space<vmem>>, vector<64x1xf32>
    %183 = vector.shape_cast %182 : vector<64x1xf32> to vector<64x1xf32>
    %184 = vector.broadcast %183 : vector<64x1xf32> to vector<64x128xf32>
    %185 = arith.select %5, %181, %184 : vector<64x128xi1>, vector<64x128xf32>
    %c0_63 = arith.constant 0 : index
    %c2_64 = arith.constant 2 : index
    %186 = vector.load %arg11[%c0_63, %c2_64] : memref<128x8xf32, #tpu.memory_space<vmem>>, vector<64x1xf32>
    %187 = vector.shape_cast %186 : vector<64x1xf32> to vector<64x1xf32>
    %188 = vector.broadcast %187 : vector<64x1xf32> to vector<64x128xf32>
    %c64_65 = arith.constant 64 : index
    %c2_66 = arith.constant 2 : index
    %189 = vector.load %arg11[%c64_65, %c2_66] : memref<128x8xf32, #tpu.memory_space<vmem>>, vector<64x1xf32>
    %190 = vector.shape_cast %189 : vector<64x1xf32> to vector<64x1xf32>
    %191 = vector.broadcast %190 : vector<64x1xf32> to vector<64x128xf32>
    %192 = arith.select %5, %188, %191 : vector<64x128xi1>, vector<64x128xf32>
    %193 = arith.mulf %169, %150 : vector<1x128xf32>
    %194 = arith.mulf %167, %150 : vector<1x128xf32>
    %195 = arith.mulf %193, %170 : vector<1x128xf32>
    %196 = arith.addf %194, %195 : vector<1x128xf32>
    %197 = arith.mulf %168, %171 : vector<1x128xf32>
    %198 = arith.addf %196, %197 : vector<1x128xf32>
    %199 = vector.broadcast %167 : vector<1x128xf32> to vector<64x128xf32>
    %200 = arith.mulf %158, %199 : vector<64x128xf32>
    %201 = vector.broadcast %193 : vector<1x128xf32> to vector<64x128xf32>
    %202 = arith.mulf %178, %201 : vector<64x128xf32>
    %203 = arith.addf %200, %202 : vector<64x128xf32>
    %204 = vector.broadcast %168 : vector<1x128xf32> to vector<64x128xf32>
    %205 = arith.mulf %185, %204 : vector<64x128xf32>
    %206 = arith.addf %203, %205 : vector<64x128xf32>
    %207 = arith.mulf %206, %192 : vector<64x128xf32>
    %cst_67 = arith.constant dense<0.000000e+00> : vector<128xf32>
    %208 = vector.multi_reduction <add>, %207, %cst_67 [0] : vector<64x128xf32> to vector<128xf32>
    %209 = vector.shape_cast %208 : vector<128xf32> to vector<1x128xf32>
    %c2_i32 = arith.constant 2 : i32
    %210 = vector.broadcast %c2_i32 : i32 to vector<8x128xi32>
    %211 = arith.cmpi eq, %9, %210 : vector<8x128xi32>
    %212 = vector.shape_cast %209 : vector<1x128xf32> to vector<1x128xf32>
    %213 = vector.broadcast %212 : vector<1x128xf32> to vector<8x128xf32>
    %214 = arith.select %211, %213, %166 : vector<8x128xi1>, vector<8x128xf32>
    %215 = vector.extract_strided_slice %20 {offsets = [3, 0], sizes = [1, 128], strides = [1, 1]} : vector<8x128xf32> to vector<1x128xf32>
    %216 = vector.extract_strided_slice %26 {offsets = [3, 0], sizes = [1, 128], strides = [1, 1]} : vector<8x128xf32> to vector<1x128xf32>
    %217 = vector.extract_strided_slice %34 {offsets = [3, 0], sizes = [1, 128], strides = [1, 1]} : vector<8x128xf32> to vector<1x128xf32>
    %218 = vector.extract_strided_slice %49 {offsets = [3, 0], sizes = [1, 128], strides = [1, 1]} : vector<8x128xf32> to vector<1x128xf32>
    %219 = vector.extract_strided_slice %60 {offsets = [3, 0], sizes = [1, 128], strides = [1, 1]} : vector<8x128xf32> to vector<1x128xf32>
    %c0_68 = arith.constant 0 : index
    %c3 = arith.constant 3 : index
    %220 = vector.load %arg13[%c0_68, %c3] : memref<128x8xf32, #tpu.memory_space<vmem>>, vector<64x1xf32>
    %221 = vector.shape_cast %220 : vector<64x1xf32> to vector<64x1xf32>
    %222 = vector.broadcast %221 : vector<64x1xf32> to vector<64x128xf32>
    %c64_69 = arith.constant 64 : index
    %c3_70 = arith.constant 3 : index
    %223 = vector.load %arg13[%c64_69, %c3_70] : memref<128x8xf32, #tpu.memory_space<vmem>>, vector<64x1xf32>
    %224 = vector.shape_cast %223 : vector<64x1xf32> to vector<64x1xf32>
    %225 = vector.broadcast %224 : vector<64x1xf32> to vector<64x128xf32>
    %226 = arith.select %5, %222, %225 : vector<64x128xi1>, vector<64x128xf32>
    %c0_71 = arith.constant 0 : index
    %c3_72 = arith.constant 3 : index
    %227 = vector.load %arg12[%c0_71, %c3_72] : memref<128x8xf32, #tpu.memory_space<vmem>>, vector<64x1xf32>
    %228 = vector.shape_cast %227 : vector<64x1xf32> to vector<64x1xf32>
    %229 = vector.broadcast %228 : vector<64x1xf32> to vector<64x128xf32>
    %c64_73 = arith.constant 64 : index
    %c3_74 = arith.constant 3 : index
    %230 = vector.load %arg12[%c64_73, %c3_74] : memref<128x8xf32, #tpu.memory_space<vmem>>, vector<64x1xf32>
    %231 = vector.shape_cast %230 : vector<64x1xf32> to vector<64x1xf32>
    %232 = vector.broadcast %231 : vector<64x1xf32> to vector<64x128xf32>
    %233 = arith.select %5, %229, %232 : vector<64x128xi1>, vector<64x128xf32>
    %c0_75 = arith.constant 0 : index
    %c3_76 = arith.constant 3 : index
    %234 = vector.load %arg11[%c0_75, %c3_76] : memref<128x8xf32, #tpu.memory_space<vmem>>, vector<64x1xf32>
    %235 = vector.shape_cast %234 : vector<64x1xf32> to vector<64x1xf32>
    %236 = vector.broadcast %235 : vector<64x1xf32> to vector<64x128xf32>
    %c64_77 = arith.constant 64 : index
    %c3_78 = arith.constant 3 : index
    %237 = vector.load %arg11[%c64_77, %c3_78] : memref<128x8xf32, #tpu.memory_space<vmem>>, vector<64x1xf32>
    %238 = vector.shape_cast %237 : vector<64x1xf32> to vector<64x1xf32>
    %239 = vector.broadcast %238 : vector<64x1xf32> to vector<64x128xf32>
    %240 = arith.select %5, %236, %239 : vector<64x128xi1>, vector<64x128xf32>
    %241 = arith.mulf %217, %198 : vector<1x128xf32>
    %242 = arith.mulf %215, %198 : vector<1x128xf32>
    %243 = arith.mulf %241, %218 : vector<1x128xf32>
    %244 = arith.addf %242, %243 : vector<1x128xf32>
    %245 = arith.mulf %216, %219 : vector<1x128xf32>
    %246 = arith.addf %244, %245 : vector<1x128xf32>
    %247 = vector.broadcast %215 : vector<1x128xf32> to vector<64x128xf32>
    %248 = arith.mulf %206, %247 : vector<64x128xf32>
    %249 = vector.broadcast %241 : vector<1x128xf32> to vector<64x128xf32>
    %250 = arith.mulf %226, %249 : vector<64x128xf32>
    %251 = arith.addf %248, %250 : vector<64x128xf32>
    %252 = vector.broadcast %216 : vector<1x128xf32> to vector<64x128xf32>
    %253 = arith.mulf %233, %252 : vector<64x128xf32>
    %254 = arith.addf %251, %253 : vector<64x128xf32>
    %255 = arith.mulf %254, %240 : vector<64x128xf32>
    %cst_79 = arith.constant dense<0.000000e+00> : vector<128xf32>
    %256 = vector.multi_reduction <add>, %255, %cst_79 [0] : vector<64x128xf32> to vector<128xf32>
    %257 = vector.shape_cast %256 : vector<128xf32> to vector<1x128xf32>
    %c3_i32 = arith.constant 3 : i32
    %258 = vector.broadcast %c3_i32 : i32 to vector<8x128xi32>
    %259 = arith.cmpi eq, %9, %258 : vector<8x128xi32>
    %260 = vector.shape_cast %257 : vector<1x128xf32> to vector<1x128xf32>
    %261 = vector.broadcast %260 : vector<1x128xf32> to vector<8x128xf32>
    %262 = arith.select %259, %261, %214 : vector<8x128xi1>, vector<8x128xf32>
    %263 = vector.extract_strided_slice %20 {offsets = [4, 0], sizes = [1, 128], strides = [1, 1]} : vector<8x128xf32> to vector<1x128xf32>
    %264 = vector.extract_strided_slice %26 {offsets = [4, 0], sizes = [1, 128], strides = [1, 1]} : vector<8x128xf32> to vector<1x128xf32>
    %265 = vector.extract_strided_slice %34 {offsets = [4, 0], sizes = [1, 128], strides = [1, 1]} : vector<8x128xf32> to vector<1x128xf32>
    %266 = vector.extract_strided_slice %49 {offsets = [4, 0], sizes = [1, 128], strides = [1, 1]} : vector<8x128xf32> to vector<1x128xf32>
    %267 = vector.extract_strided_slice %60 {offsets = [4, 0], sizes = [1, 128], strides = [1, 1]} : vector<8x128xf32> to vector<1x128xf32>
    %c0_80 = arith.constant 0 : index
    %c4 = arith.constant 4 : index
    %268 = vector.load %arg13[%c0_80, %c4] : memref<128x8xf32, #tpu.memory_space<vmem>>, vector<64x1xf32>
    %269 = vector.shape_cast %268 : vector<64x1xf32> to vector<64x1xf32>
    %270 = vector.broadcast %269 : vector<64x1xf32> to vector<64x128xf32>
    %c64_81 = arith.constant 64 : index
    %c4_82 = arith.constant 4 : index
    %271 = vector.load %arg13[%c64_81, %c4_82] : memref<128x8xf32, #tpu.memory_space<vmem>>, vector<64x1xf32>
    %272 = vector.shape_cast %271 : vector<64x1xf32> to vector<64x1xf32>
    %273 = vector.broadcast %272 : vector<64x1xf32> to vector<64x128xf32>
    %274 = arith.select %5, %270, %273 : vector<64x128xi1>, vector<64x128xf32>
    %c0_83 = arith.constant 0 : index
    %c4_84 = arith.constant 4 : index
    %275 = vector.load %arg12[%c0_83, %c4_84] : memref<128x8xf32, #tpu.memory_space<vmem>>, vector<64x1xf32>
    %276 = vector.shape_cast %275 : vector<64x1xf32> to vector<64x1xf32>
    %277 = vector.broadcast %276 : vector<64x1xf32> to vector<64x128xf32>
    %c64_85 = arith.constant 64 : index
    %c4_86 = arith.constant 4 : index
    %278 = vector.load %arg12[%c64_85, %c4_86] : memref<128x8xf32, #tpu.memory_space<vmem>>, vector<64x1xf32>
    %279 = vector.shape_cast %278 : vector<64x1xf32> to vector<64x1xf32>
    %280 = vector.broadcast %279 : vector<64x1xf32> to vector<64x128xf32>
    %281 = arith.select %5, %277, %280 : vector<64x128xi1>, vector<64x128xf32>
    %c0_87 = arith.constant 0 : index
    %c4_88 = arith.constant 4 : index
    %282 = vector.load %arg11[%c0_87, %c4_88] : memref<128x8xf32, #tpu.memory_space<vmem>>, vector<64x1xf32>
    %283 = vector.shape_cast %282 : vector<64x1xf32> to vector<64x1xf32>
    %284 = vector.broadcast %283 : vector<64x1xf32> to vector<64x128xf32>
    %c64_89 = arith.constant 64 : index
    %c4_90 = arith.constant 4 : index
    %285 = vector.load %arg11[%c64_89, %c4_90] : memref<128x8xf32, #tpu.memory_space<vmem>>, vector<64x1xf32>
    %286 = vector.shape_cast %285 : vector<64x1xf32> to vector<64x1xf32>
    %287 = vector.broadcast %286 : vector<64x1xf32> to vector<64x128xf32>
    %288 = arith.select %5, %284, %287 : vector<64x128xi1>, vector<64x128xf32>
    %289 = arith.mulf %265, %246 : vector<1x128xf32>
    %290 = arith.mulf %263, %246 : vector<1x128xf32>
    %291 = arith.mulf %289, %266 : vector<1x128xf32>
    %292 = arith.addf %290, %291 : vector<1x128xf32>
    %293 = arith.mulf %264, %267 : vector<1x128xf32>
    %294 = arith.addf %292, %293 : vector<1x128xf32>
    %295 = vector.broadcast %263 : vector<1x128xf32> to vector<64x128xf32>
    %296 = arith.mulf %254, %295 : vector<64x128xf32>
    %297 = vector.broadcast %289 : vector<1x128xf32> to vector<64x128xf32>
    %298 = arith.mulf %274, %297 : vector<64x128xf32>
    %299 = arith.addf %296, %298 : vector<64x128xf32>
    %300 = vector.broadcast %264 : vector<1x128xf32> to vector<64x128xf32>
    %301 = arith.mulf %281, %300 : vector<64x128xf32>
    %302 = arith.addf %299, %301 : vector<64x128xf32>
    %303 = arith.mulf %302, %288 : vector<64x128xf32>
    %cst_91 = arith.constant dense<0.000000e+00> : vector<128xf32>
    %304 = vector.multi_reduction <add>, %303, %cst_91 [0] : vector<64x128xf32> to vector<128xf32>
    %305 = vector.shape_cast %304 : vector<128xf32> to vector<1x128xf32>
    %c4_i32 = arith.constant 4 : i32
    %306 = vector.broadcast %c4_i32 : i32 to vector<8x128xi32>
    %307 = arith.cmpi eq, %9, %306 : vector<8x128xi32>
    %308 = vector.shape_cast %305 : vector<1x128xf32> to vector<1x128xf32>
    %309 = vector.broadcast %308 : vector<1x128xf32> to vector<8x128xf32>
    %310 = arith.select %307, %309, %262 : vector<8x128xi1>, vector<8x128xf32>
    %311 = vector.extract_strided_slice %20 {offsets = [5, 0], sizes = [1, 128], strides = [1, 1]} : vector<8x128xf32> to vector<1x128xf32>
    %312 = vector.extract_strided_slice %26 {offsets = [5, 0], sizes = [1, 128], strides = [1, 1]} : vector<8x128xf32> to vector<1x128xf32>
    %313 = vector.extract_strided_slice %34 {offsets = [5, 0], sizes = [1, 128], strides = [1, 1]} : vector<8x128xf32> to vector<1x128xf32>
    %314 = vector.extract_strided_slice %49 {offsets = [5, 0], sizes = [1, 128], strides = [1, 1]} : vector<8x128xf32> to vector<1x128xf32>
    %315 = vector.extract_strided_slice %60 {offsets = [5, 0], sizes = [1, 128], strides = [1, 1]} : vector<8x128xf32> to vector<1x128xf32>
    %c0_92 = arith.constant 0 : index
    %c5 = arith.constant 5 : index
    %316 = vector.load %arg13[%c0_92, %c5] : memref<128x8xf32, #tpu.memory_space<vmem>>, vector<64x1xf32>
    %317 = vector.shape_cast %316 : vector<64x1xf32> to vector<64x1xf32>
    %318 = vector.broadcast %317 : vector<64x1xf32> to vector<64x128xf32>
    %c64_93 = arith.constant 64 : index
    %c5_94 = arith.constant 5 : index
    %319 = vector.load %arg13[%c64_93, %c5_94] : memref<128x8xf32, #tpu.memory_space<vmem>>, vector<64x1xf32>
    %320 = vector.shape_cast %319 : vector<64x1xf32> to vector<64x1xf32>
    %321 = vector.broadcast %320 : vector<64x1xf32> to vector<64x128xf32>
    %322 = arith.select %5, %318, %321 : vector<64x128xi1>, vector<64x128xf32>
    %c0_95 = arith.constant 0 : index
    %c5_96 = arith.constant 5 : index
    %323 = vector.load %arg12[%c0_95, %c5_96] : memref<128x8xf32, #tpu.memory_space<vmem>>, vector<64x1xf32>
    %324 = vector.shape_cast %323 : vector<64x1xf32> to vector<64x1xf32>
    %325 = vector.broadcast %324 : vector<64x1xf32> to vector<64x128xf32>
    %c64_97 = arith.constant 64 : index
    %c5_98 = arith.constant 5 : index
    %326 = vector.load %arg12[%c64_97, %c5_98] : memref<128x8xf32, #tpu.memory_space<vmem>>, vector<64x1xf32>
    %327 = vector.shape_cast %326 : vector<64x1xf32> to vector<64x1xf32>
    %328 = vector.broadcast %327 : vector<64x1xf32> to vector<64x128xf32>
    %329 = arith.select %5, %325, %328 : vector<64x128xi1>, vector<64x128xf32>
    %c0_99 = arith.constant 0 : index
    %c5_100 = arith.constant 5 : index
    %330 = vector.load %arg11[%c0_99, %c5_100] : memref<128x8xf32, #tpu.memory_space<vmem>>, vector<64x1xf32>
    %331 = vector.shape_cast %330 : vector<64x1xf32> to vector<64x1xf32>
    %332 = vector.broadcast %331 : vector<64x1xf32> to vector<64x128xf32>
    %c64_101 = arith.constant 64 : index
    %c5_102 = arith.constant 5 : index
    %333 = vector.load %arg11[%c64_101, %c5_102] : memref<128x8xf32, #tpu.memory_space<vmem>>, vector<64x1xf32>
    %334 = vector.shape_cast %333 : vector<64x1xf32> to vector<64x1xf32>
    %335 = vector.broadcast %334 : vector<64x1xf32> to vector<64x128xf32>
    %336 = arith.select %5, %332, %335 : vector<64x128xi1>, vector<64x128xf32>
    %337 = arith.mulf %313, %294 : vector<1x128xf32>
    %338 = arith.mulf %311, %294 : vector<1x128xf32>
    %339 = arith.mulf %337, %314 : vector<1x128xf32>
    %340 = arith.addf %338, %339 : vector<1x128xf32>
    %341 = arith.mulf %312, %315 : vector<1x128xf32>
    %342 = arith.addf %340, %341 : vector<1x128xf32>
    %343 = vector.broadcast %311 : vector<1x128xf32> to vector<64x128xf32>
    %344 = arith.mulf %302, %343 : vector<64x128xf32>
    %345 = vector.broadcast %337 : vector<1x128xf32> to vector<64x128xf32>
    %346 = arith.mulf %322, %345 : vector<64x128xf32>
    %347 = arith.addf %344, %346 : vector<64x128xf32>
    %348 = vector.broadcast %312 : vector<1x128xf32> to vector<64x128xf32>
    %349 = arith.mulf %329, %348 : vector<64x128xf32>
    %350 = arith.addf %347, %349 : vector<64x128xf32>
    %351 = arith.mulf %350, %336 : vector<64x128xf32>
    %cst_103 = arith.constant dense<0.000000e+00> : vector<128xf32>
    %352 = vector.multi_reduction <add>, %351, %cst_103 [0] : vector<64x128xf32> to vector<128xf32>
    %353 = vector.shape_cast %352 : vector<128xf32> to vector<1x128xf32>
    %c5_i32 = arith.constant 5 : i32
    %354 = vector.broadcast %c5_i32 : i32 to vector<8x128xi32>
    %355 = arith.cmpi eq, %9, %354 : vector<8x128xi32>
    %356 = vector.shape_cast %353 : vector<1x128xf32> to vector<1x128xf32>
    %357 = vector.broadcast %356 : vector<1x128xf32> to vector<8x128xf32>
    %358 = arith.select %355, %357, %310 : vector<8x128xi1>, vector<8x128xf32>
    %359 = vector.extract_strided_slice %20 {offsets = [6, 0], sizes = [1, 128], strides = [1, 1]} : vector<8x128xf32> to vector<1x128xf32>
    %360 = vector.extract_strided_slice %26 {offsets = [6, 0], sizes = [1, 128], strides = [1, 1]} : vector<8x128xf32> to vector<1x128xf32>
    %361 = vector.extract_strided_slice %34 {offsets = [6, 0], sizes = [1, 128], strides = [1, 1]} : vector<8x128xf32> to vector<1x128xf32>
    %362 = vector.extract_strided_slice %49 {offsets = [6, 0], sizes = [1, 128], strides = [1, 1]} : vector<8x128xf32> to vector<1x128xf32>
    %363 = vector.extract_strided_slice %60 {offsets = [6, 0], sizes = [1, 128], strides = [1, 1]} : vector<8x128xf32> to vector<1x128xf32>
    %c0_104 = arith.constant 0 : index
    %c6 = arith.constant 6 : index
    %364 = vector.load %arg13[%c0_104, %c6] : memref<128x8xf32, #tpu.memory_space<vmem>>, vector<64x1xf32>
    %365 = vector.shape_cast %364 : vector<64x1xf32> to vector<64x1xf32>
    %366 = vector.broadcast %365 : vector<64x1xf32> to vector<64x128xf32>
    %c64_105 = arith.constant 64 : index
    %c6_106 = arith.constant 6 : index
    %367 = vector.load %arg13[%c64_105, %c6_106] : memref<128x8xf32, #tpu.memory_space<vmem>>, vector<64x1xf32>
    %368 = vector.shape_cast %367 : vector<64x1xf32> to vector<64x1xf32>
    %369 = vector.broadcast %368 : vector<64x1xf32> to vector<64x128xf32>
    %370 = arith.select %5, %366, %369 : vector<64x128xi1>, vector<64x128xf32>
    %c0_107 = arith.constant 0 : index
    %c6_108 = arith.constant 6 : index
    %371 = vector.load %arg12[%c0_107, %c6_108] : memref<128x8xf32, #tpu.memory_space<vmem>>, vector<64x1xf32>
    %372 = vector.shape_cast %371 : vector<64x1xf32> to vector<64x1xf32>
    %373 = vector.broadcast %372 : vector<64x1xf32> to vector<64x128xf32>
    %c64_109 = arith.constant 64 : index
    %c6_110 = arith.constant 6 : index
    %374 = vector.load %arg12[%c64_109, %c6_110] : memref<128x8xf32, #tpu.memory_space<vmem>>, vector<64x1xf32>
    %375 = vector.shape_cast %374 : vector<64x1xf32> to vector<64x1xf32>
    %376 = vector.broadcast %375 : vector<64x1xf32> to vector<64x128xf32>
    %377 = arith.select %5, %373, %376 : vector<64x128xi1>, vector<64x128xf32>
    %c0_111 = arith.constant 0 : index
    %c6_112 = arith.constant 6 : index
    %378 = vector.load %arg11[%c0_111, %c6_112] : memref<128x8xf32, #tpu.memory_space<vmem>>, vector<64x1xf32>
    %379 = vector.shape_cast %378 : vector<64x1xf32> to vector<64x1xf32>
    %380 = vector.broadcast %379 : vector<64x1xf32> to vector<64x128xf32>
    %c64_113 = arith.constant 64 : index
    %c6_114 = arith.constant 6 : index
    %381 = vector.load %arg11[%c64_113, %c6_114] : memref<128x8xf32, #tpu.memory_space<vmem>>, vector<64x1xf32>
    %382 = vector.shape_cast %381 : vector<64x1xf32> to vector<64x1xf32>
    %383 = vector.broadcast %382 : vector<64x1xf32> to vector<64x128xf32>
    %384 = arith.select %5, %380, %383 : vector<64x128xi1>, vector<64x128xf32>
    %385 = arith.mulf %361, %342 : vector<1x128xf32>
    %386 = arith.mulf %359, %342 : vector<1x128xf32>
    %387 = arith.mulf %385, %362 : vector<1x128xf32>
    %388 = arith.addf %386, %387 : vector<1x128xf32>
    %389 = arith.mulf %360, %363 : vector<1x128xf32>
    %390 = arith.addf %388, %389 : vector<1x128xf32>
    %391 = vector.broadcast %359 : vector<1x128xf32> to vector<64x128xf32>
    %392 = arith.mulf %350, %391 : vector<64x128xf32>
    %393 = vector.broadcast %385 : vector<1x128xf32> to vector<64x128xf32>
    %394 = arith.mulf %370, %393 : vector<64x128xf32>
    %395 = arith.addf %392, %394 : vector<64x128xf32>
    %396 = vector.broadcast %360 : vector<1x128xf32> to vector<64x128xf32>
    %397 = arith.mulf %377, %396 : vector<64x128xf32>
    %398 = arith.addf %395, %397 : vector<64x128xf32>
    %399 = arith.mulf %398, %384 : vector<64x128xf32>
    %cst_115 = arith.constant dense<0.000000e+00> : vector<128xf32>
    %400 = vector.multi_reduction <add>, %399, %cst_115 [0] : vector<64x128xf32> to vector<128xf32>
    %401 = vector.shape_cast %400 : vector<128xf32> to vector<1x128xf32>
    %c6_i32 = arith.constant 6 : i32
    %402 = vector.broadcast %c6_i32 : i32 to vector<8x128xi32>
    %403 = arith.cmpi eq, %9, %402 : vector<8x128xi32>
    %404 = vector.shape_cast %401 : vector<1x128xf32> to vector<1x128xf32>
    %405 = vector.broadcast %404 : vector<1x128xf32> to vector<8x128xf32>
    %406 = arith.select %403, %405, %358 : vector<8x128xi1>, vector<8x128xf32>
    %407 = vector.extract_strided_slice %20 {offsets = [7, 0], sizes = [1, 128], strides = [1, 1]} : vector<8x128xf32> to vector<1x128xf32>
    %408 = vector.extract_strided_slice %26 {offsets = [7, 0], sizes = [1, 128], strides = [1, 1]} : vector<8x128xf32> to vector<1x128xf32>
    %409 = vector.extract_strided_slice %34 {offsets = [7, 0], sizes = [1, 128], strides = [1, 1]} : vector<8x128xf32> to vector<1x128xf32>
    %c0_116 = arith.constant 0 : index
    %c7 = arith.constant 7 : index
    %410 = vector.load %arg13[%c0_116, %c7] : memref<128x8xf32, #tpu.memory_space<vmem>>, vector<64x1xf32>
    %411 = vector.shape_cast %410 : vector<64x1xf32> to vector<64x1xf32>
    %412 = vector.broadcast %411 : vector<64x1xf32> to vector<64x128xf32>
    %c64_117 = arith.constant 64 : index
    %c7_118 = arith.constant 7 : index
    %413 = vector.load %arg13[%c64_117, %c7_118] : memref<128x8xf32, #tpu.memory_space<vmem>>, vector<64x1xf32>
    %414 = vector.shape_cast %413 : vector<64x1xf32> to vector<64x1xf32>
    %415 = vector.broadcast %414 : vector<64x1xf32> to vector<64x128xf32>
    %416 = arith.select %5, %412, %415 : vector<64x128xi1>, vector<64x128xf32>
    %c0_119 = arith.constant 0 : index
    %c7_120 = arith.constant 7 : index
    %417 = vector.load %arg12[%c0_119, %c7_120] : memref<128x8xf32, #tpu.memory_space<vmem>>, vector<64x1xf32>
    %418 = vector.shape_cast %417 : vector<64x1xf32> to vector<64x1xf32>
    %419 = vector.broadcast %418 : vector<64x1xf32> to vector<64x128xf32>
    %c64_121 = arith.constant 64 : index
    %c7_122 = arith.constant 7 : index
    %420 = vector.load %arg12[%c64_121, %c7_122] : memref<128x8xf32, #tpu.memory_space<vmem>>, vector<64x1xf32>
    %421 = vector.shape_cast %420 : vector<64x1xf32> to vector<64x1xf32>
    %422 = vector.broadcast %421 : vector<64x1xf32> to vector<64x128xf32>
    %423 = arith.select %5, %419, %422 : vector<64x128xi1>, vector<64x128xf32>
    %c0_123 = arith.constant 0 : index
    %c7_124 = arith.constant 7 : index
    %424 = vector.load %arg11[%c0_123, %c7_124] : memref<128x8xf32, #tpu.memory_space<vmem>>, vector<64x1xf32>
    %425 = vector.shape_cast %424 : vector<64x1xf32> to vector<64x1xf32>
    %426 = vector.broadcast %425 : vector<64x1xf32> to vector<64x128xf32>
    %c64_125 = arith.constant 64 : index
    %c7_126 = arith.constant 7 : index
    %427 = vector.load %arg11[%c64_125, %c7_126] : memref<128x8xf32, #tpu.memory_space<vmem>>, vector<64x1xf32>
    %428 = vector.shape_cast %427 : vector<64x1xf32> to vector<64x1xf32>
    %429 = vector.broadcast %428 : vector<64x1xf32> to vector<64x128xf32>
    %430 = arith.select %5, %426, %429 : vector<64x128xi1>, vector<64x128xf32>
    %431 = arith.mulf %409, %390 : vector<1x128xf32>
    %432 = vector.broadcast %407 : vector<1x128xf32> to vector<64x128xf32>
    %433 = arith.mulf %398, %432 : vector<64x128xf32>
    %434 = vector.broadcast %431 : vector<1x128xf32> to vector<64x128xf32>
    %435 = arith.mulf %416, %434 : vector<64x128xf32>
    %436 = arith.addf %433, %435 : vector<64x128xf32>
    %437 = vector.broadcast %408 : vector<1x128xf32> to vector<64x128xf32>
    %438 = arith.mulf %423, %437 : vector<64x128xf32>
    %439 = arith.addf %436, %438 : vector<64x128xf32>
    %440 = arith.mulf %439, %430 : vector<64x128xf32>
    %cst_127 = arith.constant dense<0.000000e+00> : vector<128xf32>
    %441 = vector.multi_reduction <add>, %440, %cst_127 [0] : vector<64x128xf32> to vector<128xf32>
    %442 = vector.shape_cast %441 : vector<128xf32> to vector<1x128xf32>
    %c7_i32 = arith.constant 7 : i32
    %443 = vector.broadcast %c7_i32 : i32 to vector<8x128xi32>
    %444 = arith.cmpi eq, %9, %443 : vector<8x128xi32>
    %445 = vector.shape_cast %442 : vector<1x128xf32> to vector<1x128xf32>
    %446 = vector.broadcast %445 : vector<1x128xf32> to vector<8x128xf32>
    %447 = arith.select %444, %446, %406 : vector<8x128xi1>, vector<8x128xf32>
    %c0_128 = arith.constant 0 : index
    %c0_129 = arith.constant 0 : index
    %448 = vector.load %arg10[%c0_128, %c0_129] : memref<64x128xf32, #tpu.memory_space<vmem>>, vector<64x128xf32>
    tpu.vector_store %arg10[%c0_128, %c0_129], %439 {strides = array<i32>} : memref<64x128xf32, #tpu.memory_space<vmem>>, vector<64x128xf32>,
    %c0_130 = arith.constant 0 : index
    %449 = arith.index_cast %13 : i32 to index
    %c0_131 = arith.constant 0 : index
    %450 = vector.load %arg9[%c0_130, %449, %c0_131] : memref<1x8x128xf32, #tpu.memory_space<vmem>>, vector<1x8x128xf32>
    %451 = vector.shape_cast %450 : vector<1x8x128xf32> to vector<8x128xf32>
    %452 = vector.shape_cast %447 : vector<8x128xf32> to vector<1x8x128xf32>
    tpu.vector_store %arg9[%c0_130, %449, %c0_131], %452 {strides = array<i32>} : memref<1x8x128xf32, #tpu.memory_space<vmem>>, vector<1x8x128xf32>,
    %c1_i32_132 = arith.constant 1 : i32
    return
  }
  func.func @transform_0(%arg0: i32, %arg1: i32, %arg2: i32) -> (i32, i32, i32) {
    %c0_i32 = arith.constant 0 : i32
    return %arg0, %arg2, %arg1 : i32, i32, i32
  }
  func.func @transform_1(%arg0: i32, %arg1: i32, %arg2: i32) -> (i32, i32, i32) {
    %c0_i32 = arith.constant 0 : i32
    return %arg0, %arg2, %arg1 : i32, i32, i32
  }
  func.func @transform_2(%arg0: i32, %arg1: i32, %arg2: i32) -> (i32, i32, i32) {
    %c0_i32 = arith.constant 0 : i32
    return %arg0, %arg2, %arg1 : i32, i32, i32
  }
  func.func @transform_3(%arg0: i32, %arg1: i32, %arg2: i32) -> (i32, i32, i32) {
    %c0_i32 = arith.constant 0 : i32
    return %arg0, %arg2, %arg1 : i32, i32, i32
  }
  func.func @transform_4(%arg0: i32, %arg1: i32, %arg2: i32) -> (i32, i32, i32) {
    %c0_i32 = arith.constant 0 : i32
    return %arg0, %arg2, %arg1 : i32, i32, i32
  }
  func.func @transform_5(%arg0: i32, %arg1: i32, %arg2: i32) -> (i32, i32, i32) {
    %c0_i32 = arith.constant 0 : i32
    return %arg0, %arg2, %arg1 : i32, i32, i32
  }
  func.func @transform_6(%arg0: i32, %arg1: i32, %arg2: i32) -> (i32, i32, i32) {
    %c0_i32 = arith.constant 0 : i32
    return %arg0, %arg2, %arg1 : i32, i32, i32
  }
}

</mosaic_0001>

<llo_original>
// kernel: tpu_custom_call.1
$region0: #{tpu_custom_call.1}
  #allocation0 [shape = 'u32[]', space=smem, size = 0x4, offset = 0x4, fixed_abs, tag = 'smem constant byte address 0x4 - core index']
  #allocation1 [shape = 'u32[72,128]{1,0:T(1,128)}', space=vmem, size = 0x9000, scoped, tag = 'internal scratch']
  #allocation2 [shape = 'f32[64,128]{1,0:T(8,128)}', space=vmem, size = 0x8000, scoped, tag = 'scratch operand']
  #allocation3 [shape = 'f32[128,8]{1,0:T(8,128)}', space=vmem, size = 0x10000, scoped, tag = 'scratch operand']
  #allocation4 [shape = 'f32[128,8]{1,0:T(8,128)}', space=vmem, size = 0x10000, scoped, tag = 'scratch operand']
  #allocation5 [shape = 'f32[128,8]{1,0:T(8,128)}', space=vmem, size = 0x10000, scoped, tag = 'scratch operand']
  %s0 = inlined_call_operand.hbm [shape: f32[2,8,128], index: 0, kind: input, shape index: {}]
  %s1 = inlined_call_operand.hbm [shape: f32[2,8,128], index: 1, kind: input, shape index: {}]
  %s2 = inlined_call_operand.hbm [shape: f32[2,8,128], index: 2, kind: input, shape index: {}]
  %s3 = inlined_call_operand.hbm [shape: f32[2,8,128], index: 3, kind: input, shape index: {}]
  %s4 = inlined_call_operand.hbm [shape: f32[2,8,128], index: 4, kind: input, shape index: {}]
  %s5 = inlined_call_operand.hbm [shape: f32[2,8,128], index: 5, kind: input, shape index: {}]
  %s6 = inlined_call_operand.hbm [shape: f32[2,8,128], index: 6, kind: output, shape index: {}]
  %s7 = sld [smem:[#allocation0]]
  $region85: #{tpu_custom_call.1} parent=0
    _
  %s9 = ssub.s32 1, %s7
  %s10 = scalar_select 0, %s9, %s7
  $region1: #{tpu_custom_call.1} parent=0
    #allocation6 [shape = 'u8[8192]{0}', space=vmem, size = 0x2000, scoped, tag = 'input window, operand 0']
    #allocation7 [shape = 's32[2]{0}', space=sflag, size = 0x8, scoped, tag = 'scoped memory for tpu_custom_call.1']
    #allocation8 [shape = 's32[2]{0}', space=sflag, size = 0x8, scoped, tag = 'scoped memory for tpu_custom_call.1']
    #allocation9 [shape = 'u8[8192]{0}', space=vmem, size = 0x2000, scoped, tag = 'input window, operand 1']
    #allocation10 [shape = 's32[2]{0}', space=sflag, size = 0x8, scoped, tag = 'scoped memory for tpu_custom_call.1']
    #allocation11 [shape = 'u8[8192]{0}', space=vmem, size = 0x2000, scoped, tag = 'input window, operand 2']
    #allocation12 [shape = 'u8[8192]{0}', space=vmem, size = 0x2000, scoped, tag = 'input window, operand 3']
    #allocation13 [shape = 's32[2]{0}', space=sflag, size = 0x8, scoped, tag = 'scoped memory for tpu_custom_call.1']
    #allocation14 [shape = 'u8[8192]{0}', space=vmem, size = 0x2000, scoped, tag = 'input window, operand 4']
    #allocation15 [shape = 'u8[8192]{0}', space=vmem, size = 0x2000, scoped, tag = 'input window, operand 5']
    #allocation16 [shape = 's32[2]{0}', space=sflag, size = 0x8, scoped, tag = 'scoped memory for tpu_custom_call.1']
    #allocation17 [shape = 'u8[8192]{0}', space=vmem, size = 0x2000, scoped, tag = 'output window, operand 0']
    %11 = vsyncpa [#allocation7], 0
    %s12 = scalar_lea.sflag [#allocation7], 1
    %13 = vsyncpa %s12, 0
    %14 = vsyncpa [#allocation10], 0
    %s15 = scalar_lea.sflag [#allocation10], 1
    %16 = vsyncpa %s15, 0
    %17 = vsyncpa [#allocation13], 0
    %s18 = scalar_lea.sflag [#allocation13], 1
    %19 = vsyncpa %s18, 0
    %20 = vsyncpa [#allocation16], 0
    %s21 = scalar_lea.sflag [#allocation16], 1
    %22 = vsyncpa %s21, 0
    %23 = vsyncpa [#allocation8], 0
    %s24 = scalar_lea.sflag [#allocation8], 1
    %25 = vsyncpa %s24, 0
    loop: start=0, step=1, limit=4
    $region2: #{tpu_custom_call.1} parent=1 // loop_pre_header
      _
    $region3: #{tpu_custom_call.1} parent=1 // loop_header
      %s27 = sphi 0, %s31
      %p28 = scmp.ge.s32.totalorder %s27, 4
      %s34 = sphi 0, %s53
      %s35 = sphi 0, %s49
      %s36 = sphi 0, %s45
      %s37 = sphi 0, %s34
      %s38 = sphi 0, %s35
      %s39 = sphi 0, %s36
      %s40 = sphi 0, %s37
      %s41 = sphi 0, %s38
      %s42 = sphi 0, %s39
      %s60 = sphi 0, %s62
      %s63 = sphi 0, %s60
      %s64 = sphi 0, %s63
      %s80 = sphi 0, %s64
      %s90 = sphi 0, %s92
      %s93 = sphi 0, %s90
      %s94 = sphi 0, %s93
      %s110 = sphi 0, %s94
      %s120 = sphi 0, %s122
      %s123 = sphi 0, %s120
      %s124 = sphi 0, %s123
      %s140 = sphi 0, %s124
      %s150 = sphi 0, %s152
      %s153 = sphi 0, %s150
      %s154 = sphi 0, %s153
      %s170 = sphi 0, %s154
      %s180 = sphi 0, %s182
      %s183 = sphi 0, %s180
      %s184 = sphi 0, %s183
      %s200 = sphi 0, %s184
      %s210 = sphi 0, %s212
      %s213 = sphi 0, %s210
      %s214 = sphi 0, %s213
      %s230 = sphi 0, %s214
      %s240 = sphi 0, %s242
      %s243 = sphi 0, %s240
      %s244 = sphi 0, %s243
      %s260 = sphi 0, %s244
    $region4: #{tpu_custom_call.1} parent=1 // loop_header_branch
      %30 = sbr.rel (%p28) target = $region8
    $region5: #{tpu_custom_call.1} parent=1 // loop_body
      %s32 = ssub.s32 %s27, 1
      %s33 = ssub.s32 %s27, 2
      %s43 = sadd.s32 1, %s36
      %p44 = scmp.ge.s32.totalorder %s43, 1
      %s45 = scalar_select %p44, 0, %s43
      %s46 = sadd.s32 1, %s35
      %s47 = scalar_select %p44, %s46, %s35
      %p48 = scmp.ge.s32.totalorder %s47, 1
      %s49 = scalar_select %p48, 0, %s47
      %s50 = sadd.s32 1, %s34
      %s51 = scalar_select %p48, %s50, %s34
      %p52 = scmp.ge.s32.totalorder %s51, 2
      %s53 = scalar_select %p52, 0, %s51
      %s54 = ssub.s32 %s34, %s53
      %s55 = ssub.s32 %s36, %s45
      %s56 = sor.u32 %s54, %s55
      %s57 = ssub.s32 %s35, %s49
      %s58 = sor.u32 %s56, %s57
      %p59 = scmp.eq.s32.totalorder %s58, 0
      %s61 = sadd.s32 %s60, 1
      %s62 = scalar_select %p59, %s60, %s61
      %p65 = pneg %p59
      %p66 = scmp.eq.s32.totalorder %s27, 1
      %p67 = por %p65, %p66
      %p68 = scmp.ne.s32.totalorder %s60, %s63
      %p69 = scmp.eq.s32.totalorder %s27, 0
      %p70 = por %p68, %p69
      %p71 = scmp.ne.s32.totalorder %s60, %s63
      %p72 = scmp.eq.s32.totalorder %s32, 1
      %p73 = por %p71, %p72
      %p74 = scmp.ne.s32.totalorder %s63, %s64
      %p75 = scmp.eq.s32.totalorder %s32, 0
      %p76 = por %p74, %p75
      %p77 = scmp.ne.s32.totalorder %s63, %s64
      %p78 = scmp.eq.s32.totalorder %s33, 1
      %p79 = por %p77, %p78
      %p81 = scmp.ne.s32.totalorder %s64, %s80
      %p82 = scmp.eq.s32.totalorder %s33, 0
      %p83 = por %p81, %p82
      %s84 = ssub.s32 %s34, %s53
      %s85 = ssub.s32 %s36, %s45
      %s86 = sor.u32 %s84, %s85
      %s87 = ssub.s32 %s35, %s49
      %s88 = sor.u32 %s86, %s87
      %p89 = scmp.eq.s32.totalorder %s88, 0
      %s91 = sadd.s32 %s90, 1
      %s92 = scalar_select %p89, %s90, %s91
      %p95 = pneg %p89
      %p96 = scmp.eq.s32.totalorder %s27, 1
      %p97 = por %p95, %p96
      %p98 = scmp.ne.s32.totalorder %s90, %s93
      %p99 = scmp.eq.s32.totalorder %s27, 0
      %p100 = por %p98, %p99
      %p101 = scmp.ne.s32.totalorder %s90, %s93
      %p102 = scmp.eq.s32.totalorder %s32, 1
      %p103 = por %p101, %p102
      %p104 = scmp.ne.s32.totalorder %s93, %s94
      %p105 = scmp.eq.s32.totalorder %s32, 0
      %p106 = por %p104, %p105
      %p107 = scmp.ne.s32.totalorder %s93, %s94
      %p108 = scmp.eq.s32.totalorder %s33, 1
      %p109 = por %p107, %p108
      %p111 = scmp.ne.s32.totalorder %s94, %s110
      %p112 = scmp.eq.s32.totalorder %s33, 0
      %p113 = por %p111, %p112
      %s114 = ssub.s32 %s34, %s53
      %s115 = ssub.s32 %s36, %s45
      %s116 = sor.u32 %s114, %s115
      %s117 = ssub.s32 %s35, %s49
      %s118 = sor.u32 %s116, %s117
      %p119 = scmp.eq.s32.totalorder %s118, 0
      %s121 = sadd.s32 %s120, 1
      %s122 = scalar_select %p119, %s120, %s121
      %p125 = pneg %p119
      %p126 = scmp.eq.s32.totalorder %s27, 1
      %p127 = por %p125, %p126
      %p128 = scmp.ne.s32.totalorder %s120, %s123
      %p129 = scmp.eq.s32.totalorder %s27, 0
      %p130 = por %p128, %p129
      %p131 = scmp.ne.s32.totalorder %s120, %s123
      %p132 = scmp.eq.s32.totalorder %s32, 1
      %p133 = por %p131, %p132
      %p134 = scmp.ne.s32.totalorder %s123, %s124
      %p135 = scmp.eq.s32.totalorder %s32, 0
      %p136 = por %p134, %p135
      %p137 = scmp.ne.s32.totalorder %s123, %s124
      %p138 = scmp.eq.s32.totalorder %s33, 1
      %p139 = por %p137, %p138
      %p141 = scmp.ne.s32.totalorder %s124, %s140
      %p142 = scmp.eq.s32.totalorder %s33, 0
      %p143 = por %p141, %p142
      %s144 = ssub.s32 %s34, %s53
      %s145 = ssub.s32 %s36, %s45
      %s146 = sor.u32 %s144, %s145
      %s147 = ssub.s32 %s35, %s49
      %s148 = sor.u32 %s146, %s147
      %p149 = scmp.eq.s32.totalorder %s148, 0
      %s151 = sadd.s32 %s150, 1
      %s152 = scalar_select %p149, %s150, %s151
      %p155 = pneg %p149
      %p156 = scmp.eq.s32.totalorder %s27, 1
      %p157 = por %p155, %p156
      %p158 = scmp.ne.s32.totalorder %s150, %s153
      %p159 = scmp.eq.s32.totalorder %s27, 0
      %p160 = por %p158, %p159
      %p161 = scmp.ne.s32.totalorder %s150, %s153
      %p162 = scmp.eq.s32.totalorder %s32, 1
      %p163 = por %p161, %p162
      %p164 = scmp.ne.s32.totalorder %s153, %s154
      %p165 = scmp.eq.s32.totalorder %s32, 0
      %p166 = por %p164, %p165
      %p167 = scmp.ne.s32.totalorder %s153, %s154
      %p168 = scmp.eq.s32.totalorder %s33, 1
      %p169 = por %p167, %p168
      %p171 = scmp.ne.s32.totalorder %s154, %s170
      %p172 = scmp.eq.s32.totalorder %s33, 0
      %p173 = por %p171, %p172
      %s174 = ssub.s32 %s34, %s53
      %s175 = ssub.s32 %s36, %s45
      %s176 = sor.u32 %s174, %s175
      %s177 = ssub.s32 %s35, %s49
      %s178 = sor.u32 %s176, %s177
      %p179 = scmp.eq.s32.totalorder %s178, 0
      %s181 = sadd.s32 %s180, 1
      %s182 = scalar_select %p179, %s180, %s181
      %p185 = pneg %p179
      %p186 = scmp.eq.s32.totalorder %s27, 1
      %p187 = por %p185, %p186
      %p188 = scmp.ne.s32.totalorder %s180, %s183
      %p189 = scmp.eq.s32.totalorder %s27, 0
      %p190 = por %p188, %p189
      %p191 = scmp.ne.s32.totalorder %s180, %s183
      %p192 = scmp.eq.s32.totalorder %s32, 1
      %p193 = por %p191, %p192
      %p194 = scmp.ne.s32.totalorder %s183, %s184
      %p195 = scmp.eq.s32.totalorder %s32, 0
      %p196 = por %p194, %p195
      %p197 = scmp.ne.s32.totalorder %s183, %s184
      %p198 = scmp.eq.s32.totalorder %s33, 1
      %p199 = por %p197, %p198
      %p201 = scmp.ne.s32.totalorder %s184, %s200
      %p202 = scmp.eq.s32.totalorder %s33, 0
      %p203 = por %p201, %p202
      %s204 = ssub.s32 %s34, %s53
      %s205 = ssub.s32 %s36, %s45
      %s206 = sor.u32 %s204, %s205
      %s207 = ssub.s32 %s35, %s49
      %s208 = sor.u32 %s206, %s207
      %p209 = scmp.eq.s32.totalorder %s208, 0
      %s211 = sadd.s32 %s210, 1
      %s212 = scalar_select %p209, %s210, %s211
      %p215 = pneg %p209
      %p216 = scmp.eq.s32.totalorder %s27, 1
      %p217 = por %p215, %p216
      %p218 = scmp.ne.s32.totalorder %s210, %s213
      %p219 = scmp.eq.s32.totalorder %s27, 0
      %p220 = por %p218, %p219
      %p221 = scmp.ne.s32.totalorder %s210, %s213
      %p222 = scmp.eq.s32.totalorder %s32, 1
      %p223 = por %p221, %p222
      %p224 = scmp.ne.s32.totalorder %s213, %s214
      %p225 = scmp.eq.s32.totalorder %s32, 0
      %p226 = por %p224, %p225
      %p227 = scmp.ne.s32.totalorder %s213, %s214
      %p228 = scmp.eq.s32.totalorder %s33, 1
      %p229 = por %p227, %p228
      %p231 = scmp.ne.s32.totalorder %s214, %s230
      %p232 = scmp.eq.s32.totalorder %s33, 0
      %p233 = por %p231, %p232
      %s234 = ssub.s32 %s34, %s53
      %s235 = ssub.s32 %s36, %s45
      %s236 = sor.u32 %s234, %s235
      %s237 = ssub.s32 %s35, %s49
      %s238 = sor.u32 %s236, %s237
      %p239 = scmp.eq.s32.totalorder %s238, 0
      %s241 = sadd.s32 %s240, 1
      %s242 = scalar_select %p239, %s240, %s241
      %p245 = pneg %p239
      %p246 = scmp.eq.s32.totalorder %s27, 1
      %p247 = por %p245, %p246
      %p248 = scmp.ne.s32.totalorder %s240, %s243
      %p249 = scmp.eq.s32.totalorder %s27, 0
      %p250 = por %p248, %p249
      %p251 = scmp.ne.s32.totalorder %s240, %s243
      %p252 = scmp.eq.s32.totalorder %s32, 1
      %p253 = por %p251, %p252
      %p254 = scmp.ne.s32.totalorder %s243, %s244
      %p255 = scmp.eq.s32.totalorder %s32, 0
      %p256 = por %p254, %p255
      %p257 = scmp.ne.s32.totalorder %s243, %s244
      %p258 = scmp.eq.s32.totalorder %s33, 1
      %p259 = por %p257, %p258
      %p261 = scmp.ne.s32.totalorder %s244, %s260
      %p262 = scmp.eq.s32.totalorder %s33, 0
      %p263 = por %p261, %p262
      %p264 = scmp.le.s32.totalorder 1, %s27
      %p265 = scmp.lt.s32.totalorder %s27, 3
      %p266 = pnand %p264, %p265
      %p267 = pneg %p266
      // Predicated region
      $region9: #{tpu_custom_call.1} parent=5 // pred_check
        _
      $region10: #{tpu_custom_call.1} parent=5 // pred_check_branch
        %269 = sbr.rel (%p266) target = $region12
      $region11: #{tpu_custom_call.1} parent=5 // pred_region
        %s270 = ssub.s32 %s27, 1
      $region12: #{tpu_custom_call.1} parent=5 // pred_fallthru
        _
      %p271 = scmp.lt.s32.totalorder %s27, 2
      // Predicated region
      $region13: #{tpu_custom_call.1} parent=5 // pred_check
        %p272 = pneg %p271
      $region14: #{tpu_custom_call.1} parent=5 // pred_check_branch
        %274 = sbr.rel (%p272) target = $region16
      $region15: #{tpu_custom_call.1} parent=5 // pred_region
        // Predicated region
        $region17: #{tpu_custom_call.1} parent=15 // pred_check
          %p275 = pneg %p70
        $region18: #{tpu_custom_call.1} parent=15 // pred_check_branch
          %277 = sbr.rel (%p275) target = $region20
        $region19: #{tpu_custom_call.1} parent=15 // pred_region
          %s278 = sand.u32 %s60, 1
          %s279 = scalar_lea.sflag [#allocation7], %s278
          %s280 = sand.u32 %s60, 1
          %s281 = smul.addr %s280, 8
          %s282 = scalar_lea.vmem [#allocation6], %s281
          %284 = vsyncadd %s279, 0
          %s285 = sadd.s32 %s35, %s36
          %s286 = sadd.s32 %s285, %s34
          %s287 = smul.addr %s286, 8
          %s288 = scalar_lea.hbm %s0, %s287
          %s290 = sshll.u32 %s288, 4
          %s291 = int_to_ptr.hbm [resolvable:$true] %s290
          %s292 = sshll.u32 %s282, 4
          %s293 = int_to_ptr.vmem [resolvable:$true] %s292
          %295 = dma.hbm_to_vmem [thread:$0]  %s291, 128, %s293, %s279
        $region20: #{tpu_custom_call.1} parent=15 // pred_fallthru
          _
        // Predicated region
        $region21: #{tpu_custom_call.1} parent=15 // pred_check
          %p296 = pneg %p100
        $region22: #{tpu_custom_call.1} parent=15 // pred_check_branch
          %298 = sbr.rel (%p296) target = $region24
        $region23: #{tpu_custom_call.1} parent=15 // pred_region
          %s299 = sand.u32 %s27, 1
          %s300 = scalar_lea.sflag [#allocation10], %s299
          %s301 = sand.u32 %s90, 1
          %s302 = smul.addr %s301, 8
          %s303 = scalar_lea.vmem [#allocation9], %s302
          %305 = vsyncadd %s300, 0
          %s306 = sadd.s32 %s35, %s36
          %s307 = sadd.s32 %s306, %s34
          %s308 = smul.addr %s307, 8
          %s309 = scalar_lea.hbm %s1, %s308
          %s311 = sshll.u32 %s309, 4
          %s312 = int_to_ptr.hbm [resolvable:$true] %s311
          %s313 = sshll.u32 %s303, 4
          %s314 = int_to_ptr.vmem [resolvable:$true] %s313
          %316 = dma.hbm_to_vmem [thread:$0]  %s312, 128, %s314, %s300
        $region24: #{tpu_custom_call.1} parent=15 // pred_fallthru
          _
        // Predicated region
        $region25: #{tpu_custom_call.1} parent=15 // pred_check
          %p317 = pneg %p130
        $region26: #{tpu_custom_call.1} parent=15 // pred_check_branch
          %319 = sbr.rel (%p317) target = $region28
        $region27: #{tpu_custom_call.1} parent=15 // pred_region
          %s320 = sand.u32 %s27, 1
          %s321 = scalar_lea.sflag [#allocation10], %s320
          %s322 = sand.u32 %s120, 1
          %s323 = smul.addr %s322, 8
          %s324 = scalar_lea.vmem [#allocation11], %s323
          %326 = vsyncadd %s321, 0
          %s327 = sadd.s32 %s35, %s36
          %s328 = sadd.s32 %s327, %s34
          %s329 = smul.addr %s328, 8
          %s330 = scalar_lea.hbm %s2, %s329
          %s332 = sshll.u32 %s330, 4
          %s333 = int_to_ptr.hbm [resolvable:$true] %s332
          %s334 = sshll.u32 %s324, 4
          %s335 = int_to_ptr.vmem [resolvable:$true] %s334
          %337 = dma.hbm_to_vmem [thread:$0]  %s333, 128, %s335, %s321
        $region28: #{tpu_custom_call.1} parent=15 // pred_fallthru
          _
        // Predicated region
        $region29: #{tpu_custom_call.1} parent=15 // pred_check
          %p338 = pneg %p160
        $region30: #{tpu_custom_call.1} parent=15 // pred_check_branch
          %340 = sbr.rel (%p338) target = $region32
        $region31: #{tpu_custom_call.1} parent=15 // pred_region
          %s341 = sand.u32 %s27, 1
          %s342 = scalar_lea.sflag [#allocation13], %s341
          %s343 = sand.u32 %s150, 1
          %s344 = smul.addr %s343, 8
          %s345 = scalar_lea.vmem [#allocation12], %s344
          %347 = vsyncadd %s342, 0
          %s348 = sadd.s32 %s35, %s36
          %s349 = sadd.s32 %s348, %s34
          %s350 = smul.addr %s349, 8
          %s351 = scalar_lea.hbm %s3, %s350
          %s353 = sshll.u32 %s351, 4
          %s354 = int_to_ptr.hbm [resolvable:$true] %s353
          %s355 = sshll.u32 %s345, 4
          %s356 = int_to_ptr.vmem [resolvable:$true] %s355
          %358 = dma.hbm_to_vmem [thread:$0]  %s354, 128, %s356, %s342
        $region32: #{tpu_custom_call.1} parent=15 // pred_fallthru
          _
        // Predicated region
        $region33: #{tpu_custom_call.1} parent=15 // pred_check
          %p359 = pneg %p190
        $region34: #{tpu_custom_call.1} parent=15 // pred_check_branch
          %361 = sbr.rel (%p359) target = $region36
        $region35: #{tpu_custom_call.1} parent=15 // pred_region
          %s362 = sand.u32 %s27, 1
          %s363 = scalar_lea.sflag [#allocation13], %s362
          %s364 = sand.u32 %s180, 1
          %s365 = smul.addr %s364, 8
          %s366 = scalar_lea.vmem [#allocation14], %s365
          %368 = vsyncadd %s363, 0
          %s369 = sadd.s32 %s35, %s36
          %s370 = sadd.s32 %s369, %s34
          %s371 = smul.addr %s370, 8
          %s372 = scalar_lea.hbm %s4, %s371
          %s374 = sshll.u32 %s372, 4
          %s375 = int_to_ptr.hbm [resolvable:$true] %s374
          %s376 = sshll.u32 %s366, 4
          %s377 = int_to_ptr.vmem [resolvable:$true] %s376
          %379 = dma.hbm_to_vmem [thread:$0]  %s375, 128, %s377, %s363
        $region36: #{tpu_custom_call.1} parent=15 // pred_fallthru
          _
        // Predicated region
        $region37: #{tpu_custom_call.1} parent=15 // pred_check
          %p380 = pneg %p220
        $region38: #{tpu_custom_call.1} parent=15 // pred_check_branch
          %382 = sbr.rel (%p380) target = $region40
        $region39: #{tpu_custom_call.1} parent=15 // pred_region
          %s383 = sand.u32 %s210, 1
          %s384 = scalar_lea.sflag [#allocation16], %s383
          %s385 = sand.u32 %s210, 1
          %s386 = smul.addr %s385, 8
          %s387 = scalar_lea.vmem [#allocation15], %s386
          %389 = vsyncadd %s384, 0
          %s390 = sadd.s32 %s35, %s36
          %s391 = sadd.s32 %s390, %s34
          %s392 = smul.addr %s391, 8
          %s393 = scalar_lea.hbm %s5, %s392
          %s395 = sshll.u32 %s393, 4
          %s396 = int_to_ptr.hbm [resolvable:$true] %s395
          %s397 = sshll.u32 %s387, 4
          %s398 = int_to_ptr.vmem [resolvable:$true] %s397
          %400 = dma.hbm_to_vmem [thread:$0]  %s396, 128, %s398, %s384
        $region40: #{tpu_custom_call.1} parent=15 // pred_fallthru
          _
      $region16: #{tpu_custom_call.1} parent=5 // pred_fallthru
        _
      %p401 = scmp.le.s32.totalorder 1, %s27
      %p402 = scmp.lt.s32.totalorder %s27, 3
      %p403 = pnand %p401, %p402
      %p404 = pneg %p403
      // Predicated region
      $region41: #{tpu_custom_call.1} parent=5 // pred_check
        _
      $region42: #{tpu_custom_call.1} parent=5 // pred_check_branch
        %406 = sbr.rel (%p403) target = $region44
      $region43: #{tpu_custom_call.1} parent=5 // pred_region
        %s407 = ssub.s32 %s27, 1
        %s408 = sand.u32 %s63, 1
        %s409 = scalar_lea.sflag [#allocation7], %s408
        %s410 = sand.u32 %s63, 1
        %s411 = smul.addr %s410, 8
        %s412 = scalar_lea.vmem [#allocation6], %s411
        // Predicated region
        $region45: #{tpu_custom_call.1} parent=43 // pred_check
          %p413 = pneg %p76
        $region46: #{tpu_custom_call.1} parent=43 // pred_check_branch
          %415 = sbr.rel (%p413) target = $region48
        $region47: #{tpu_custom_call.1} parent=43 // pred_region
          %417 = dma.done %s409, 128
        $region48: #{tpu_custom_call.1} parent=43 // pred_fallthru
          _
        %s418 = sand.u32 %s32, 1
        %s419 = scalar_lea.sflag [#allocation10], %s418
        %s420 = sand.u32 %s93, 1
        %s421 = smul.addr %s420, 8
        %s422 = scalar_lea.vmem [#allocation9], %s421
        // Predicated region
        $region49: #{tpu_custom_call.1} parent=43 // pred_check
          %p423 = pneg %p106
        $region50: #{tpu_custom_call.1} parent=43 // pred_check_branch
          %425 = sbr.rel (%p423) target = $region52
        $region51: #{tpu_custom_call.1} parent=43 // pred_region
          %427 = dma.done %s419, 128
        $region52: #{tpu_custom_call.1} parent=43 // pred_fallthru
          _
        %s428 = sand.u32 %s32, 1
        %s429 = scalar_lea.sflag [#allocation10], %s428
        %s430 = sand.u32 %s123, 1
        %s431 = smul.addr %s430, 8
        %s432 = scalar_lea.vmem [#allocation11], %s431
        // Predicated region
        $region53: #{tpu_custom_call.1} parent=43 // pred_check
          %p433 = pneg %p136
        $region54: #{tpu_custom_call.1} parent=43 // pred_check_branch
          %435 = sbr.rel (%p433) target = $region56
        $region55: #{tpu_custom_call.1} parent=43 // pred_region
          %437 = dma.done %s429, 128
        $region56: #{tpu_custom_call.1} parent=43 // pred_fallthru
          _
        %s438 = sand.u32 %s32, 1
        %s439 = scalar_lea.sflag [#allocation13], %s438
        %s440 = sand.u32 %s153, 1
        %s441 = smul.addr %s440, 8
        %s442 = scalar_lea.vmem [#allocation12], %s441
        // Predicated region
        $region57: #{tpu_custom_call.1} parent=43 // pred_check
          %p443 = pneg %p166
        $region58: #{tpu_custom_call.1} parent=43 // pred_check_branch
          %445 = sbr.rel (%p443) target = $region60
        $region59: #{tpu_custom_call.1} parent=43 // pred_region
          %447 = dma.done %s439, 128
        $region60: #{tpu_custom_call.1} parent=43 // pred_fallthru
          _
        %s448 = sand.u32 %s32, 1
        %s449 = scalar_lea.sflag [#allocation13], %s448
        %s450 = sand.u32 %s183, 1
        %s451 = smul.addr %s450, 8
        %s452 = scalar_lea.vmem [#allocation14], %s451
        // Predicated region
        $region61: #{tpu_custom_call.1} parent=43 // pred_check
          %p453 = pneg %p196
        $region62: #{tpu_custom_call.1} parent=43 // pred_check_branch
          %455 = sbr.rel (%p453) target = $region64
        $region63: #{tpu_custom_call.1} parent=43 // pred_region
          %457 = dma.done %s449, 128
        $region64: #{tpu_custom_call.1} parent=43 // pred_fallthru
          _
        %s458 = sand.u32 %s213, 1
        %s459 = scalar_lea.sflag [#allocation16], %s458
        %s460 = sand.u32 %s213, 1
        %s461 = smul.addr %s460, 8
        %s462 = scalar_lea.vmem [#allocation15], %s461
        // Predicated region
        $region65: #{tpu_custom_call.1} parent=43 // pred_check
          %p463 = pneg %p226
        $region66: #{tpu_custom_call.1} parent=43 // pred_check_branch
          %465 = sbr.rel (%p463) target = $region68
        $region67: #{tpu_custom_call.1} parent=43 // pred_region
          %467 = dma.done %s459, 128
        $region68: #{tpu_custom_call.1} parent=43 // pred_fallthru
          _
        %s468 = sand.u32 %s63, 1
        %s469 = scalar_lea.sflag [#allocation7], %s468
        %s470 = sand.u32 %s63, 1
        %s471 = smul.addr %s470, 8
        %s472 = scalar_lea.vmem [#allocation6], %s471
        %p473 = pneg %p76
        %p474 = pneg %p73
        %s475 = sand.u32 %s32, 1
        %s476 = scalar_lea.sflag [#allocation10], %s475
        %s477 = sand.u32 %s93, 1
        %s478 = smul.addr %s477, 8
        %s479 = scalar_lea.vmem [#allocation9], %s478
        %p480 = pneg %p106
        %p481 = pneg %p103
        %s482 = sand.u32 %s32, 1
        %s483 = scalar_lea.sflag [#allocation10], %s482
        %s484 = sand.u32 %s123, 1
        %s485 = smul.addr %s484, 8
        %s486 = scalar_lea.vmem [#allocation11], %s485
        %p487 = pneg %p136
        %p488 = pneg %p133
        %s489 = sand.u32 %s32, 1
        %s490 = scalar_lea.sflag [#allocation13], %s489
        %s491 = sand.u32 %s153, 1
        %s492 = smul.addr %s491, 8
        %s493 = scalar_lea.vmem [#allocation12], %s492
        %p494 = pneg %p166
        %p495 = pneg %p163
        %s496 = sand.u32 %s32, 1
        %s497 = scalar_lea.sflag [#allocation13], %s496
        %s498 = sand.u32 %s183, 1
        %s499 = smul.addr %s498, 8
        %s500 = scalar_lea.vmem [#allocation14], %s499
        %p501 = pneg %p196
        %p502 = pneg %p193
        %s503 = sand.u32 %s213, 1
        %s504 = scalar_lea.sflag [#allocation16], %s503
        %s505 = sand.u32 %s213, 1
        %s506 = smul.addr %s505, 8
        %s507 = scalar_lea.vmem [#allocation15], %s506
        %p508 = pneg %p226
        %p509 = pneg %p223
        %p510 = pneg %p256
        %p511 = pneg %p253
        %s512 = sand.u32 %s243, 1
        %s513 = scalar_lea.sflag [#allocation8], %s512
        %s514 = sand.u32 %s243, 1
        %s515 = smul.addr %s514, 8
        %s516 = scalar_lea.vmem [#allocation17], %s515
        %p517 = scmp.eq.s32.totalorder %s39, 0
        // Predicated region
        $region69: #{tpu_custom_call.1} parent=43 // pred_check
          %p518 = pneg %p517
        $region70: #{tpu_custom_call.1} parent=43 // pred_check_branch
          %520 = sbr.rel (%p518) target = $region72
        $region71: #{tpu_custom_call.1} parent=43 // pred_region
          %521 = vst [vmem:[#allocation2] sm:$0xff] 0.0
          %522 = vst [vmem:[#allocation2 + $0x8] sm:$0xff] 0.0
          %523 = vst [vmem:[#allocation2 + $0x10] sm:$0xff] 0.0
          %524 = vst [vmem:[#allocation2 + $0x18] sm:$0xff] 0.0
          %525 = vst [vmem:[#allocation2 + $0x20] sm:$0xff] 0.0
          %526 = vst [vmem:[#allocation2 + $0x28] sm:$0xff] 0.0
          %527 = vst [vmem:[#allocation2 + $0x30] sm:$0xff] 0.0
          %528 = vst [vmem:[#allocation2 + $0x38] sm:$0xff] 0.0
        $region72: #{tpu_custom_call.1} parent=43 // pred_fallthru
          _
        %v529 = vlaneseq
        %v530 = vand.u32 %v529, 127
        %vm531 = vcmp.lt.s32.totalorder %v530, 64
        %v532 = vlaneseq
        %v533 = vshrl.u32 %v532, 7
        %v534 = vld [vmem:[%s422] sm:$0xff]
        %v535 = vmul.f32 %v534, 1.442695
        %v536 = vpow.pop %v535
        %v537 = vsub.f32 0.0, %v536
        %v538 = vmul.f32 %v537, 1.442695
        %v539 = vpow.pop %v538
        %v540 = vld [vmem:[%s412] sm:$0xff]
        %v541 = vld [vmem:[%s432] sm:$0xff]
        %v542 = vld [vmem:[%s442] sm:$0xff]
        %v543 = vld [vmem:[%s452] sm:$0xff]
        %v544 = vsub.f32 0.0, %v543
        %v545 = vld [vmem:[%s462] sm:$0xff]
        %v546 = vmul.f32 %v543, %v545
        %vm547 = vcmask 523264
        %v548 = vsel %vm547, %v546, 0.0
        %549 = vadd.xlane.f32.xlu0 %v548
        %v550 = vpop.xlane.xlu0 %549
        %552 = vrot.lane.b32.xlu0 %v546, 64
        %v553 = vpop.permute.xlu0 %552
        %v555 = vsel %vm547, %v553, 0.0
        %556 = vadd.xlane.f32.xlu0 %v555
        %v557 = vpop.xlane.xlu0 %556
        %v558 = vsel %vm531, %v550, %v557
        %v559 = vsel %vm547, %v542, 0.0
        %560 = vadd.xlane.f32.xlu0 %v559
        %v561 = vpop.xlane.xlu0 %560
        %563 = vrot.lane.b32.xlu0 %v542, 64
        %v564 = vpop.permute.xlu0 %563
        %v566 = vsel %vm547, %v564, 0.0
        %567 = vadd.xlane.f32.xlu0 %v566
        %v568 = vpop.xlane.xlu0 %567
        %v569 = vsel %vm531, %v561, %v568
        %570 = vxpose.xlu0.b32.start [1/16] %v540, 128
        %571 = vxpose.xlu0.b32.cont [2/16] 0.0, 128
        %572 = vxpose.xlu0.b32.cont [3/16] 0.0, 128
        %573 = vxpose.xlu0.b32.cont [4/16] 0.0, 128
        %574 = vxpose.xlu0.b32.cont [5/16] 0.0, 128
        %575 = vxpose.xlu0.b32.cont [6/16] 0.0, 128
        %576 = vxpose.xlu0.b32.cont [7/16] 0.0, 128
        %577 = vxpose.xlu0.b32.cont [8/16] 0.0, 128
        %578 = vxpose.xlu0.b32.cont [9/16] 0.0, 128
        %579 = vxpose.xlu0.b32.cont [10/16] 0.0, 128
        %580 = vxpose.xlu0.b32.cont [11/16] 0.0, 128
        %581 = vxpose.xlu0.b32.cont [12/16] 0.0, 128
        %582 = vxpose.xlu0.b32.cont [13/16] 0.0, 128
        %583 = vxpose.xlu0.b32.cont [14/16] 0.0, 128
        %584 = vxpose.xlu0.b32.cont [15/16] 0.0, 128
        %585 = vxpose.xlu0.b32.end [16/16] 0.0, 128
        %v586 = vpop.trf.xlu0
        %v587 = vpop.trf.xlu0
        %v588 = vpop.trf.xlu0
        %v589 = vpop.trf.xlu0
        %v590 = vpop.trf.xlu0
        %v591 = vpop.trf.xlu0
        %v592 = vpop.trf.xlu0
        %v593 = vpop.trf.xlu0
        %v594 = vpop.trf.xlu0
        %v595 = vpop.trf.xlu0
        %v596 = vpop.trf.xlu0
        %v597 = vpop.trf.xlu0
        %v598 = vpop.trf.xlu0
        %v599 = vpop.trf.xlu0
        %v600 = vpop.trf.xlu0
        %v601 = vpop.trf.xlu0
        %vm602 = vcmask 64512
        %603 = vst.msk [vmem:[#allocation3] sm:$0xff] %vm602, %v586
        %604 = vst.msk [vmem:[#allocation3 + $0x8] sm:$0xff] %vm602, %v587
        %605 = vst.msk [vmem:[#allocation3 + $0x10] sm:$0xff] %vm602, %v588
        %606 = vst.msk [vmem:[#allocation3 + $0x18] sm:$0xff] %vm602, %v589
        %607 = vst.msk [vmem:[#allocation3 + $0x20] sm:$0xff] %vm602, %v590
        %608 = vst.msk [vmem:[#allocation3 + $0x28] sm:$0xff] %vm602, %v591
        %609 = vst.msk [vmem:[#allocation3 + $0x30] sm:$0xff] %vm602, %v592
        %610 = vst.msk [vmem:[#allocation3 + $0x38] sm:$0xff] %vm602, %v593
        %611 = vst.msk [vmem:[#allocation3 + $0x40] sm:$0xff] %vm602, %v594
        %612 = vst.msk [vmem:[#allocation3 + $0x48] sm:$0xff] %vm602, %v595
        %613 = vst.msk [vmem:[#allocation3 + $0x50] sm:$0xff] %vm602, %v596
        %614 = vst.msk [vmem:[#allocation3 + $0x58] sm:$0xff] %vm602, %v597
        %615 = vst.msk [vmem:[#allocation3 + $0x60] sm:$0xff] %vm602, %v598
        %616 = vst.msk [vmem:[#allocation3 + $0x68] sm:$0xff] %vm602, %v599
        %617 = vst.msk [vmem:[#allocation3 + $0x70] sm:$0xff] %vm602, %v600
        %618 = vst.msk [vmem:[#allocation3 + $0x78] sm:$0xff] %vm602, %v601
        %619 = vxpose.xlu0.b32.start [1/16] %v542, 128
        %620 = vxpose.xlu0.b32.cont [2/16] 0.0, 128
        %621 = vxpose.xlu0.b32.cont [3/16] 0.0, 128
        %622 = vxpose.xlu0.b32.cont [4/16] 0.0, 128
        %623 = vxpose.xlu0.b32.cont [5/16] 0.0, 128
        %624 = vxpose.xlu0.b32.cont [6/16] 0.0, 128
        %625 = vxpose.xlu0.b32.cont [7/16] 0.0, 128
        %626 = vxpose.xlu0.b32.cont [8/16] 0.0, 128
        %627 = vxpose.xlu0.b32.cont [9/16] 0.0, 128
        %628 = vxpose.xlu0.b32.cont [10/16] 0.0, 128
        %629 = vxpose.xlu0.b32.cont [11/16] 0.0, 128
        %630 = vxpose.xlu0.b32.cont [12/16] 0.0, 128
        %631 = vxpose.xlu0.b32.cont [13/16] 0.0, 128
        %632 = vxpose.xlu0.b32.cont [14/16] 0.0, 128
        %633 = vxpose.xlu0.b32.cont [15/16] 0.0, 128
        %634 = vxpose.xlu0.b32.end [16/16] 0.0, 128
        %v635 = vpop.trf.xlu0
        %v636 = vpop.trf.xlu0
        %v637 = vpop.trf.xlu0
        %v638 = vpop.trf.xlu0
        %v639 = vpop.trf.xlu0
        %v640 = vpop.trf.xlu0
        %v641 = vpop.trf.xlu0
        %v642 = vpop.trf.xlu0
        %v643 = vpop.trf.xlu0
        %v644 = vpop.trf.xlu0
        %v645 = vpop.trf.xlu0
        %v646 = vpop.trf.xlu0
        %v647 = vpop.trf.xlu0
        %v648 = vpop.trf.xlu0
        %v649 = vpop.trf.xlu0
        %v650 = vpop.trf.xlu0
        %651 = vst.msk [vmem:[#allocation4] sm:$0xff] %vm602, %v635
        %652 = vst.msk [vmem:[#allocation4 + $0x8] sm:$0xff] %vm602, %v636
        %653 = vst.msk [vmem:[#allocation4 + $0x10] sm:$0xff] %vm602, %v637
        %654 = vst.msk [vmem:[#allocation4 + $0x18] sm:$0xff] %vm602, %v638
        %655 = vst.msk [vmem:[#allocation4 + $0x20] sm:$0xff] %vm602, %v639
        %656 = vst.msk [vmem:[#allocation4 + $0x28] sm:$0xff] %vm602, %v640
        %657 = vst.msk [vmem:[#allocation4 + $0x30] sm:$0xff] %vm602, %v641
        %658 = vst.msk [vmem:[#allocation4 + $0x38] sm:$0xff] %vm602, %v642
        %659 = vst.msk [vmem:[#allocation4 + $0x40] sm:$0xff] %vm602, %v643
        %660 = vst.msk [vmem:[#allocation4 + $0x48] sm:$0xff] %vm602, %v644
        %661 = vst.msk [vmem:[#allocation4 + $0x50] sm:$0xff] %vm602, %v645
        %662 = vst.msk [vmem:[#allocation4 + $0x58] sm:$0xff] %vm602, %v646
        %663 = vst.msk [vmem:[#allocation4 + $0x60] sm:$0xff] %vm602, %v647
        %664 = vst.msk [vmem:[#allocation4 + $0x68] sm:$0xff] %vm602, %v648
        %665 = vst.msk [vmem:[#allocation4 + $0x70] sm:$0xff] %vm602, %v649
        %666 = vst.msk [vmem:[#allocation4 + $0x78] sm:$0xff] %vm602, %v650
        %667 = vxpose.xlu0.b32.start [1/16] %v546, 128
        %668 = vxpose.xlu0.b32.cont [2/16] 0.0, 128
        %669 = vxpose.xlu0.b32.cont [3/16] 0.0, 128
        %670 = vxpose.xlu0.b32.cont [4/16] 0.0, 128
        %671 = vxpose.xlu0.b32.cont [5/16] 0.0, 128
        %672 = vxpose.xlu0.b32.cont [6/16] 0.0, 128
        %673 = vxpose.xlu0.b32.cont [7/16] 0.0, 128
        %674 = vxpose.xlu0.b32.cont [8/16] 0.0, 128
        %675 = vxpose.xlu0.b32.cont [9/16] 0.0, 128
        %676 = vxpose.xlu0.b32.cont [10/16] 0.0, 128
        %677 = vxpose.xlu0.b32.cont [11/16] 0.0, 128
        %678 = vxpose.xlu0.b32.cont [12/16] 0.0, 128
        %679 = vxpose.xlu0.b32.cont [13/16] 0.0, 128
        %680 = vxpose.xlu0.b32.cont [14/16] 0.0, 128
        %681 = vxpose.xlu0.b32.cont [15/16] 0.0, 128
        %682 = vxpose.xlu0.b32.end [16/16] 0.0, 128
        %v683 = vpop.trf.xlu0
        %v684 = vpop.trf.xlu0
        %v685 = vpop.trf.xlu0
        %v686 = vpop.trf.xlu0
        %v687 = vpop.trf.xlu0
        %v688 = vpop.trf.xlu0
        %v689 = vpop.trf.xlu0
        %v690 = vpop.trf.xlu0
        %v691 = vpop.trf.xlu0
        %v692 = vpop.trf.xlu0
        %v693 = vpop.trf.xlu0
        %v694 = vpop.trf.xlu0
        %v695 = vpop.trf.xlu0
        %v696 = vpop.trf.xlu0
        %v697 = vpop.trf.xlu0
        %v698 = vpop.trf.xlu0
        %699 = vst.msk [vmem:[#allocation5] sm:$0xff] %vm602, %v683
        %700 = vst.msk [vmem:[#allocation5 + $0x8] sm:$0xff] %vm602, %v684
        %701 = vst.msk [vmem:[#allocation5 + $0x10] sm:$0xff] %vm602, %v685
        %702 = vst.msk [vmem:[#allocation5 + $0x18] sm:$0xff] %vm602, %v686
        %703 = vst.msk [vmem:[#allocation5 + $0x20] sm:$0xff] %vm602, %v687
        %704 = vst.msk [vmem:[#allocation5 + $0x28] sm:$0xff] %vm602, %v688
        %705 = vst.msk [vmem:[#allocation5 + $0x30] sm:$0xff] %vm602, %v689
        %706 = vst.msk [vmem:[#allocation5 + $0x38] sm:$0xff] %vm602, %v690
        %707 = vst.msk [vmem:[#allocation5 + $0x40] sm:$0xff] %vm602, %v691
        %708 = vst.msk [vmem:[#allocation5 + $0x48] sm:$0xff] %vm602, %v692
        %709 = vst.msk [vmem:[#allocation5 + $0x50] sm:$0xff] %vm602, %v693
        %710 = vst.msk [vmem:[#allocation5 + $0x58] sm:$0xff] %vm602, %v694
        %711 = vst.msk [vmem:[#allocation5 + $0x60] sm:$0xff] %vm602, %v695
        %712 = vst.msk [vmem:[#allocation5 + $0x68] sm:$0xff] %vm602, %v696
        %713 = vst.msk [vmem:[#allocation5 + $0x70] sm:$0xff] %vm602, %v697
        %714 = vst.msk [vmem:[#allocation5 + $0x78] sm:$0xff] %vm602, %v698
        %v715 = vld [vmem:[#allocation2] sm:$0xff]
        %v716 = vld [vmem:[#allocation2 + $0x8] sm:$0xff]
        %v717 = vld [vmem:[#allocation2 + $0x10] sm:$0xff]
        %v718 = vld [vmem:[#allocation2 + $0x18] sm:$0xff]
        %v719 = vld [vmem:[#allocation2 + $0x20] sm:$0xff]
        %v720 = vld [vmem:[#allocation2 + $0x28] sm:$0xff]
        %v721 = vld [vmem:[#allocation2 + $0x30] sm:$0xff]
        %v722 = vld [vmem:[#allocation2 + $0x38] sm:$0xff]
        %v723 = vadd.f32 %v715, %v716
        %v724 = vadd.f32 %v723, %v717
        %v725 = vadd.f32 %v724, %v718
        %v726 = vadd.f32 %v725, %v719
        %v727 = vadd.f32 %v726, %v720
        %v728 = vadd.f32 %v727, %v721
        %v729 = vadd.f32 %v728, %v722
        %v730 = vrot.slane %v729, 4
        %v731 = vadd.f32 %v729, %v730
        %v732 = vrot.slane %v731, 2
        %v733 = vadd.f32 %v731, %v732
        %v734 = vrot.slane %v733, 1
        %v735 = vadd.f32 %v733, %v734
        %v736 = vld [vmem:[#allocation5] sm:$0xff]
        %v737 = vld [vmem:[#allocation5 + $0x8] sm:$0xff]
        %v738 = vld [vmem:[#allocation5 + $0x10] sm:$0xff]
        %v739 = vld [vmem:[#allocation5 + $0x18] sm:$0xff]
        %v740 = vld [vmem:[#allocation5 + $0x20] sm:$0xff]
        %v741 = vld [vmem:[#allocation5 + $0x28] sm:$0xff]
        %v742 = vld [vmem:[#allocation5 + $0x30] sm:$0xff]
        %v743 = vld [vmem:[#allocation5 + $0x38] sm:$0xff]
        %745 = vset.pattern.permute.xlu0 0
        %746 = vperm.xlu0 %745, %v736
        %v747 = vpop.permute.xlu0 %746
        %750 = vset.pattern.permute.xlu0 0
        %751 = vperm.xlu0 %750, %v737
        %v752 = vpop.permute.xlu0 %751
        %755 = vset.pattern.permute.xlu0 0
        %756 = vperm.xlu0 %755, %v738
        %v757 = vpop.permute.xlu0 %756
        %760 = vset.pattern.permute.xlu0 0
        %761 = vperm.xlu0 %760, %v739
        %v762 = vpop.permute.xlu0 %761
        %765 = vset.pattern.permute.xlu0 0
        %766 = vperm.xlu0 %765, %v740
        %v767 = vpop.permute.xlu0 %766
        %770 = vset.pattern.permute.xlu0 0
        %771 = vperm.xlu0 %770, %v741
        %v772 = vpop.permute.xlu0 %771
        %775 = vset.pattern.permute.xlu0 0
        %776 = vperm.xlu0 %775, %v742
        %v777 = vpop.permute.xlu0 %776
        %780 = vset.pattern.permute.xlu0 0
        %781 = vperm.xlu0 %780, %v743
        %v782 = vpop.permute.xlu0 %781
        %v784 = vld [vmem:[#allocation5 + $0x40] sm:$0xff]
        %v785 = vld [vmem:[#allocation5 + $0x48] sm:$0xff]
        %v786 = vld [vmem:[#allocation5 + $0x50] sm:$0xff]
        %v787 = vld [vmem:[#allocation5 + $0x58] sm:$0xff]
        %v788 = vld [vmem:[#allocation5 + $0x60] sm:$0xff]
        %v789 = vld [vmem:[#allocation5 + $0x68] sm:$0xff]
        %v790 = vld [vmem:[#allocation5 + $0x70] sm:$0xff]
        %v791 = vld [vmem:[#allocation5 + $0x78] sm:$0xff]
        %793 = vset.pattern.permute.xlu0 0
        %794 = vperm.xlu0 %793, %v784
        %v795 = vpop.permute.xlu0 %794
        %798 = vset.pattern.permute.xlu0 0
        %799 = vperm.xlu0 %798, %v785
        %v800 = vpop.permute.xlu0 %799
        %803 = vset.pattern.permute.xlu0 0
        %804 = vperm.xlu0 %803, %v786
        %v805 = vpop.permute.xlu0 %804
        %808 = vset.pattern.permute.xlu0 0
        %809 = vperm.xlu0 %808, %v787
        %v810 = vpop.permute.xlu0 %809
        %813 = vset.pattern.permute.xlu0 0
        %814 = vperm.xlu0 %813, %v788
        %v815 = vpop.permute.xlu0 %814
        %818 = vset.pattern.permute.xlu0 0
        %819 = vperm.xlu0 %818, %v789
        %v820 = vpop.permute.xlu0 %819
        %823 = vset.pattern.permute.xlu0 0
        %824 = vperm.xlu0 %823, %v790
        %v825 = vpop.permute.xlu0 %824
        %828 = vset.pattern.permute.xlu0 0
        %829 = vperm.xlu0 %828, %v791
        %v830 = vpop.permute.xlu0 %829
        %v832 = vsel %vm531, %v747, %v795
        %v833 = vsel %vm531, %v752, %v800
        %v834 = vsel %vm531, %v757, %v805
        %v835 = vsel %vm531, %v762, %v810
        %v836 = vsel %vm531, %v767, %v815
        %v837 = vsel %vm531, %v772, %v820
        %v838 = vsel %vm531, %v777, %v825
        %v839 = vsel %vm531, %v782, %v830
        %v840 = vld [vmem:[#allocation4] sm:$0xff]
        %v841 = vld [vmem:[#allocation4 + $0x8] sm:$0xff]
        %v842 = vld [vmem:[#allocation4 + $0x10] sm:$0xff]
        %v843 = vld [vmem:[#allocation4 + $0x18] sm:$0xff]
        %v844 = vld [vmem:[#allocation4 + $0x20] sm:$0xff]
        %v845 = vld [vmem:[#allocation4 + $0x28] sm:$0xff]
        %v846 = vld [vmem:[#allocation4 + $0x30] sm:$0xff]
        %v847 = vld [vmem:[#allocation4 + $0x38] sm:$0xff]
        %849 = vset.pattern.permute.xlu0 0
        %850 = vperm.xlu0 %849, %v840
        %v851 = vpop.permute.xlu0 %850
        %854 = vset.pattern.permute.xlu0 0
        %855 = vperm.xlu0 %854, %v841
        %v856 = vpop.permute.xlu0 %855
        %859 = vset.pattern.permute.xlu0 0
        %860 = vperm.xlu0 %859, %v842
        %v861 = vpop.permute.xlu0 %860
        %864 = vset.pattern.permute.xlu0 0
        %865 = vperm.xlu0 %864, %v843
        %v866 = vpop.permute.xlu0 %865
        %869 = vset.pattern.permute.xlu0 0
        %870 = vperm.xlu0 %869, %v844
        %v871 = vpop.permute.xlu0 %870
        %874 = vset.pattern.permute.xlu0 0
        %875 = vperm.xlu0 %874, %v845
        %v876 = vpop.permute.xlu0 %875
        %879 = vset.pattern.permute.xlu0 0
        %880 = vperm.xlu0 %879, %v846
        %v881 = vpop.permute.xlu0 %880
        %884 = vset.pattern.permute.xlu0 0
        %885 = vperm.xlu0 %884, %v847
        %v886 = vpop.permute.xlu0 %885
        %v888 = vld [vmem:[#allocation4 + $0x40] sm:$0xff]
        %v889 = vld [vmem:[#allocation4 + $0x48] sm:$0xff]
        %v890 = vld [vmem:[#allocation4 + $0x50] sm:$0xff]
        %v891 = vld [vmem:[#allocation4 + $0x58] sm:$0xff]
        %v892 = vld [vmem:[#allocation4 + $0x60] sm:$0xff]
        %v893 = vld [vmem:[#allocation4 + $0x68] sm:$0xff]
        %v894 = vld [vmem:[#allocation4 + $0x70] sm:$0xff]
        %v895 = vld [vmem:[#allocation4 + $0x78] sm:$0xff]
        %897 = vset.pattern.permute.xlu0 0
        %898 = vperm.xlu0 %897, %v888
        %v899 = vpop.permute.xlu0 %898
        %902 = vset.pattern.permute.xlu0 0
        %903 = vperm.xlu0 %902, %v889
        %v904 = vpop.permute.xlu0 %903
        %907 = vset.pattern.permute.xlu0 0
        %908 = vperm.xlu0 %907, %v890
        %v909 = vpop.permute.xlu0 %908
        %912 = vset.pattern.permute.xlu0 0
        %913 = vperm.xlu0 %912, %v891
        %v914 = vpop.permute.xlu0 %913
        %917 = vset.pattern.permute.xlu0 0
        %918 = vperm.xlu0 %917, %v892
        %v919 = vpop.permute.xlu0 %918
        %922 = vset.pattern.permute.xlu0 0
        %923 = vperm.xlu0 %922, %v893
        %v924 = vpop.permute.xlu0 %923
        %927 = vset.pattern.permute.xlu0 0
        %928 = vperm.xlu0 %927, %v894
        %v929 = vpop.permute.xlu0 %928
        %932 = vset.pattern.permute.xlu0 0
        %933 = vperm.xlu0 %932, %v895
        %v934 = vpop.permute.xlu0 %933
        %v936 = vsel %vm531, %v851, %v899
        %v937 = vsel %vm531, %v856, %v904
        %v938 = vsel %vm531, %v861, %v909
        %v939 = vsel %vm531, %v866, %v914
        %v940 = vsel %vm531, %v871, %v919
        %v941 = vsel %vm531, %v876, %v924
        %v942 = vsel %vm531, %v881, %v929
        %v943 = vsel %vm531, %v886, %v934
        %v944 = vld [vmem:[#allocation3] sm:$0xff]
        %v945 = vld [vmem:[#allocation3 + $0x8] sm:$0xff]
        %v946 = vld [vmem:[#allocation3 + $0x10] sm:$0xff]
        %v947 = vld [vmem:[#allocation3 + $0x18] sm:$0xff]
        %v948 = vld [vmem:[#allocation3 + $0x20] sm:$0xff]
        %v949 = vld [vmem:[#allocation3 + $0x28] sm:$0xff]
        %v950 = vld [vmem:[#allocation3 + $0x30] sm:$0xff]
        %v951 = vld [vmem:[#allocation3 + $0x38] sm:$0xff]
        %953 = vset.pattern.permute.xlu0 0
        %954 = vperm.xlu0 %953, %v944
        %v955 = vpop.permute.xlu0 %954
        %958 = vset.pattern.permute.xlu0 0
        %959 = vperm.xlu0 %958, %v945
        %v960 = vpop.permute.xlu0 %959
        %963 = vset.pattern.permute.xlu0 0
        %964 = vperm.xlu0 %963, %v946
        %v965 = vpop.permute.xlu0 %964
        %968 = vset.pattern.permute.xlu0 0
        %969 = vperm.xlu0 %968, %v947
        %v970 = vpop.permute.xlu0 %969
        %973 = vset.pattern.permute.xlu0 0
        %974 = vperm.xlu0 %973, %v948
        %v975 = vpop.permute.xlu0 %974
        %978 = vset.pattern.permute.xlu0 0
        %979 = vperm.xlu0 %978, %v949
        %v980 = vpop.permute.xlu0 %979
        %983 = vset.pattern.permute.xlu0 0
        %984 = vperm.xlu0 %983, %v950
        %v985 = vpop.permute.xlu0 %984
        %988 = vset.pattern.permute.xlu0 0
        %989 = vperm.xlu0 %988, %v951
        %v990 = vpop.permute.xlu0 %989
        %v992 = vld [vmem:[#allocation3 + $0x40] sm:$0xff]
        %v993 = vld [vmem:[#allocation3 + $0x48] sm:$0xff]
        %v994 = vld [vmem:[#allocation3 + $0x50] sm:$0xff]
        %v995 = vld [vmem:[#allocation3 + $0x58] sm:$0xff]
        %v996 = vld [vmem:[#allocation3 + $0x60] sm:$0xff]
        %v997 = vld [vmem:[#allocation3 + $0x68] sm:$0xff]
        %v998 = vld [vmem:[#allocation3 + $0x70] sm:$0xff]
        %v999 = vld [vmem:[#allocation3 + $0x78] sm:$0xff]
        %1001 = vset.pattern.permute.xlu0 0
        %1002 = vperm.xlu0 %1001, %v992
        %v1003 = vpop.permute.xlu0 %1002
        %1006 = vset.pattern.permute.xlu0 0
        %1007 = vperm.xlu0 %1006, %v993
        %v1008 = vpop.permute.xlu0 %1007
        %1011 = vset.pattern.permute.xlu0 0
        %1012 = vperm.xlu0 %1011, %v994
        %v1013 = vpop.permute.xlu0 %1012
        %1016 = vset.pattern.permute.xlu0 0
        %1017 = vperm.xlu0 %1016, %v995
        %v1018 = vpop.permute.xlu0 %1017
        %1021 = vset.pattern.permute.xlu0 0
        %1022 = vperm.xlu0 %1021, %v996
        %v1023 = vpop.permute.xlu0 %1022
        %1026 = vset.pattern.permute.xlu0 0
        %1027 = vperm.xlu0 %1026, %v997
        %v1028 = vpop.permute.xlu0 %1027
        %1031 = vset.pattern.permute.xlu0 0
        %1032 = vperm.xlu0 %1031, %v998
        %v1033 = vpop.permute.xlu0 %1032
        %1036 = vset.pattern.permute.xlu0 0
        %1037 = vperm.xlu0 %1036, %v999
        %v1038 = vpop.permute.xlu0 %1037
        %v1040 = vsel %vm531, %v955, %v1003
        %v1041 = vsel %vm531, %v960, %v1008
        %v1042 = vsel %vm531, %v965, %v1013
        %v1043 = vsel %vm531, %v970, %v1018
        %v1044 = vsel %vm531, %v975, %v1023
        %v1045 = vsel %vm531, %v980, %v1028
        %v1046 = vsel %vm531, %v985, %v1033
        %v1047 = vsel %vm531, %v990, %v1038
        %v1048 = vmul.f32 %v544, %v735
        %v1049 = vmul.f32 %v539, %v735
        %v1050 = vmul.f32 %v1048, %v558
        %v1051 = vadd.f32 %v1049, %v1050
        %v1052 = vmul.f32 %v541, %v569
        %v1053 = vadd.f32 %v1051, %v1052
        %v1054 = vperm.slane %v539, 0
        %v1055 = vmul.f32 %v715, %v1054
        %v1056 = vmul.f32 %v716, %v1054
        %v1057 = vmul.f32 %v717, %v1054
        %v1058 = vmul.f32 %v718, %v1054
        %v1059 = vmul.f32 %v719, %v1054
        %v1060 = vmul.f32 %v720, %v1054
        %v1061 = vmul.f32 %v721, %v1054
        %v1062 = vmul.f32 %v722, %v1054
        %v1063 = vperm.slane %v1048, 0
        %v1064 = vmul.f32 %v832, %v1063
        %v1065 = vmul.f32 %v833, %v1063
        %v1066 = vmul.f32 %v834, %v1063
        %v1067 = vmul.f32 %v835, %v1063
        %v1068 = vmul.f32 %v836, %v1063
        %v1069 = vmul.f32 %v837, %v1063
        %v1070 = vmul.f32 %v838, %v1063
        %v1071 = vmul.f32 %v839, %v1063
        %v1072 = vadd.f32 %v1055, %v1064
        %v1073 = vadd.f32 %v1056, %v1065
        %v1074 = vadd.f32 %v1057, %v1066
        %v1075 = vadd.f32 %v1058, %v1067
        %v1076 = vadd.f32 %v1059, %v1068
        %v1077 = vadd.f32 %v1060, %v1069
        %v1078 = vadd.f32 %v1061, %v1070
        %v1079 = vadd.f32 %v1062, %v1071
        %v1080 = vperm.slane %v541, 0
        %v1081 = vmul.f32 %v936, %v1080
        %v1082 = vmul.f32 %v937, %v1080
        %v1083 = vmul.f32 %v938, %v1080
        %v1084 = vmul.f32 %v939, %v1080
        %v1085 = vmul.f32 %v940, %v1080
        %v1086 = vmul.f32 %v941, %v1080
        %v1087 = vmul.f32 %v942, %v1080
        %v1088 = vmul.f32 %v943, %v1080
        %v1089 = vadd.f32 %v1072, %v1081
        %v1090 = vadd.f32 %v1073, %v1082
        %v1091 = vadd.f32 %v1074, %v1083
        %v1092 = vadd.f32 %v1075, %v1084
        %v1093 = vadd.f32 %v1076, %v1085
        %v1094 = vadd.f32 %v1077, %v1086
        %v1095 = vadd.f32 %v1078, %v1087
        %v1096 = vadd.f32 %v1079, %v1088
        %v1097 = vmul.f32 %v1089, %v1040
        %v1098 = vmul.f32 %v1090, %v1041
        %v1099 = vmul.f32 %v1091, %v1042
        %v1100 = vmul.f32 %v1092, %v1043
        %v1101 = vmul.f32 %v1093, %v1044
        %v1102 = vmul.f32 %v1094, %v1045
        %v1103 = vmul.f32 %v1095, %v1046
        %v1104 = vmul.f32 %v1096, %v1047
        %v1105 = vadd.f32 %v1097, %v1098
        %v1106 = vadd.f32 %v1105, %v1099
        %v1107 = vadd.f32 %v1106, %v1100
        %v1108 = vadd.f32 %v1107, %v1101
        %v1109 = vadd.f32 %v1108, %v1102
        %v1110 = vadd.f32 %v1109, %v1103
        %v1111 = vadd.f32 %v1110, %v1104
        %v1112 = vrot.slane %v1111, 4
        %v1113 = vadd.f32 %v1111, %v1112
        %v1114 = vrot.slane %v1113, 2
        %v1115 = vadd.f32 %v1113, %v1114
        %v1116 = vrot.slane %v1115, 1
        %v1117 = vadd.f32 %v1115, %v1116
        %vm1118 = vcmp.eq.s32.totalorder %v533, 0
        %v1119 = vsel %vm1118, %v1117, 0.0
        %1120 = vset.pattern.permute.xlu0 1
        %1121 = vperm.xlu0 %1120, %v736
        %v1122 = vpop.permute.xlu0 %1121
        %1124 = vset.pattern.permute.xlu0 1
        %1125 = vperm.xlu0 %1124, %v737
        %v1126 = vpop.permute.xlu0 %1125
        %1128 = vset.pattern.permute.xlu0 1
        %1129 = vperm.xlu0 %1128, %v738
        %v1130 = vpop.permute.xlu0 %1129
        %1132 = vset.pattern.permute.xlu0 1
        %1133 = vperm.xlu0 %1132, %v739
        %v1134 = vpop.permute.xlu0 %1133
        %1136 = vset.pattern.permute.xlu0 1
        %1137 = vperm.xlu0 %1136, %v740
        %v1138 = vpop.permute.xlu0 %1137
        %1140 = vset.pattern.permute.xlu0 1
        %1141 = vperm.xlu0 %1140, %v741
        %v1142 = vpop.permute.xlu0 %1141
        %1144 = vset.pattern.permute.xlu0 1
        %1145 = vperm.xlu0 %1144, %v742
        %v1146 = vpop.permute.xlu0 %1145
        %1148 = vset.pattern.permute.xlu0 1
        %1149 = vperm.xlu0 %1148, %v743
        %v1150 = vpop.permute.xlu0 %1149
        %1152 = vset.pattern.permute.xlu0 1
        %1153 = vperm.xlu0 %1152, %v784
        %v1154 = vpop.permute.xlu0 %1153
        %1156 = vset.pattern.permute.xlu0 1
        %1157 = vperm.xlu0 %1156, %v785
        %v1158 = vpop.permute.xlu0 %1157
        %1160 = vset.pattern.permute.xlu0 1
        %1161 = vperm.xlu0 %1160, %v786
        %v1162 = vpop.permute.xlu0 %1161
        %1164 = vset.pattern.permute.xlu0 1
        %1165 = vperm.xlu0 %1164, %v787
        %v1166 = vpop.permute.xlu0 %1165
        %1168 = vset.pattern.permute.xlu0 1
        %1169 = vperm.xlu0 %1168, %v788
        %v1170 = vpop.permute.xlu0 %1169
        %1172 = vset.pattern.permute.xlu0 1
        %1173 = vperm.xlu0 %1172, %v789
        %v1174 = vpop.permute.xlu0 %1173
        %1176 = vset.pattern.permute.xlu0 1
        %1177 = vperm.xlu0 %1176, %v790
        %v1178 = vpop.permute.xlu0 %1177
        %1180 = vset.pattern.permute.xlu0 1
        %1181 = vperm.xlu0 %1180, %v791
        %v1182 = vpop.permute.xlu0 %1181
        %v1184 = vsel %vm531, %v1122, %v1154
        %v1185 = vsel %vm531, %v1126, %v1158
        %v1186 = vsel %vm531, %v1130, %v1162
        %v1187 = vsel %vm531, %v1134, %v1166
        %v1188 = vsel %vm531, %v1138, %v1170
        %v1189 = vsel %vm531, %v1142, %v1174
        %v1190 = vsel %vm531, %v1146, %v1178
        %v1191 = vsel %vm531, %v1150, %v1182
        %1192 = vset.pattern.permute.xlu0 1
        %1193 = vperm.xlu0 %1192, %v840
        %v1194 = vpop.permute.xlu0 %1193
        %1196 = vset.pattern.permute.xlu0 1
        %1197 = vperm.xlu0 %1196, %v841
        %v1198 = vpop.permute.xlu0 %1197
        %1200 = vset.pattern.permute.xlu0 1
        %1201 = vperm.xlu0 %1200, %v842
        %v1202 = vpop.permute.xlu0 %1201
        %1204 = vset.pattern.permute.xlu0 1
        %1205 = vperm.xlu0 %1204, %v843
        %v1206 = vpop.permute.xlu0 %1205
        %1208 = vset.pattern.permute.xlu0 1
        %1209 = vperm.xlu0 %1208, %v844
        %v1210 = vpop.permute.xlu0 %1209
        %1212 = vset.pattern.permute.xlu0 1
        %1213 = vperm.xlu0 %1212, %v845
        %v1214 = vpop.permute.xlu0 %1213
        %1216 = vset.pattern.permute.xlu0 1
        %1217 = vperm.xlu0 %1216, %v846
        %v1218 = vpop.permute.xlu0 %1217
        %1220 = vset.pattern.permute.xlu0 1
        %1221 = vperm.xlu0 %1220, %v847
        %v1222 = vpop.permute.xlu0 %1221
        %1224 = vset.pattern.permute.xlu0 1
        %1225 = vperm.xlu0 %1224, %v888
        %v1226 = vpop.permute.xlu0 %1225
        %1228 = vset.pattern.permute.xlu0 1
        %1229 = vperm.xlu0 %1228, %v889
        %v1230 = vpop.permute.xlu0 %1229
        %1232 = vset.pattern.permute.xlu0 1
        %1233 = vperm.xlu0 %1232, %v890
        %v1234 = vpop.permute.xlu0 %1233
        %1236 = vset.pattern.permute.xlu0 1
        %1237 = vperm.xlu0 %1236, %v891
        %v1238 = vpop.permute.xlu0 %1237
        %1240 = vset.pattern.permute.xlu0 1
        %1241 = vperm.xlu0 %1240, %v892
        %v1242 = vpop.permute.xlu0 %1241
        %1244 = vset.pattern.permute.xlu0 1
        %1245 = vperm.xlu0 %1244, %v893
        %v1246 = vpop.permute.xlu0 %1245
        %1248 = vset.pattern.permute.xlu0 1
        %1249 = vperm.xlu0 %1248, %v894
        %v1250 = vpop.permute.xlu0 %1249
        %1252 = vset.pattern.permute.xlu0 1
        %1253 = vperm.xlu0 %1252, %v895
        %v1254 = vpop.permute.xlu0 %1253
        %v1256 = vsel %vm531, %v1194, %v1226
        %v1257 = vsel %vm531, %v1198, %v1230
        %v1258 = vsel %vm531, %v1202, %v1234
        %v1259 = vsel %vm531, %v1206, %v1238
        %v1260 = vsel %vm531, %v1210, %v1242
        %v1261 = vsel %vm531, %v1214, %v1246
        %v1262 = vsel %vm531, %v1218, %v1250
        %v1263 = vsel %vm531, %v1222, %v1254
        %1264 = vset.pattern.permute.xlu0 1
        %1265 = vperm.xlu0 %1264, %v944
        %v1266 = vpop.permute.xlu0 %1265
        %1268 = vset.pattern.permute.xlu0 1
        %1269 = vperm.xlu0 %1268, %v945
        %v1270 = vpop.permute.xlu0 %1269
        %1272 = vset.pattern.permute.xlu0 1
        %1273 = vperm.xlu0 %1272, %v946
        %v1274 = vpop.permute.xlu0 %1273
        %1276 = vset.pattern.permute.xlu0 1
        %1277 = vperm.xlu0 %1276, %v947
        %v1278 = vpop.permute.xlu0 %1277
        %1280 = vset.pattern.permute.xlu0 1
        %1281 = vperm.xlu0 %1280, %v948
        %v1282 = vpop.permute.xlu0 %1281
        %1284 = vset.pattern.permute.xlu0 1
        %1285 = vperm.xlu0 %1284, %v949
        %v1286 = vpop.permute.xlu0 %1285
        %1288 = vset.pattern.permute.xlu0 1
        %1289 = vperm.xlu0 %1288, %v950
        %v1290 = vpop.permute.xlu0 %1289
        %1292 = vset.pattern.permute.xlu0 1
        %1293 = vperm.xlu0 %1292, %v951
        %v1294 = vpop.permute.xlu0 %1293
        %1296 = vset.pattern.permute.xlu0 1
        %1297 = vperm.xlu0 %1296, %v992
        %v1298 = vpop.permute.xlu0 %1297
        %1300 = vset.pattern.permute.xlu0 1
        %1301 = vperm.xlu0 %1300, %v993
        %v1302 = vpop.permute.xlu0 %1301
        %1304 = vset.pattern.permute.xlu0 1
        %1305 = vperm.xlu0 %1304, %v994
        %v1306 = vpop.permute.xlu0 %1305
        %1308 = vset.pattern.permute.xlu0 1
        %1309 = vperm.xlu0 %1308, %v995
        %v1310 = vpop.permute.xlu0 %1309
        %1312 = vset.pattern.permute.xlu0 1
        %1313 = vperm.xlu0 %1312, %v996
        %v1314 = vpop.permute.xlu0 %1313
        %1316 = vset.pattern.permute.xlu0 1
        %1317 = vperm.xlu0 %1316, %v997
        %v1318 = vpop.permute.xlu0 %1317
        %1320 = vset.pattern.permute.xlu0 1
        %1321 = vperm.xlu0 %1320, %v998
        %v1322 = vpop.permute.xlu0 %1321
        %1324 = vset.pattern.permute.xlu0 1
        %1325 = vperm.xlu0 %1324, %v999
        %v1326 = vpop.permute.xlu0 %1325
        %v1328 = vsel %vm531, %v1266, %v1298
        %v1329 = vsel %vm531, %v1270, %v1302
        %v1330 = vsel %vm531, %v1274, %v1306
        %v1331 = vsel %vm531, %v1278, %v1310
        %v1332 = vsel %vm531, %v1282, %v1314
        %v1333 = vsel %vm531, %v1286, %v1318
        %v1334 = vsel %vm531, %v1290, %v1322
        %v1335 = vsel %vm531, %v1294, %v1326
        %v1337 = vrot.slane %v1053, 7
        %v1339 = vmul.f32 %v544, %v1337
        %v1340 = vmul.f32 %v539, %v1337
        %v1341 = vmul.f32 %v1339, %v558
        %v1342 = vadd.f32 %v1340, %v1341
        %v1343 = vadd.f32 %v1342, %v1052
        %v1344 = vperm.slane %v539, 1
        %v1345 = vmul.f32 %v1089, %v1344
        %v1346 = vmul.f32 %v1090, %v1344
        %v1347 = vmul.f32 %v1091, %v1344
        %v1348 = vmul.f32 %v1092, %v1344
        %v1349 = vmul.f32 %v1093, %v1344
        %v1350 = vmul.f32 %v1094, %v1344
        %v1351 = vmul.f32 %v1095, %v1344
        %v1352 = vmul.f32 %v1096, %v1344
        %v1353 = vperm.slane %v1339, 1
        %v1354 = vmul.f32 %v1184, %v1353
        %v1355 = vmul.f32 %v1185, %v1353
        %v1356 = vmul.f32 %v1186, %v1353
        %v1357 = vmul.f32 %v1187, %v1353
        %v1358 = vmul.f32 %v1188, %v1353
        %v1359 = vmul.f32 %v1189, %v1353
        %v1360 = vmul.f32 %v1190, %v1353
        %v1361 = vmul.f32 %v1191, %v1353
        %v1362 = vadd.f32 %v1345, %v1354
        %v1363 = vadd.f32 %v1346, %v1355
        %v1364 = vadd.f32 %v1347, %v1356
        %v1365 = vadd.f32 %v1348, %v1357
        %v1366 = vadd.f32 %v1349, %v1358
        %v1367 = vadd.f32 %v1350, %v1359
        %v1368 = vadd.f32 %v1351, %v1360
        %v1369 = vadd.f32 %v1352, %v1361
        %v1370 = vperm.slane %v541, 1
        %v1371 = vmul.f32 %v1256, %v1370
        %v1372 = vmul.f32 %v1257, %v1370
        %v1373 = vmul.f32 %v1258, %v1370
        %v1374 = vmul.f32 %v1259, %v1370
        %v1375 = vmul.f32 %v1260, %v1370
        %v1376 = vmul.f32 %v1261, %v1370
        %v1377 = vmul.f32 %v1262, %v1370
        %v1378 = vmul.f32 %v1263, %v1370
        %v1379 = vadd.f32 %v1362, %v1371
        %v1380 = vadd.f32 %v1363, %v1372
        %v1381 = vadd.f32 %v1364, %v1373
        %v1382 = vadd.f32 %v1365, %v1374
        %v1383 = vadd.f32 %v1366, %v1375
        %v1384 = vadd.f32 %v1367, %v1376
        %v1385 = vadd.f32 %v1368, %v1377
        %v1386 = vadd.f32 %v1369, %v1378
        %v1387 = vmul.f32 %v1379, %v1328
        %v1388 = vmul.f32 %v1380, %v1329
        %v1389 = vmul.f32 %v1381, %v1330
        %v1390 = vmul.f32 %v1382, %v1331
        %v1391 = vmul.f32 %v1383, %v1332
        %v1392 = vmul.f32 %v1384, %v1333
        %v1393 = vmul.f32 %v1385, %v1334
        %v1394 = vmul.f32 %v1386, %v1335
        %v1395 = vadd.f32 %v1387, %v1388
        %v1396 = vadd.f32 %v1395, %v1389
        %v1397 = vadd.f32 %v1396, %v1390
        %v1398 = vadd.f32 %v1397, %v1391
        %v1399 = vadd.f32 %v1398, %v1392
        %v1400 = vadd.f32 %v1399, %v1393
        %v1401 = vadd.f32 %v1400, %v1394
        %v1402 = vrot.slane %v1401, 4
        %v1403 = vadd.f32 %v1401, %v1402
        %v1404 = vrot.slane %v1403, 2
        %v1405 = vadd.f32 %v1403, %v1404
        %v1406 = vrot.slane %v1405, 1
        %v1407 = vadd.f32 %v1405, %v1406
        %vm1408 = vcmp.eq.s32.totalorder %v533, 1
        %v1409 = vsel %vm1408, %v1407, %v1119
        %1410 = vset.pattern.permute.xlu0 2
        %1411 = vperm.xlu0 %1410, %v736
        %v1412 = vpop.permute.xlu0 %1411
        %1414 = vset.pattern.permute.xlu0 2
        %1415 = vperm.xlu0 %1414, %v737
        %v1416 = vpop.permute.xlu0 %1415
        %1418 = vset.pattern.permute.xlu0 2
        %1419 = vperm.xlu0 %1418, %v738
        %v1420 = vpop.permute.xlu0 %1419
        %1422 = vset.pattern.permute.xlu0 2
        %1423 = vperm.xlu0 %1422, %v739
        %v1424 = vpop.permute.xlu0 %1423
        %1426 = vset.pattern.permute.xlu0 2
        %1427 = vperm.xlu0 %1426, %v740
        %v1428 = vpop.permute.xlu0 %1427
        %1430 = vset.pattern.permute.xlu0 2
        %1431 = vperm.xlu0 %1430, %v741
        %v1432 = vpop.permute.xlu0 %1431
        %1434 = vset.pattern.permute.xlu0 2
        %1435 = vperm.xlu0 %1434, %v742
        %v1436 = vpop.permute.xlu0 %1435
        %1438 = vset.pattern.permute.xlu0 2
        %1439 = vperm.xlu0 %1438, %v743
        %v1440 = vpop.permute.xlu0 %1439
        %1442 = vset.pattern.permute.xlu0 2
        %1443 = vperm.xlu0 %1442, %v784
        %v1444 = vpop.permute.xlu0 %1443
        %1446 = vset.pattern.permute.xlu0 2
        %1447 = vperm.xlu0 %1446, %v785
        %v1448 = vpop.permute.xlu0 %1447
        %1450 = vset.pattern.permute.xlu0 2
        %1451 = vperm.xlu0 %1450, %v786
        %v1452 = vpop.permute.xlu0 %1451
        %1454 = vset.pattern.permute.xlu0 2
        %1455 = vperm.xlu0 %1454, %v787
        %v1456 = vpop.permute.xlu0 %1455
        %1458 = vset.pattern.permute.xlu0 2
        %1459 = vperm.xlu0 %1458, %v788
        %v1460 = vpop.permute.xlu0 %1459
        %1462 = vset.pattern.permute.xlu0 2
        %1463 = vperm.xlu0 %1462, %v789
        %v1464 = vpop.permute.xlu0 %1463
        %1466 = vset.pattern.permute.xlu0 2
        %1467 = vperm.xlu0 %1466, %v790
        %v1468 = vpop.permute.xlu0 %1467
        %1470 = vset.pattern.permute.xlu0 2
        %1471 = vperm.xlu0 %1470, %v791
        %v1472 = vpop.permute.xlu0 %1471
        %v1474 = vsel %vm531, %v1412, %v1444
        %v1475 = vsel %vm531, %v1416, %v1448
        %v1476 = vsel %vm531, %v1420, %v1452
        %v1477 = vsel %vm531, %v1424, %v1456
        %v1478 = vsel %vm531, %v1428, %v1460
        %v1479 = vsel %vm531, %v1432, %v1464
        %v1480 = vsel %vm531, %v1436, %v1468
        %v1481 = vsel %vm531, %v1440, %v1472
        %1482 = vset.pattern.permute.xlu0 2
        %1483 = vperm.xlu0 %1482, %v840
        %v1484 = vpop.permute.xlu0 %1483
        %1486 = vset.pattern.permute.xlu0 2
        %1487 = vperm.xlu0 %1486, %v841
        %v1488 = vpop.permute.xlu0 %1487
        %1490 = vset.pattern.permute.xlu0 2
        %1491 = vperm.xlu0 %1490, %v842
        %v1492 = vpop.permute.xlu0 %1491
        %1494 = vset.pattern.permute.xlu0 2
        %1495 = vperm.xlu0 %1494, %v843
        %v1496 = vpop.permute.xlu0 %1495
        %1498 = vset.pattern.permute.xlu0 2
        %1499 = vperm.xlu0 %1498, %v844
        %v1500 = vpop.permute.xlu0 %1499
        %1502 = vset.pattern.permute.xlu0 2
        %1503 = vperm.xlu0 %1502, %v845
        %v1504 = vpop.permute.xlu0 %1503
        %1506 = vset.pattern.permute.xlu0 2
        %1507 = vperm.xlu0 %1506, %v846
        %v1508 = vpop.permute.xlu0 %1507
        %1510 = vset.pattern.permute.xlu0 2
        %1511 = vperm.xlu0 %1510, %v847
        %v1512 = vpop.permute.xlu0 %1511
        %1514 = vset.pattern.permute.xlu0 2
        %1515 = vperm.xlu0 %1514, %v888
        %v1516 = vpop.permute.xlu0 %1515
        %1518 = vset.pattern.permute.xlu0 2
        %1519 = vperm.xlu0 %1518, %v889
        %v1520 = vpop.permute.xlu0 %1519
        %1522 = vset.pattern.permute.xlu0 2
        %1523 = vperm.xlu0 %1522, %v890
        %v1524 = vpop.permute.xlu0 %1523
        %1526 = vset.pattern.permute.xlu0 2
        %1527 = vperm.xlu0 %1526, %v891
        %v1528 = vpop.permute.xlu0 %1527
        %1530 = vset.pattern.permute.xlu0 2
        %1531 = vperm.xlu0 %1530, %v892
        %v1532 = vpop.permute.xlu0 %1531
        %1534 = vset.pattern.permute.xlu0 2
        %1535 = vperm.xlu0 %1534, %v893
        %v1536 = vpop.permute.xlu0 %1535
        %1538 = vset.pattern.permute.xlu0 2
        %1539 = vperm.xlu0 %1538, %v894
        %v1540 = vpop.permute.xlu0 %1539
        %1542 = vset.pattern.permute.xlu0 2
        %1543 = vperm.xlu0 %1542, %v895
        %v1544 = vpop.permute.xlu0 %1543
        %v1546 = vsel %vm531, %v1484, %v1516
        %v1547 = vsel %vm531, %v1488, %v1520
        %v1548 = vsel %vm531, %v1492, %v1524
        %v1549 = vsel %vm531, %v1496, %v1528
        %v1550 = vsel %vm531, %v1500, %v1532
        %v1551 = vsel %vm531, %v1504, %v1536
        %v1552 = vsel %vm531, %v1508, %v1540
        %v1553 = vsel %vm531, %v1512, %v1544
        %1554 = vset.pattern.permute.xlu0 2
        %1555 = vperm.xlu0 %1554, %v944
        %v1556 = vpop.permute.xlu0 %1555
        %1558 = vset.pattern.permute.xlu0 2
        %1559 = vperm.xlu0 %1558, %v945
        %v1560 = vpop.permute.xlu0 %1559
        %1562 = vset.pattern.permute.xlu0 2
        %1563 = vperm.xlu0 %1562, %v946
        %v1564 = vpop.permute.xlu0 %1563
        %1566 = vset.pattern.permute.xlu0 2
        %1567 = vperm.xlu0 %1566, %v947
        %v1568 = vpop.permute.xlu0 %1567
        %1570 = vset.pattern.permute.xlu0 2
        %1571 = vperm.xlu0 %1570, %v948
        %v1572 = vpop.permute.xlu0 %1571
        %1574 = vset.pattern.permute.xlu0 2
        %1575 = vperm.xlu0 %1574, %v949
        %v1576 = vpop.permute.xlu0 %1575
        %1578 = vset.pattern.permute.xlu0 2
        %1579 = vperm.xlu0 %1578, %v950
        %v1580 = vpop.permute.xlu0 %1579
        %1582 = vset.pattern.permute.xlu0 2
        %1583 = vperm.xlu0 %1582, %v951
        %v1584 = vpop.permute.xlu0 %1583
        %1586 = vset.pattern.permute.xlu0 2
        %1587 = vperm.xlu0 %1586, %v992
        %v1588 = vpop.permute.xlu0 %1587
        %1590 = vset.pattern.permute.xlu0 2
        %1591 = vperm.xlu0 %1590, %v993
        %v1592 = vpop.permute.xlu0 %1591
        %1594 = vset.pattern.permute.xlu0 2
        %1595 = vperm.xlu0 %1594, %v994
        %v1596 = vpop.permute.xlu0 %1595
        %1598 = vset.pattern.permute.xlu0 2
        %1599 = vperm.xlu0 %1598, %v995
        %v1600 = vpop.permute.xlu0 %1599
        %1602 = vset.pattern.permute.xlu0 2
        %1603 = vperm.xlu0 %1602, %v996
        %v1604 = vpop.permute.xlu0 %1603
        %1606 = vset.pattern.permute.xlu0 2
        %1607 = vperm.xlu0 %1606, %v997
        %v1608 = vpop.permute.xlu0 %1607
        %1610 = vset.pattern.permute.xlu0 2
        %1611 = vperm.xlu0 %1610, %v998
        %v1612 = vpop.permute.xlu0 %1611
        %1614 = vset.pattern.permute.xlu0 2
        %1615 = vperm.xlu0 %1614, %v999
        %v1616 = vpop.permute.xlu0 %1615
        %v1618 = vsel %vm531, %v1556, %v1588
        %v1619 = vsel %vm531, %v1560, %v1592
        %v1620 = vsel %vm531, %v1564, %v1596
        %v1621 = vsel %vm531, %v1568, %v1600
        %v1622 = vsel %vm531, %v1572, %v1604
        %v1623 = vsel %vm531, %v1576, %v1608
        %v1624 = vsel %vm531, %v1580, %v1612
        %v1625 = vsel %vm531, %v1584, %v1616
        %v1627 = vrot.slane %v1343, 7
        %v1629 = vmul.f32 %v544, %v1627
        %v1630 = vmul.f32 %v539, %v1627
        %v1631 = vmul.f32 %v1629, %v558
        %v1632 = vadd.f32 %v1630, %v1631
        %v1633 = vadd.f32 %v1632, %v1052
        %v1634 = vperm.slane %v539, 2
        %v1635 = vmul.f32 %v1379, %v1634
        %v1636 = vmul.f32 %v1380, %v1634
        %v1637 = vmul.f32 %v1381, %v1634
        %v1638 = vmul.f32 %v1382, %v1634
        %v1639 = vmul.f32 %v1383, %v1634
        %v1640 = vmul.f32 %v1384, %v1634
        %v1641 = vmul.f32 %v1385, %v1634
        %v1642 = vmul.f32 %v1386, %v1634
        %v1643 = vperm.slane %v1629, 2
        %v1644 = vmul.f32 %v1474, %v1643
        %v1645 = vmul.f32 %v1475, %v1643
        %v1646 = vmul.f32 %v1476, %v1643
        %v1647 = vmul.f32 %v1477, %v1643
        %v1648 = vmul.f32 %v1478, %v1643
        %v1649 = vmul.f32 %v1479, %v1643
        %v1650 = vmul.f32 %v1480, %v1643
        %v1651 = vmul.f32 %v1481, %v1643
        %v1652 = vadd.f32 %v1635, %v1644
        %v1653 = vadd.f32 %v1636, %v1645
        %v1654 = vadd.f32 %v1637, %v1646
        %v1655 = vadd.f32 %v1638, %v1647
        %v1656 = vadd.f32 %v1639, %v1648
        %v1657 = vadd.f32 %v1640, %v1649
        %v1658 = vadd.f32 %v1641, %v1650
        %v1659 = vadd.f32 %v1642, %v1651
        %v1660 = vperm.slane %v541, 2
        %v1661 = vmul.f32 %v1546, %v1660
        %v1662 = vmul.f32 %v1547, %v1660
        %v1663 = vmul.f32 %v1548, %v1660
        %v1664 = vmul.f32 %v1549, %v1660
        %v1665 = vmul.f32 %v1550, %v1660
        %v1666 = vmul.f32 %v1551, %v1660
        %v1667 = vmul.f32 %v1552, %v1660
        %v1668 = vmul.f32 %v1553, %v1660
        %v1669 = vadd.f32 %v1652, %v1661
        %v1670 = vadd.f32 %v1653, %v1662
        %v1671 = vadd.f32 %v1654, %v1663
        %v1672 = vadd.f32 %v1655, %v1664
        %v1673 = vadd.f32 %v1656, %v1665
        %v1674 = vadd.f32 %v1657, %v1666
        %v1675 = vadd.f32 %v1658, %v1667
        %v1676 = vadd.f32 %v1659, %v1668
        %v1677 = vmul.f32 %v1669, %v1618
        %v1678 = vmul.f32 %v1670, %v1619
        %v1679 = vmul.f32 %v1671, %v1620
        %v1680 = vmul.f32 %v1672, %v1621
        %v1681 = vmul.f32 %v1673, %v1622
        %v1682 = vmul.f32 %v1674, %v1623
        %v1683 = vmul.f32 %v1675, %v1624
        %v1684 = vmul.f32 %v1676, %v1625
        %v1685 = vadd.f32 %v1677, %v1678
        %v1686 = vadd.f32 %v1685, %v1679
        %v1687 = vadd.f32 %v1686, %v1680
        %v1688 = vadd.f32 %v1687, %v1681
        %v1689 = vadd.f32 %v1688, %v1682
        %v1690 = vadd.f32 %v1689, %v1683
        %v1691 = vadd.f32 %v1690, %v1684
        %v1692 = vrot.slane %v1691, 4
        %v1693 = vadd.f32 %v1691, %v1692
        %v1694 = vrot.slane %v1693, 2
        %v1695 = vadd.f32 %v1693, %v1694
        %v1696 = vrot.slane %v1695, 1
        %v1697 = vadd.f32 %v1695, %v1696
        %vm1698 = vcmp.eq.s32.totalorder %v533, 2
        %v1699 = vsel %vm1698, %v1697, %v1409
        %1700 = vset.pattern.permute.xlu0 3
        %1701 = vperm.xlu0 %1700, %v736
        %v1702 = vpop.permute.xlu0 %1701
        %1704 = vset.pattern.permute.xlu0 3
        %1705 = vperm.xlu0 %1704, %v737
        %v1706 = vpop.permute.xlu0 %1705
        %1708 = vset.pattern.permute.xlu0 3
        %1709 = vperm.xlu0 %1708, %v738
        %v1710 = vpop.permute.xlu0 %1709
        %1712 = vset.pattern.permute.xlu0 3
        %1713 = vperm.xlu0 %1712, %v739
        %v1714 = vpop.permute.xlu0 %1713
        %1716 = vset.pattern.permute.xlu0 3
        %1717 = vperm.xlu0 %1716, %v740
        %v1718 = vpop.permute.xlu0 %1717
        %1720 = vset.pattern.permute.xlu0 3
        %1721 = vperm.xlu0 %1720, %v741
        %v1722 = vpop.permute.xlu0 %1721
        %1724 = vset.pattern.permute.xlu0 3
        %1725 = vperm.xlu0 %1724, %v742
        %v1726 = vpop.permute.xlu0 %1725
        %1728 = vset.pattern.permute.xlu0 3
        %1729 = vperm.xlu0 %1728, %v743
        %v1730 = vpop.permute.xlu0 %1729
        %1732 = vset.pattern.permute.xlu0 3
        %1733 = vperm.xlu0 %1732, %v784
        %v1734 = vpop.permute.xlu0 %1733
        %1736 = vset.pattern.permute.xlu0 3
        %1737 = vperm.xlu0 %1736, %v785
        %v1738 = vpop.permute.xlu0 %1737
        %1740 = vset.pattern.permute.xlu0 3
        %1741 = vperm.xlu0 %1740, %v786
        %v1742 = vpop.permute.xlu0 %1741
        %1744 = vset.pattern.permute.xlu0 3
        %1745 = vperm.xlu0 %1744, %v787
        %v1746 = vpop.permute.xlu0 %1745
        %1748 = vset.pattern.permute.xlu0 3
        %1749 = vperm.xlu0 %1748, %v788
        %v1750 = vpop.permute.xlu0 %1749
        %1752 = vset.pattern.permute.xlu0 3
        %1753 = vperm.xlu0 %1752, %v789
        %v1754 = vpop.permute.xlu0 %1753
        %1756 = vset.pattern.permute.xlu0 3
        %1757 = vperm.xlu0 %1756, %v790
        %v1758 = vpop.permute.xlu0 %1757
        %1760 = vset.pattern.permute.xlu0 3
        %1761 = vperm.xlu0 %1760, %v791
        %v1762 = vpop.permute.xlu0 %1761
        %v1764 = vsel %vm531, %v1702, %v1734
        %v1765 = vsel %vm531, %v1706, %v1738
        %v1766 = vsel %vm531, %v1710, %v1742
        %v1767 = vsel %vm531, %v1714, %v1746
        %v1768 = vsel %vm531, %v1718, %v1750
        %v1769 = vsel %vm531, %v1722, %v1754
        %v1770 = vsel %vm531, %v1726, %v1758
        %v1771 = vsel %vm531, %v1730, %v1762
        %1772 = vset.pattern.permute.xlu0 3
        %1773 = vperm.xlu0 %1772, %v840
        %v1774 = vpop.permute.xlu0 %1773
        %1776 = vset.pattern.permute.xlu0 3
        %1777 = vperm.xlu0 %1776, %v841
        %v1778 = vpop.permute.xlu0 %1777
        %1780 = vset.pattern.permute.xlu0 3
        %1781 = vperm.xlu0 %1780, %v842
        %v1782 = vpop.permute.xlu0 %1781
        %1784 = vset.pattern.permute.xlu0 3
        %1785 = vperm.xlu0 %1784, %v843
        %v1786 = vpop.permute.xlu0 %1785
        %1788 = vset.pattern.permute.xlu0 3
        %1789 = vperm.xlu0 %1788, %v844
        %v1790 = vpop.permute.xlu0 %1789
        %1792 = vset.pattern.permute.xlu0 3
        %1793 = vperm.xlu0 %1792, %v845
        %v1794 = vpop.permute.xlu0 %1793
        %1796 = vset.pattern.permute.xlu0 3
        %1797 = vperm.xlu0 %1796, %v846
        %v1798 = vpop.permute.xlu0 %1797
        %1800 = vset.pattern.permute.xlu0 3
        %1801 = vperm.xlu0 %1800, %v847
        %v1802 = vpop.permute.xlu0 %1801
        %1804 = vset.pattern.permute.xlu0 3
        %1805 = vperm.xlu0 %1804, %v888
        %v1806 = vpop.permute.xlu0 %1805
        %1808 = vset.pattern.permute.xlu0 3
        %1809 = vperm.xlu0 %1808, %v889
        %v1810 = vpop.permute.xlu0 %1809
        %1812 = vset.pattern.permute.xlu0 3
        %1813 = vperm.xlu0 %1812, %v890
        %v1814 = vpop.permute.xlu0 %1813
        %1816 = vset.pattern.permute.xlu0 3
        %1817 = vperm.xlu0 %1816, %v891
        %v1818 = vpop.permute.xlu0 %1817
        %1820 = vset.pattern.permute.xlu0 3
        %1821 = vperm.xlu0 %1820, %v892
        %v1822 = vpop.permute.xlu0 %1821
        %1824 = vset.pattern.permute.xlu0 3
        %1825 = vperm.xlu0 %1824, %v893
        %v1826 = vpop.permute.xlu0 %1825
        %1828 = vset.pattern.permute.xlu0 3
        %1829 = vperm.xlu0 %1828, %v894
        %v1830 = vpop.permute.xlu0 %1829
        %1832 = vset.pattern.permute.xlu0 3
        %1833 = vperm.xlu0 %1832, %v895
        %v1834 = vpop.permute.xlu0 %1833
        %v1836 = vsel %vm531, %v1774, %v1806
        %v1837 = vsel %vm531, %v1778, %v1810
        %v1838 = vsel %vm531, %v1782, %v1814
        %v1839 = vsel %vm531, %v1786, %v1818
        %v1840 = vsel %vm531, %v1790, %v1822
        %v1841 = vsel %vm531, %v1794, %v1826
        %v1842 = vsel %vm531, %v1798, %v1830
        %v1843 = vsel %vm531, %v1802, %v1834
        %1844 = vset.pattern.permute.xlu0 3
        %1845 = vperm.xlu0 %1844, %v944
        %v1846 = vpop.permute.xlu0 %1845
        %1848 = vset.pattern.permute.xlu0 3
        %1849 = vperm.xlu0 %1848, %v945
        %v1850 = vpop.permute.xlu0 %1849
        %1852 = vset.pattern.permute.xlu0 3
        %1853 = vperm.xlu0 %1852, %v946
        %v1854 = vpop.permute.xlu0 %1853
        %1856 = vset.pattern.permute.xlu0 3
        %1857 = vperm.xlu0 %1856, %v947
        %v1858 = vpop.permute.xlu0 %1857
        %1860 = vset.pattern.permute.xlu0 3
        %1861 = vperm.xlu0 %1860, %v948
        %v1862 = vpop.permute.xlu0 %1861
        %1864 = vset.pattern.permute.xlu0 3
        %1865 = vperm.xlu0 %1864, %v949
        %v1866 = vpop.permute.xlu0 %1865
        %1868 = vset.pattern.permute.xlu0 3
        %1869 = vperm.xlu0 %1868, %v950
        %v1870 = vpop.permute.xlu0 %1869
        %1872 = vset.pattern.permute.xlu0 3
        %1873 = vperm.xlu0 %1872, %v951
        %v1874 = vpop.permute.xlu0 %1873
        %1876 = vset.pattern.permute.xlu0 3
        %1877 = vperm.xlu0 %1876, %v992
        %v1878 = vpop.permute.xlu0 %1877
        %1880 = vset.pattern.permute.xlu0 3
        %1881 = vperm.xlu0 %1880, %v993
        %v1882 = vpop.permute.xlu0 %1881
        %1884 = vset.pattern.permute.xlu0 3
        %1885 = vperm.xlu0 %1884, %v994
        %v1886 = vpop.permute.xlu0 %1885
        %1888 = vset.pattern.permute.xlu0 3
        %1889 = vperm.xlu0 %1888, %v995
        %v1890 = vpop.permute.xlu0 %1889
        %1892 = vset.pattern.permute.xlu0 3
        %1893 = vperm.xlu0 %1892, %v996
        %v1894 = vpop.permute.xlu0 %1893
        %1896 = vset.pattern.permute.xlu0 3
        %1897 = vperm.xlu0 %1896, %v997
        %v1898 = vpop.permute.xlu0 %1897
        %1900 = vset.pattern.permute.xlu0 3
        %1901 = vperm.xlu0 %1900, %v998
        %v1902 = vpop.permute.xlu0 %1901
        %1904 = vset.pattern.permute.xlu0 3
        %1905 = vperm.xlu0 %1904, %v999
        %v1906 = vpop.permute.xlu0 %1905
        %v1908 = vsel %vm531, %v1846, %v1878
        %v1909 = vsel %vm531, %v1850, %v1882
        %v1910 = vsel %vm531, %v1854, %v1886
        %v1911 = vsel %vm531, %v1858, %v1890
        %v1912 = vsel %vm531, %v1862, %v1894
        %v1913 = vsel %vm531, %v1866, %v1898
        %v1914 = vsel %vm531, %v1870, %v1902
        %v1915 = vsel %vm531, %v1874, %v1906
        %v1917 = vrot.slane %v1633, 7
        %v1919 = vmul.f32 %v544, %v1917
        %v1920 = vmul.f32 %v539, %v1917
        %v1921 = vmul.f32 %v1919, %v558
        %v1922 = vadd.f32 %v1920, %v1921
        %v1923 = vadd.f32 %v1922, %v1052
        %v1924 = vperm.slane %v539, 3
        %v1925 = vmul.f32 %v1669, %v1924
        %v1926 = vmul.f32 %v1670, %v1924
        %v1927 = vmul.f32 %v1671, %v1924
        %v1928 = vmul.f32 %v1672, %v1924
        %v1929 = vmul.f32 %v1673, %v1924
        %v1930 = vmul.f32 %v1674, %v1924
        %v1931 = vmul.f32 %v1675, %v1924
        %v1932 = vmul.f32 %v1676, %v1924
        %v1933 = vperm.slane %v1919, 3
        %v1934 = vmul.f32 %v1764, %v1933
        %v1935 = vmul.f32 %v1765, %v1933
        %v1936 = vmul.f32 %v1766, %v1933
        %v1937 = vmul.f32 %v1767, %v1933
        %v1938 = vmul.f32 %v1768, %v1933
        %v1939 = vmul.f32 %v1769, %v1933
        %v1940 = vmul.f32 %v1770, %v1933
        %v1941 = vmul.f32 %v1771, %v1933
        %v1942 = vadd.f32 %v1925, %v1934
        %v1943 = vadd.f32 %v1926, %v1935
        %v1944 = vadd.f32 %v1927, %v1936
        %v1945 = vadd.f32 %v1928, %v1937
        %v1946 = vadd.f32 %v1929, %v1938
        %v1947 = vadd.f32 %v1930, %v1939
        %v1948 = vadd.f32 %v1931, %v1940
        %v1949 = vadd.f32 %v1932, %v1941
        %v1950 = vperm.slane %v541, 3
        %v1951 = vmul.f32 %v1836, %v1950
        %v1952 = vmul.f32 %v1837, %v1950
        %v1953 = vmul.f32 %v1838, %v1950
        %v1954 = vmul.f32 %v1839, %v1950
        %v1955 = vmul.f32 %v1840, %v1950
        %v1956 = vmul.f32 %v1841, %v1950
        %v1957 = vmul.f32 %v1842, %v1950
        %v1958 = vmul.f32 %v1843, %v1950
        %v1959 = vadd.f32 %v1942, %v1951
        %v1960 = vadd.f32 %v1943, %v1952
        %v1961 = vadd.f32 %v1944, %v1953
        %v1962 = vadd.f32 %v1945, %v1954
        %v1963 = vadd.f32 %v1946, %v1955
        %v1964 = vadd.f32 %v1947, %v1956
        %v1965 = vadd.f32 %v1948, %v1957
        %v1966 = vadd.f32 %v1949, %v1958
        %v1967 = vmul.f32 %v1959, %v1908
        %v1968 = vmul.f32 %v1960, %v1909
        %v1969 = vmul.f32 %v1961, %v1910
        %v1970 = vmul.f32 %v1962, %v1911
        %v1971 = vmul.f32 %v1963, %v1912
        %v1972 = vmul.f32 %v1964, %v1913
        %v1973 = vmul.f32 %v1965, %v1914
        %v1974 = vmul.f32 %v1966, %v1915
        %v1975 = vadd.f32 %v1967, %v1968
        %v1976 = vadd.f32 %v1975, %v1969
        %v1977 = vadd.f32 %v1976, %v1970
        %v1978 = vadd.f32 %v1977, %v1971
        %v1979 = vadd.f32 %v1978, %v1972
        %v1980 = vadd.f32 %v1979, %v1973
        %v1981 = vadd.f32 %v1980, %v1974
        %v1982 = vrot.slane %v1981, 4
        %v1983 = vadd.f32 %v1981, %v1982
        %v1984 = vrot.slane %v1983, 2
        %v1985 = vadd.f32 %v1983, %v1984
        %v1986 = vrot.slane %v1985, 1
        %v1987 = vadd.f32 %v1985, %v1986
        %vm1988 = vcmp.eq.s32.totalorder %v533, 3
        %v1989 = vsel %vm1988, %v1987, %v1699
        %1990 = vset.pattern.permute.xlu0 4
        %1991 = vperm.xlu0 %1990, %v736
        %v1992 = vpop.permute.xlu0 %1991
        %1994 = vset.pattern.permute.xlu0 4
        %1995 = vperm.xlu0 %1994, %v737
        %v1996 = vpop.permute.xlu0 %1995
        %1998 = vset.pattern.permute.xlu0 4
        %1999 = vperm.xlu0 %1998, %v738
        %v2000 = vpop.permute.xlu0 %1999
        %2002 = vset.pattern.permute.xlu0 4
        %2003 = vperm.xlu0 %2002, %v739
        %v2004 = vpop.permute.xlu0 %2003
        %2006 = vset.pattern.permute.xlu0 4
        %2007 = vperm.xlu0 %2006, %v740
        %v2008 = vpop.permute.xlu0 %2007
        %2010 = vset.pattern.permute.xlu0 4
        %2011 = vperm.xlu0 %2010, %v741
        %v2012 = vpop.permute.xlu0 %2011
        %2014 = vset.pattern.permute.xlu0 4
        %2015 = vperm.xlu0 %2014, %v742
        %v2016 = vpop.permute.xlu0 %2015
        %2018 = vset.pattern.permute.xlu0 4
        %2019 = vperm.xlu0 %2018, %v743
        %v2020 = vpop.permute.xlu0 %2019
        %2022 = vset.pattern.permute.xlu0 4
        %2023 = vperm.xlu0 %2022, %v784
        %v2024 = vpop.permute.xlu0 %2023
        %2026 = vset.pattern.permute.xlu0 4
        %2027 = vperm.xlu0 %2026, %v785
        %v2028 = vpop.permute.xlu0 %2027
        %2030 = vset.pattern.permute.xlu0 4
        %2031 = vperm.xlu0 %2030, %v786
        %v2032 = vpop.permute.xlu0 %2031
        %2034 = vset.pattern.permute.xlu0 4
        %2035 = vperm.xlu0 %2034, %v787
        %v2036 = vpop.permute.xlu0 %2035
        %2038 = vset.pattern.permute.xlu0 4
        %2039 = vperm.xlu0 %2038, %v788
        %v2040 = vpop.permute.xlu0 %2039
        %2042 = vset.pattern.permute.xlu0 4
        %2043 = vperm.xlu0 %2042, %v789
        %v2044 = vpop.permute.xlu0 %2043
        %2046 = vset.pattern.permute.xlu0 4
        %2047 = vperm.xlu0 %2046, %v790
        %v2048 = vpop.permute.xlu0 %2047
        %2050 = vset.pattern.permute.xlu0 4
        %2051 = vperm.xlu0 %2050, %v791
        %v2052 = vpop.permute.xlu0 %2051
        %v2054 = vsel %vm531, %v1992, %v2024
        %v2055 = vsel %vm531, %v1996, %v2028
        %v2056 = vsel %vm531, %v2000, %v2032
        %v2057 = vsel %vm531, %v2004, %v2036
        %v2058 = vsel %vm531, %v2008, %v2040
        %v2059 = vsel %vm531, %v2012, %v2044
        %v2060 = vsel %vm531, %v2016, %v2048
        %v2061 = vsel %vm531, %v2020, %v2052
        %2062 = vset.pattern.permute.xlu0 4
        %2063 = vperm.xlu0 %2062, %v840
        %v2064 = vpop.permute.xlu0 %2063
        %2066 = vset.pattern.permute.xlu0 4
        %2067 = vperm.xlu0 %2066, %v841
        %v2068 = vpop.permute.xlu0 %2067
        %2070 = vset.pattern.permute.xlu0 4
        %2071 = vperm.xlu0 %2070, %v842
        %v2072 = vpop.permute.xlu0 %2071
        %2074 = vset.pattern.permute.xlu0 4
        %2075 = vperm.xlu0 %2074, %v843
        %v2076 = vpop.permute.xlu0 %2075
        %2078 = vset.pattern.permute.xlu0 4
        %2079 = vperm.xlu0 %2078, %v844
        %v2080 = vpop.permute.xlu0 %2079
        %2082 = vset.pattern.permute.xlu0 4
        %2083 = vperm.xlu0 %2082, %v845
        %v2084 = vpop.permute.xlu0 %2083
        %2086 = vset.pattern.permute.xlu0 4
        %2087 = vperm.xlu0 %2086, %v846
        %v2088 = vpop.permute.xlu0 %2087
        %2090 = vset.pattern.permute.xlu0 4
        %2091 = vperm.xlu0 %2090, %v847
        %v2092 = vpop.permute.xlu0 %2091
        %2094 = vset.pattern.permute.xlu0 4
        %2095 = vperm.xlu0 %2094, %v888
        %v2096 = vpop.permute.xlu0 %2095
        %2098 = vset.pattern.permute.xlu0 4
        %2099 = vperm.xlu0 %2098, %v889
        %v2100 = vpop.permute.xlu0 %2099
        %2102 = vset.pattern.permute.xlu0 4
        %2103 = vperm.xlu0 %2102, %v890
        %v2104 = vpop.permute.xlu0 %2103
        %2106 = vset.pattern.permute.xlu0 4
        %2107 = vperm.xlu0 %2106, %v891
        %v2108 = vpop.permute.xlu0 %2107
        %2110 = vset.pattern.permute.xlu0 4
        %2111 = vperm.xlu0 %2110, %v892
        %v2112 = vpop.permute.xlu0 %2111
        %2114 = vset.pattern.permute.xlu0 4
        %2115 = vperm.xlu0 %2114, %v893
        %v2116 = vpop.permute.xlu0 %2115
        %2118 = vset.pattern.permute.xlu0 4
        %2119 = vperm.xlu0 %2118, %v894
        %v2120 = vpop.permute.xlu0 %2119
        %2122 = vset.pattern.permute.xlu0 4
        %2123 = vperm.xlu0 %2122, %v895
        %v2124 = vpop.permute.xlu0 %2123
        %v2126 = vsel %vm531, %v2064, %v2096
        %v2127 = vsel %vm531, %v2068, %v2100
        %v2128 = vsel %vm531, %v2072, %v2104
        %v2129 = vsel %vm531, %v2076, %v2108
        %v2130 = vsel %vm531, %v2080, %v2112
        %v2131 = vsel %vm531, %v2084, %v2116
        %v2132 = vsel %vm531, %v2088, %v2120
        %v2133 = vsel %vm531, %v2092, %v2124
        %2134 = vset.pattern.permute.xlu0 4
        %2135 = vperm.xlu0 %2134, %v944
        %v2136 = vpop.permute.xlu0 %2135
        %2138 = vset.pattern.permute.xlu0 4
        %2139 = vperm.xlu0 %2138, %v945
        %v2140 = vpop.permute.xlu0 %2139
        %2142 = vset.pattern.permute.xlu0 4
        %2143 = vperm.xlu0 %2142, %v946
        %v2144 = vpop.permute.xlu0 %2143
        %2146 = vset.pattern.permute.xlu0 4
        %2147 = vperm.xlu0 %2146, %v947
        %v2148 = vpop.permute.xlu0 %2147
        %2150 = vset.pattern.permute.xlu0 4
        %2151 = vperm.xlu0 %2150, %v948
        %v2152 = vpop.permute.xlu0 %2151
        %2154 = vset.pattern.permute.xlu0 4
        %2155 = vperm.xlu0 %2154, %v949
        %v2156 = vpop.permute.xlu0 %2155
        %2158 = vset.pattern.permute.xlu0 4
        %2159 = vperm.xlu0 %2158, %v950
        %v2160 = vpop.permute.xlu0 %2159
        %2162 = vset.pattern.permute.xlu0 4
        %2163 = vperm.xlu0 %2162, %v951
        %v2164 = vpop.permute.xlu0 %2163
        %2166 = vset.pattern.permute.xlu0 4
        %2167 = vperm.xlu0 %2166, %v992
        %v2168 = vpop.permute.xlu0 %2167
        %2170 = vset.pattern.permute.xlu0 4
        %2171 = vperm.xlu0 %2170, %v993
        %v2172 = vpop.permute.xlu0 %2171
        %2174 = vset.pattern.permute.xlu0 4
        %2175 = vperm.xlu0 %2174, %v994
        %v2176 = vpop.permute.xlu0 %2175
        %2178 = vset.pattern.permute.xlu0 4
        %2179 = vperm.xlu0 %2178, %v995
        %v2180 = vpop.permute.xlu0 %2179
        %2182 = vset.pattern.permute.xlu0 4
        %2183 = vperm.xlu0 %2182, %v996
        %v2184 = vpop.permute.xlu0 %2183
        %2186 = vset.pattern.permute.xlu0 4
        %2187 = vperm.xlu0 %2186, %v997
        %v2188 = vpop.permute.xlu0 %2187
        %2190 = vset.pattern.permute.xlu0 4
        %2191 = vperm.xlu0 %2190, %v998
        %v2192 = vpop.permute.xlu0 %2191
        %2194 = vset.pattern.permute.xlu0 4
        %2195 = vperm.xlu0 %2194, %v999
        %v2196 = vpop.permute.xlu0 %2195
        %v2198 = vsel %vm531, %v2136, %v2168
        %v2199 = vsel %vm531, %v2140, %v2172
        %v2200 = vsel %vm531, %v2144, %v2176
        %v2201 = vsel %vm531, %v2148, %v2180
        %v2202 = vsel %vm531, %v2152, %v2184
        %v2203 = vsel %vm531, %v2156, %v2188
        %v2204 = vsel %vm531, %v2160, %v2192
        %v2205 = vsel %vm531, %v2164, %v2196
        %v2207 = vrot.slane %v1923, 7
        %v2209 = vmul.f32 %v544, %v2207
        %v2210 = vmul.f32 %v539, %v2207
        %v2211 = vmul.f32 %v2209, %v558
        %v2212 = vadd.f32 %v2210, %v2211
        %v2213 = vadd.f32 %v2212, %v1052
        %v2214 = vperm.slane %v539, 4
        %v2215 = vmul.f32 %v1959, %v2214
        %v2216 = vmul.f32 %v1960, %v2214
        %v2217 = vmul.f32 %v1961, %v2214
        %v2218 = vmul.f32 %v1962, %v2214
        %v2219 = vmul.f32 %v1963, %v2214
        %v2220 = vmul.f32 %v1964, %v2214
        %v2221 = vmul.f32 %v1965, %v2214
        %v2222 = vmul.f32 %v1966, %v2214
        %v2223 = vperm.slane %v2209, 4
        %v2224 = vmul.f32 %v2054, %v2223
        %v2225 = vmul.f32 %v2055, %v2223
        %v2226 = vmul.f32 %v2056, %v2223
        %v2227 = vmul.f32 %v2057, %v2223
        %v2228 = vmul.f32 %v2058, %v2223
        %v2229 = vmul.f32 %v2059, %v2223
        %v2230 = vmul.f32 %v2060, %v2223
        %v2231 = vmul.f32 %v2061, %v2223
        %v2232 = vadd.f32 %v2215, %v2224
        %v2233 = vadd.f32 %v2216, %v2225
        %v2234 = vadd.f32 %v2217, %v2226
        %v2235 = vadd.f32 %v2218, %v2227
        %v2236 = vadd.f32 %v2219, %v2228
        %v2237 = vadd.f32 %v2220, %v2229
        %v2238 = vadd.f32 %v2221, %v2230
        %v2239 = vadd.f32 %v2222, %v2231
        %v2240 = vperm.slane %v541, 4
        %v2241 = vmul.f32 %v2126, %v2240
        %v2242 = vmul.f32 %v2127, %v2240
        %v2243 = vmul.f32 %v2128, %v2240
        %v2244 = vmul.f32 %v2129, %v2240
        %v2245 = vmul.f32 %v2130, %v2240
        %v2246 = vmul.f32 %v2131, %v2240
        %v2247 = vmul.f32 %v2132, %v2240
        %v2248 = vmul.f32 %v2133, %v2240
        %v2249 = vadd.f32 %v2232, %v2241
        %v2250 = vadd.f32 %v2233, %v2242
        %v2251 = vadd.f32 %v2234, %v2243
        %v2252 = vadd.f32 %v2235, %v2244
        %v2253 = vadd.f32 %v2236, %v2245
        %v2254 = vadd.f32 %v2237, %v2246
        %v2255 = vadd.f32 %v2238, %v2247
        %v2256 = vadd.f32 %v2239, %v2248
        %v2257 = vmul.f32 %v2249, %v2198
        %v2258 = vmul.f32 %v2250, %v2199
        %v2259 = vmul.f32 %v2251, %v2200
        %v2260 = vmul.f32 %v2252, %v2201
        %v2261 = vmul.f32 %v2253, %v2202
        %v2262 = vmul.f32 %v2254, %v2203
        %v2263 = vmul.f32 %v2255, %v2204
        %v2264 = vmul.f32 %v2256, %v2205
        %v2265 = vadd.f32 %v2257, %v2258
        %v2266 = vadd.f32 %v2265, %v2259
        %v2267 = vadd.f32 %v2266, %v2260
        %v2268 = vadd.f32 %v2267, %v2261
        %v2269 = vadd.f32 %v2268, %v2262
        %v2270 = vadd.f32 %v2269, %v2263
        %v2271 = vadd.f32 %v2270, %v2264
        %v2272 = vrot.slane %v2271, 4
        %v2273 = vadd.f32 %v2271, %v2272
        %v2274 = vrot.slane %v2273, 2
        %v2275 = vadd.f32 %v2273, %v2274
        %v2276 = vrot.slane %v2275, 1
        %v2277 = vadd.f32 %v2275, %v2276
        %vm2278 = vcmp.eq.s32.totalorder %v533, 4
        %v2279 = vsel %vm2278, %v2277, %v1989
        %2280 = vset.pattern.permute.xlu0 5
        %2281 = vperm.xlu0 %2280, %v736
        %v2282 = vpop.permute.xlu0 %2281
        %2284 = vset.pattern.permute.xlu0 5
        %2285 = vperm.xlu0 %2284, %v737
        %v2286 = vpop.permute.xlu0 %2285
        %2288 = vset.pattern.permute.xlu0 5
        %2289 = vperm.xlu0 %2288, %v738
        %v2290 = vpop.permute.xlu0 %2289
        %2292 = vset.pattern.permute.xlu0 5
        %2293 = vperm.xlu0 %2292, %v739
        %v2294 = vpop.permute.xlu0 %2293
        %2296 = vset.pattern.permute.xlu0 5
        %2297 = vperm.xlu0 %2296, %v740
        %v2298 = vpop.permute.xlu0 %2297
        %2300 = vset.pattern.permute.xlu0 5
        %2301 = vperm.xlu0 %2300, %v741
        %v2302 = vpop.permute.xlu0 %2301
        %2304 = vset.pattern.permute.xlu0 5
        %2305 = vperm.xlu0 %2304, %v742
        %v2306 = vpop.permute.xlu0 %2305
        %2308 = vset.pattern.permute.xlu0 5
        %2309 = vperm.xlu0 %2308, %v743
        %v2310 = vpop.permute.xlu0 %2309
        %2312 = vset.pattern.permute.xlu0 5
        %2313 = vperm.xlu0 %2312, %v784
        %v2314 = vpop.permute.xlu0 %2313
        %2316 = vset.pattern.permute.xlu0 5
        %2317 = vperm.xlu0 %2316, %v785
        %v2318 = vpop.permute.xlu0 %2317
        %2320 = vset.pattern.permute.xlu0 5
        %2321 = vperm.xlu0 %2320, %v786
        %v2322 = vpop.permute.xlu0 %2321
        %2324 = vset.pattern.permute.xlu0 5
        %2325 = vperm.xlu0 %2324, %v787
        %v2326 = vpop.permute.xlu0 %2325
        %2328 = vset.pattern.permute.xlu0 5
        %2329 = vperm.xlu0 %2328, %v788
        %v2330 = vpop.permute.xlu0 %2329
        %2332 = vset.pattern.permute.xlu0 5
        %2333 = vperm.xlu0 %2332, %v789
        %v2334 = vpop.permute.xlu0 %2333
        %2336 = vset.pattern.permute.xlu0 5
        %2337 = vperm.xlu0 %2336, %v790
        %v2338 = vpop.permute.xlu0 %2337
        %2340 = vset.pattern.permute.xlu0 5
        %2341 = vperm.xlu0 %2340, %v791
        %v2342 = vpop.permute.xlu0 %2341
        %v2344 = vsel %vm531, %v2282, %v2314
        %v2345 = vsel %vm531, %v2286, %v2318
        %v2346 = vsel %vm531, %v2290, %v2322
        %v2347 = vsel %vm531, %v2294, %v2326
        %v2348 = vsel %vm531, %v2298, %v2330
        %v2349 = vsel %vm531, %v2302, %v2334
        %v2350 = vsel %vm531, %v2306, %v2338
        %v2351 = vsel %vm531, %v2310, %v2342
        %2352 = vset.pattern.permute.xlu0 5
        %2353 = vperm.xlu0 %2352, %v840
        %v2354 = vpop.permute.xlu0 %2353
        %2356 = vset.pattern.permute.xlu0 5
        %2357 = vperm.xlu0 %2356, %v841
        %v2358 = vpop.permute.xlu0 %2357
        %2360 = vset.pattern.permute.xlu0 5
        %2361 = vperm.xlu0 %2360, %v842
        %v2362 = vpop.permute.xlu0 %2361
        %2364 = vset.pattern.permute.xlu0 5
        %2365 = vperm.xlu0 %2364, %v843
        %v2366 = vpop.permute.xlu0 %2365
        %2368 = vset.pattern.permute.xlu0 5
        %2369 = vperm.xlu0 %2368, %v844
        %v2370 = vpop.permute.xlu0 %2369
        %2372 = vset.pattern.permute.xlu0 5
        %2373 = vperm.xlu0 %2372, %v845
        %v2374 = vpop.permute.xlu0 %2373
        %2376 = vset.pattern.permute.xlu0 5
        %2377 = vperm.xlu0 %2376, %v846
        %v2378 = vpop.permute.xlu0 %2377
        %2380 = vset.pattern.permute.xlu0 5
        %2381 = vperm.xlu0 %2380, %v847
        %v2382 = vpop.permute.xlu0 %2381
        %2384 = vset.pattern.permute.xlu0 5
        %2385 = vperm.xlu0 %2384, %v888
        %v2386 = vpop.permute.xlu0 %2385
        %2388 = vset.pattern.permute.xlu0 5
        %2389 = vperm.xlu0 %2388, %v889
        %v2390 = vpop.permute.xlu0 %2389
        %2392 = vset.pattern.permute.xlu0 5
        %2393 = vperm.xlu0 %2392, %v890
        %v2394 = vpop.permute.xlu0 %2393
        %2396 = vset.pattern.permute.xlu0 5
        %2397 = vperm.xlu0 %2396, %v891
        %v2398 = vpop.permute.xlu0 %2397
        %2400 = vset.pattern.permute.xlu0 5
        %2401 = vperm.xlu0 %2400, %v892
        %v2402 = vpop.permute.xlu0 %2401
        %2404 = vset.pattern.permute.xlu0 5
        %2405 = vperm.xlu0 %2404, %v893
        %v2406 = vpop.permute.xlu0 %2405
        %2408 = vset.pattern.permute.xlu0 5
        %2409 = vperm.xlu0 %2408, %v894
        %v2410 = vpop.permute.xlu0 %2409
        %2412 = vset.pattern.permute.xlu0 5
        %2413 = vperm.xlu0 %2412, %v895
        %v2414 = vpop.permute.xlu0 %2413
        %v2416 = vsel %vm531, %v2354, %v2386
        %v2417 = vsel %vm531, %v2358, %v2390
        %v2418 = vsel %vm531, %v2362, %v2394
        %v2419 = vsel %vm531, %v2366, %v2398
        %v2420 = vsel %vm531, %v2370, %v2402
        %v2421 = vsel %vm531, %v2374, %v2406
        %v2422 = vsel %vm531, %v2378, %v2410
        %v2423 = vsel %vm531, %v2382, %v2414
        %2424 = vset.pattern.permute.xlu0 5
        %2425 = vperm.xlu0 %2424, %v944
        %v2426 = vpop.permute.xlu0 %2425
        %2428 = vset.pattern.permute.xlu0 5
        %2429 = vperm.xlu0 %2428, %v945
        %v2430 = vpop.permute.xlu0 %2429
        %2432 = vset.pattern.permute.xlu0 5
        %2433 = vperm.xlu0 %2432, %v946
        %v2434 = vpop.permute.xlu0 %2433
        %2436 = vset.pattern.permute.xlu0 5
        %2437 = vperm.xlu0 %2436, %v947
        %v2438 = vpop.permute.xlu0 %2437
        %2440 = vset.pattern.permute.xlu0 5
        %2441 = vperm.xlu0 %2440, %v948
        %v2442 = vpop.permute.xlu0 %2441
        %2444 = vset.pattern.permute.xlu0 5
        %2445 = vperm.xlu0 %2444, %v949
        %v2446 = vpop.permute.xlu0 %2445
        %2448 = vset.pattern.permute.xlu0 5
        %2449 = vperm.xlu0 %2448, %v950
        %v2450 = vpop.permute.xlu0 %2449
        %2452 = vset.pattern.permute.xlu0 5
        %2453 = vperm.xlu0 %2452, %v951
        %v2454 = vpop.permute.xlu0 %2453
        %2456 = vset.pattern.permute.xlu0 5
        %2457 = vperm.xlu0 %2456, %v992
        %v2458 = vpop.permute.xlu0 %2457
        %2460 = vset.pattern.permute.xlu0 5
        %2461 = vperm.xlu0 %2460, %v993
        %v2462 = vpop.permute.xlu0 %2461
        %2464 = vset.pattern.permute.xlu0 5
        %2465 = vperm.xlu0 %2464, %v994
        %v2466 = vpop.permute.xlu0 %2465
        %2468 = vset.pattern.permute.xlu0 5
        %2469 = vperm.xlu0 %2468, %v995
        %v2470 = vpop.permute.xlu0 %2469
        %2472 = vset.pattern.permute.xlu0 5
        %2473 = vperm.xlu0 %2472, %v996
        %v2474 = vpop.permute.xlu0 %2473
        %2476 = vset.pattern.permute.xlu0 5
        %2477 = vperm.xlu0 %2476, %v997
        %v2478 = vpop.permute.xlu0 %2477
        %2480 = vset.pattern.permute.xlu0 5
        %2481 = vperm.xlu0 %2480, %v998
        %v2482 = vpop.permute.xlu0 %2481
        %2484 = vset.pattern.permute.xlu0 5
        %2485 = vperm.xlu0 %2484, %v999
        %v2486 = vpop.permute.xlu0 %2485
        %v2488 = vsel %vm531, %v2426, %v2458
        %v2489 = vsel %vm531, %v2430, %v2462
        %v2490 = vsel %vm531, %v2434, %v2466
        %v2491 = vsel %vm531, %v2438, %v2470
        %v2492 = vsel %vm531, %v2442, %v2474
        %v2493 = vsel %vm531, %v2446, %v2478
        %v2494 = vsel %vm531, %v2450, %v2482
        %v2495 = vsel %vm531, %v2454, %v2486
        %v2497 = vrot.slane %v2213, 7
        %v2499 = vmul.f32 %v544, %v2497
        %v2500 = vmul.f32 %v539, %v2497
        %v2501 = vmul.f32 %v2499, %v558
        %v2502 = vadd.f32 %v2500, %v2501
        %v2503 = vadd.f32 %v2502, %v1052
        %v2504 = vperm.slane %v539, 5
        %v2505 = vmul.f32 %v2249, %v2504
        %v2506 = vmul.f32 %v2250, %v2504
        %v2507 = vmul.f32 %v2251, %v2504
        %v2508 = vmul.f32 %v2252, %v2504
        %v2509 = vmul.f32 %v2253, %v2504
        %v2510 = vmul.f32 %v2254, %v2504
        %v2511 = vmul.f32 %v2255, %v2504
        %v2512 = vmul.f32 %v2256, %v2504
        %v2513 = vperm.slane %v2499, 5
        %v2514 = vmul.f32 %v2344, %v2513
        %v2515 = vmul.f32 %v2345, %v2513
        %v2516 = vmul.f32 %v2346, %v2513
        %v2517 = vmul.f32 %v2347, %v2513
        %v2518 = vmul.f32 %v2348, %v2513
        %v2519 = vmul.f32 %v2349, %v2513
        %v2520 = vmul.f32 %v2350, %v2513
        %v2521 = vmul.f32 %v2351, %v2513
        %v2522 = vadd.f32 %v2505, %v2514
        %v2523 = vadd.f32 %v2506, %v2515
        %v2524 = vadd.f32 %v2507, %v2516
        %v2525 = vadd.f32 %v2508, %v2517
        %v2526 = vadd.f32 %v2509, %v2518
        %v2527 = vadd.f32 %v2510, %v2519
        %v2528 = vadd.f32 %v2511, %v2520
        %v2529 = vadd.f32 %v2512, %v2521
        %v2530 = vperm.slane %v541, 5
        %v2531 = vmul.f32 %v2416, %v2530
        %v2532 = vmul.f32 %v2417, %v2530
        %v2533 = vmul.f32 %v2418, %v2530
        %v2534 = vmul.f32 %v2419, %v2530
        %v2535 = vmul.f32 %v2420, %v2530
        %v2536 = vmul.f32 %v2421, %v2530
        %v2537 = vmul.f32 %v2422, %v2530
        %v2538 = vmul.f32 %v2423, %v2530
        %v2539 = vadd.f32 %v2522, %v2531
        %v2540 = vadd.f32 %v2523, %v2532
        %v2541 = vadd.f32 %v2524, %v2533
        %v2542 = vadd.f32 %v2525, %v2534
        %v2543 = vadd.f32 %v2526, %v2535
        %v2544 = vadd.f32 %v2527, %v2536
        %v2545 = vadd.f32 %v2528, %v2537
        %v2546 = vadd.f32 %v2529, %v2538
        %v2547 = vmul.f32 %v2539, %v2488
        %v2548 = vmul.f32 %v2540, %v2489
        %v2549 = vmul.f32 %v2541, %v2490
        %v2550 = vmul.f32 %v2542, %v2491
        %v2551 = vmul.f32 %v2543, %v2492
        %v2552 = vmul.f32 %v2544, %v2493
        %v2553 = vmul.f32 %v2545, %v2494
        %v2554 = vmul.f32 %v2546, %v2495
        %v2555 = vadd.f32 %v2547, %v2548
        %v2556 = vadd.f32 %v2555, %v2549
        %v2557 = vadd.f32 %v2556, %v2550
        %v2558 = vadd.f32 %v2557, %v2551
        %v2559 = vadd.f32 %v2558, %v2552
        %v2560 = vadd.f32 %v2559, %v2553
        %v2561 = vadd.f32 %v2560, %v2554
        %v2562 = vrot.slane %v2561, 4
        %v2563 = vadd.f32 %v2561, %v2562
        %v2564 = vrot.slane %v2563, 2
        %v2565 = vadd.f32 %v2563, %v2564
        %v2566 = vrot.slane %v2565, 1
        %v2567 = vadd.f32 %v2565, %v2566
        %vm2568 = vcmp.eq.s32.totalorder %v533, 5
        %v2569 = vsel %vm2568, %v2567, %v2279
        %2570 = vset.pattern.permute.xlu0 6
        %2571 = vperm.xlu0 %2570, %v736
        %v2572 = vpop.permute.xlu0 %2571
        %2574 = vset.pattern.permute.xlu0 6
        %2575 = vperm.xlu0 %2574, %v737
        %v2576 = vpop.permute.xlu0 %2575
        %2578 = vset.pattern.permute.xlu0 6
        %2579 = vperm.xlu0 %2578, %v738
        %v2580 = vpop.permute.xlu0 %2579
        %2582 = vset.pattern.permute.xlu0 6
        %2583 = vperm.xlu0 %2582, %v739
        %v2584 = vpop.permute.xlu0 %2583
        %2586 = vset.pattern.permute.xlu0 6
        %2587 = vperm.xlu0 %2586, %v740
        %v2588 = vpop.permute.xlu0 %2587
        %2590 = vset.pattern.permute.xlu0 6
        %2591 = vperm.xlu0 %2590, %v741
        %v2592 = vpop.permute.xlu0 %2591
        %2594 = vset.pattern.permute.xlu0 6
        %2595 = vperm.xlu0 %2594, %v742
        %v2596 = vpop.permute.xlu0 %2595
        %2598 = vset.pattern.permute.xlu0 6
        %2599 = vperm.xlu0 %2598, %v743
        %v2600 = vpop.permute.xlu0 %2599
        %2602 = vset.pattern.permute.xlu0 6
        %2603 = vperm.xlu0 %2602, %v784
        %v2604 = vpop.permute.xlu0 %2603
        %2606 = vset.pattern.permute.xlu0 6
        %2607 = vperm.xlu0 %2606, %v785
        %v2608 = vpop.permute.xlu0 %2607
        %2610 = vset.pattern.permute.xlu0 6
        %2611 = vperm.xlu0 %2610, %v786
        %v2612 = vpop.permute.xlu0 %2611
        %2614 = vset.pattern.permute.xlu0 6
        %2615 = vperm.xlu0 %2614, %v787
        %v2616 = vpop.permute.xlu0 %2615
        %2618 = vset.pattern.permute.xlu0 6
        %2619 = vperm.xlu0 %2618, %v788
        %v2620 = vpop.permute.xlu0 %2619
        %2622 = vset.pattern.permute.xlu0 6
        %2623 = vperm.xlu0 %2622, %v789
        %v2624 = vpop.permute.xlu0 %2623
        %2626 = vset.pattern.permute.xlu0 6
        %2627 = vperm.xlu0 %2626, %v790
        %v2628 = vpop.permute.xlu0 %2627
        %2630 = vset.pattern.permute.xlu0 6
        %2631 = vperm.xlu0 %2630, %v791
        %v2632 = vpop.permute.xlu0 %2631
        %v2634 = vsel %vm531, %v2572, %v2604
        %v2635 = vsel %vm531, %v2576, %v2608
        %v2636 = vsel %vm531, %v2580, %v2612
        %v2637 = vsel %vm531, %v2584, %v2616
        %v2638 = vsel %vm531, %v2588, %v2620
        %v2639 = vsel %vm531, %v2592, %v2624
        %v2640 = vsel %vm531, %v2596, %v2628
        %v2641 = vsel %vm531, %v2600, %v2632
        %2642 = vset.pattern.permute.xlu0 6
        %2643 = vperm.xlu0 %2642, %v840
        %v2644 = vpop.permute.xlu0 %2643
        %2646 = vset.pattern.permute.xlu0 6
        %2647 = vperm.xlu0 %2646, %v841
        %v2648 = vpop.permute.xlu0 %2647
        %2650 = vset.pattern.permute.xlu0 6
        %2651 = vperm.xlu0 %2650, %v842
        %v2652 = vpop.permute.xlu0 %2651
        %2654 = vset.pattern.permute.xlu0 6
        %2655 = vperm.xlu0 %2654, %v843
        %v2656 = vpop.permute.xlu0 %2655
        %2658 = vset.pattern.permute.xlu0 6
        %2659 = vperm.xlu0 %2658, %v844
        %v2660 = vpop.permute.xlu0 %2659
        %2662 = vset.pattern.permute.xlu0 6
        %2663 = vperm.xlu0 %2662, %v845
        %v2664 = vpop.permute.xlu0 %2663
        %2666 = vset.pattern.permute.xlu0 6
        %2667 = vperm.xlu0 %2666, %v846
        %v2668 = vpop.permute.xlu0 %2667
        %2670 = vset.pattern.permute.xlu0 6
        %2671 = vperm.xlu0 %2670, %v847
        %v2672 = vpop.permute.xlu0 %2671
        %2674 = vset.pattern.permute.xlu0 6
        %2675 = vperm.xlu0 %2674, %v888
        %v2676 = vpop.permute.xlu0 %2675
        %2678 = vset.pattern.permute.xlu0 6
        %2679 = vperm.xlu0 %2678, %v889
        %v2680 = vpop.permute.xlu0 %2679
        %2682 = vset.pattern.permute.xlu0 6
        %2683 = vperm.xlu0 %2682, %v890
        %v2684 = vpop.permute.xlu0 %2683
        %2686 = vset.pattern.permute.xlu0 6
        %2687 = vperm.xlu0 %2686, %v891
        %v2688 = vpop.permute.xlu0 %2687
        %2690 = vset.pattern.permute.xlu0 6
        %2691 = vperm.xlu0 %2690, %v892
        %v2692 = vpop.permute.xlu0 %2691
        %2694 = vset.pattern.permute.xlu0 6
        %2695 = vperm.xlu0 %2694, %v893
        %v2696 = vpop.permute.xlu0 %2695
        %2698 = vset.pattern.permute.xlu0 6
        %2699 = vperm.xlu0 %2698, %v894
        %v2700 = vpop.permute.xlu0 %2699
        %2702 = vset.pattern.permute.xlu0 6
        %2703 = vperm.xlu0 %2702, %v895
        %v2704 = vpop.permute.xlu0 %2703
        %v2706 = vsel %vm531, %v2644, %v2676
        %v2707 = vsel %vm531, %v2648, %v2680
        %v2708 = vsel %vm531, %v2652, %v2684
        %v2709 = vsel %vm531, %v2656, %v2688
        %v2710 = vsel %vm531, %v2660, %v2692
        %v2711 = vsel %vm531, %v2664, %v2696
        %v2712 = vsel %vm531, %v2668, %v2700
        %v2713 = vsel %vm531, %v2672, %v2704
        %2714 = vset.pattern.permute.xlu0 6
        %2715 = vperm.xlu0 %2714, %v944
        %v2716 = vpop.permute.xlu0 %2715
        %2718 = vset.pattern.permute.xlu0 6
        %2719 = vperm.xlu0 %2718, %v945
        %v2720 = vpop.permute.xlu0 %2719
        %2722 = vset.pattern.permute.xlu0 6
        %2723 = vperm.xlu0 %2722, %v946
        %v2724 = vpop.permute.xlu0 %2723
        %2726 = vset.pattern.permute.xlu0 6
        %2727 = vperm.xlu0 %2726, %v947
        %v2728 = vpop.permute.xlu0 %2727
        %2730 = vset.pattern.permute.xlu0 6
        %2731 = vperm.xlu0 %2730, %v948
        %v2732 = vpop.permute.xlu0 %2731
        %2734 = vset.pattern.permute.xlu0 6
        %2735 = vperm.xlu0 %2734, %v949
        %v2736 = vpop.permute.xlu0 %2735
        %2738 = vset.pattern.permute.xlu0 6
        %2739 = vperm.xlu0 %2738, %v950
        %v2740 = vpop.permute.xlu0 %2739
        %2742 = vset.pattern.permute.xlu0 6
        %2743 = vperm.xlu0 %2742, %v951
        %v2744 = vpop.permute.xlu0 %2743
        %2746 = vset.pattern.permute.xlu0 6
        %2747 = vperm.xlu0 %2746, %v992
        %v2748 = vpop.permute.xlu0 %2747
        %2750 = vset.pattern.permute.xlu0 6
        %2751 = vperm.xlu0 %2750, %v993
        %v2752 = vpop.permute.xlu0 %2751
        %2754 = vset.pattern.permute.xlu0 6
        %2755 = vperm.xlu0 %2754, %v994
        %v2756 = vpop.permute.xlu0 %2755
        %2758 = vset.pattern.permute.xlu0 6
        %2759 = vperm.xlu0 %2758, %v995
        %v2760 = vpop.permute.xlu0 %2759
        %2762 = vset.pattern.permute.xlu0 6
        %2763 = vperm.xlu0 %2762, %v996
        %v2764 = vpop.permute.xlu0 %2763
        %2766 = vset.pattern.permute.xlu0 6
        %2767 = vperm.xlu0 %2766, %v997
        %v2768 = vpop.permute.xlu0 %2767
        %2770 = vset.pattern.permute.xlu0 6
        %2771 = vperm.xlu0 %2770, %v998
        %v2772 = vpop.permute.xlu0 %2771
        %2774 = vset.pattern.permute.xlu0 6
        %2775 = vperm.xlu0 %2774, %v999
        %v2776 = vpop.permute.xlu0 %2775
        %v2778 = vsel %vm531, %v2716, %v2748
        %v2779 = vsel %vm531, %v2720, %v2752
        %v2780 = vsel %vm531, %v2724, %v2756
        %v2781 = vsel %vm531, %v2728, %v2760
        %v2782 = vsel %vm531, %v2732, %v2764
        %v2783 = vsel %vm531, %v2736, %v2768
        %v2784 = vsel %vm531, %v2740, %v2772
        %v2785 = vsel %vm531, %v2744, %v2776
        %v2787 = vrot.slane %v2503, 7
        %v2789 = vmul.f32 %v544, %v2787
        %v2790 = vmul.f32 %v539, %v2787
        %v2791 = vmul.f32 %v2789, %v558
        %v2792 = vadd.f32 %v2790, %v2791
        %v2793 = vadd.f32 %v2792, %v1052
        %v2794 = vperm.slane %v539, 6
        %v2795 = vmul.f32 %v2539, %v2794
        %v2796 = vmul.f32 %v2540, %v2794
        %v2797 = vmul.f32 %v2541, %v2794
        %v2798 = vmul.f32 %v2542, %v2794
        %v2799 = vmul.f32 %v2543, %v2794
        %v2800 = vmul.f32 %v2544, %v2794
        %v2801 = vmul.f32 %v2545, %v2794
        %v2802 = vmul.f32 %v2546, %v2794
        %v2803 = vperm.slane %v2789, 6
        %v2804 = vmul.f32 %v2634, %v2803
        %v2805 = vmul.f32 %v2635, %v2803
        %v2806 = vmul.f32 %v2636, %v2803
        %v2807 = vmul.f32 %v2637, %v2803
        %v2808 = vmul.f32 %v2638, %v2803
        %v2809 = vmul.f32 %v2639, %v2803
        %v2810 = vmul.f32 %v2640, %v2803
        %v2811 = vmul.f32 %v2641, %v2803
        %v2812 = vadd.f32 %v2795, %v2804
        %v2813 = vadd.f32 %v2796, %v2805
        %v2814 = vadd.f32 %v2797, %v2806
        %v2815 = vadd.f32 %v2798, %v2807
        %v2816 = vadd.f32 %v2799, %v2808
        %v2817 = vadd.f32 %v2800, %v2809
        %v2818 = vadd.f32 %v2801, %v2810
        %v2819 = vadd.f32 %v2802, %v2811
        %v2820 = vperm.slane %v541, 6
        %v2821 = vmul.f32 %v2706, %v2820
        %v2822 = vmul.f32 %v2707, %v2820
        %v2823 = vmul.f32 %v2708, %v2820
        %v2824 = vmul.f32 %v2709, %v2820
        %v2825 = vmul.f32 %v2710, %v2820
        %v2826 = vmul.f32 %v2711, %v2820
        %v2827 = vmul.f32 %v2712, %v2820
        %v2828 = vmul.f32 %v2713, %v2820
        %v2829 = vadd.f32 %v2812, %v2821
        %v2830 = vadd.f32 %v2813, %v2822
        %v2831 = vadd.f32 %v2814, %v2823
        %v2832 = vadd.f32 %v2815, %v2824
        %v2833 = vadd.f32 %v2816, %v2825
        %v2834 = vadd.f32 %v2817, %v2826
        %v2835 = vadd.f32 %v2818, %v2827
        %v2836 = vadd.f32 %v2819, %v2828
        %v2837 = vmul.f32 %v2829, %v2778
        %v2838 = vmul.f32 %v2830, %v2779
        %v2839 = vmul.f32 %v2831, %v2780
        %v2840 = vmul.f32 %v2832, %v2781
        %v2841 = vmul.f32 %v2833, %v2782
        %v2842 = vmul.f32 %v2834, %v2783
        %v2843 = vmul.f32 %v2835, %v2784
        %v2844 = vmul.f32 %v2836, %v2785
        %v2845 = vadd.f32 %v2837, %v2838
        %v2846 = vadd.f32 %v2845, %v2839
        %v2847 = vadd.f32 %v2846, %v2840
        %v2848 = vadd.f32 %v2847, %v2841
        %v2849 = vadd.f32 %v2848, %v2842
        %v2850 = vadd.f32 %v2849, %v2843
        %v2851 = vadd.f32 %v2850, %v2844
        %v2852 = vrot.slane %v2851, 4
        %v2853 = vadd.f32 %v2851, %v2852
        %v2854 = vrot.slane %v2853, 2
        %v2855 = vadd.f32 %v2853, %v2854
        %v2856 = vrot.slane %v2855, 1
        %v2857 = vadd.f32 %v2855, %v2856
        %vm2858 = vcmp.eq.s32.totalorder %v533, 6
        %v2859 = vsel %vm2858, %v2857, %v2569
        %2860 = vset.pattern.permute.xlu0 7
        %2861 = vperm.xlu0 %2860, %v736
        %v2862 = vpop.permute.xlu0 %2861
        %2864 = vset.pattern.permute.xlu0 7
        %2865 = vperm.xlu0 %2864, %v737
        %v2866 = vpop.permute.xlu0 %2865
        %2868 = vset.pattern.permute.xlu0 7
        %2869 = vperm.xlu0 %2868, %v738
        %v2870 = vpop.permute.xlu0 %2869
        %2872 = vset.pattern.permute.xlu0 7
        %2873 = vperm.xlu0 %2872, %v739
        %v2874 = vpop.permute.xlu0 %2873
        %2876 = vset.pattern.permute.xlu0 7
        %2877 = vperm.xlu0 %2876, %v740
        %v2878 = vpop.permute.xlu0 %2877
        %2880 = vset.pattern.permute.xlu0 7
        %2881 = vperm.xlu0 %2880, %v741
        %v2882 = vpop.permute.xlu0 %2881
        %2884 = vset.pattern.permute.xlu0 7
        %2885 = vperm.xlu0 %2884, %v742
        %v2886 = vpop.permute.xlu0 %2885
        %2888 = vset.pattern.permute.xlu0 7
        %2889 = vperm.xlu0 %2888, %v743
        %v2890 = vpop.permute.xlu0 %2889
        %2892 = vset.pattern.permute.xlu0 7
        %2893 = vperm.xlu0 %2892, %v784
        %v2894 = vpop.permute.xlu0 %2893
        %2896 = vset.pattern.permute.xlu0 7
        %2897 = vperm.xlu0 %2896, %v785
        %v2898 = vpop.permute.xlu0 %2897
        %2900 = vset.pattern.permute.xlu0 7
        %2901 = vperm.xlu0 %2900, %v786
        %v2902 = vpop.permute.xlu0 %2901
        %2904 = vset.pattern.permute.xlu0 7
        %2905 = vperm.xlu0 %2904, %v787
        %v2906 = vpop.permute.xlu0 %2905
        %2908 = vset.pattern.permute.xlu0 7
        %2909 = vperm.xlu0 %2908, %v788
        %v2910 = vpop.permute.xlu0 %2909
        %2912 = vset.pattern.permute.xlu0 7
        %2913 = vperm.xlu0 %2912, %v789
        %v2914 = vpop.permute.xlu0 %2913
        %2916 = vset.pattern.permute.xlu0 7
        %2917 = vperm.xlu0 %2916, %v790
        %v2918 = vpop.permute.xlu0 %2917
        %2920 = vset.pattern.permute.xlu0 7
        %2921 = vperm.xlu0 %2920, %v791
        %v2922 = vpop.permute.xlu0 %2921
        %v2924 = vsel %vm531, %v2862, %v2894
        %v2925 = vsel %vm531, %v2866, %v2898
        %v2926 = vsel %vm531, %v2870, %v2902
        %v2927 = vsel %vm531, %v2874, %v2906
        %v2928 = vsel %vm531, %v2878, %v2910
        %v2929 = vsel %vm531, %v2882, %v2914
        %v2930 = vsel %vm531, %v2886, %v2918
        %v2931 = vsel %vm531, %v2890, %v2922
        %2932 = vset.pattern.permute.xlu0 7
        %2933 = vperm.xlu0 %2932, %v840
        %v2934 = vpop.permute.xlu0 %2933
        %2936 = vset.pattern.permute.xlu0 7
        %2937 = vperm.xlu0 %2936, %v841
        %v2938 = vpop.permute.xlu0 %2937
        %2940 = vset.pattern.permute.xlu0 7
        %2941 = vperm.xlu0 %2940, %v842
        %v2942 = vpop.permute.xlu0 %2941
        %2944 = vset.pattern.permute.xlu0 7
        %2945 = vperm.xlu0 %2944, %v843
        %v2946 = vpop.permute.xlu0 %2945
        %2948 = vset.pattern.permute.xlu0 7
        %2949 = vperm.xlu0 %2948, %v844
        %v2950 = vpop.permute.xlu0 %2949
        %2952 = vset.pattern.permute.xlu0 7
        %2953 = vperm.xlu0 %2952, %v845
        %v2954 = vpop.permute.xlu0 %2953
        %2956 = vset.pattern.permute.xlu0 7
        %2957 = vperm.xlu0 %2956, %v846
        %v2958 = vpop.permute.xlu0 %2957
        %2960 = vset.pattern.permute.xlu0 7
        %2961 = vperm.xlu0 %2960, %v847
        %v2962 = vpop.permute.xlu0 %2961
        %2964 = vset.pattern.permute.xlu0 7
        %2965 = vperm.xlu0 %2964, %v888
        %v2966 = vpop.permute.xlu0 %2965
        %2968 = vset.pattern.permute.xlu0 7
        %2969 = vperm.xlu0 %2968, %v889
        %v2970 = vpop.permute.xlu0 %2969
        %2972 = vset.pattern.permute.xlu0 7
        %2973 = vperm.xlu0 %2972, %v890
        %v2974 = vpop.permute.xlu0 %2973
        %2976 = vset.pattern.permute.xlu0 7
        %2977 = vperm.xlu0 %2976, %v891
        %v2978 = vpop.permute.xlu0 %2977
        %2980 = vset.pattern.permute.xlu0 7
        %2981 = vperm.xlu0 %2980, %v892
        %v2982 = vpop.permute.xlu0 %2981
        %2984 = vset.pattern.permute.xlu0 7
        %2985 = vperm.xlu0 %2984, %v893
        %v2986 = vpop.permute.xlu0 %2985
        %2988 = vset.pattern.permute.xlu0 7
        %2989 = vperm.xlu0 %2988, %v894
        %v2990 = vpop.permute.xlu0 %2989
        %2992 = vset.pattern.permute.xlu0 7
        %2993 = vperm.xlu0 %2992, %v895
        %v2994 = vpop.permute.xlu0 %2993
        %v2996 = vsel %vm531, %v2934, %v2966
        %v2997 = vsel %vm531, %v2938, %v2970
        %v2998 = vsel %vm531, %v2942, %v2974
        %v2999 = vsel %vm531, %v2946, %v2978
        %v3000 = vsel %vm531, %v2950, %v2982
        %v3001 = vsel %vm531, %v2954, %v2986
        %v3002 = vsel %vm531, %v2958, %v2990
        %v3003 = vsel %vm531, %v2962, %v2994
        %3004 = vset.pattern.permute.xlu0 7
        %3005 = vperm.xlu0 %3004, %v944
        %v3006 = vpop.permute.xlu0 %3005
        %3008 = vset.pattern.permute.xlu0 7
        %3009 = vperm.xlu0 %3008, %v945
        %v3010 = vpop.permute.xlu0 %3009
        %3012 = vset.pattern.permute.xlu0 7
        %3013 = vperm.xlu0 %3012, %v946
        %v3014 = vpop.permute.xlu0 %3013
        %3016 = vset.pattern.permute.xlu0 7
        %3017 = vperm.xlu0 %3016, %v947
        %v3018 = vpop.permute.xlu0 %3017
        %3020 = vset.pattern.permute.xlu0 7
        %3021 = vperm.xlu0 %3020, %v948
        %v3022 = vpop.permute.xlu0 %3021
        %3024 = vset.pattern.permute.xlu0 7
        %3025 = vperm.xlu0 %3024, %v949
        %v3026 = vpop.permute.xlu0 %3025
        %3028 = vset.pattern.permute.xlu0 7
        %3029 = vperm.xlu0 %3028, %v950
        %v3030 = vpop.permute.xlu0 %3029
        %3032 = vset.pattern.permute.xlu0 7
        %3033 = vperm.xlu0 %3032, %v951
        %v3034 = vpop.permute.xlu0 %3033
        %3036 = vset.pattern.permute.xlu0 7
        %3037 = vperm.xlu0 %3036, %v992
        %v3038 = vpop.permute.xlu0 %3037
        %3040 = vset.pattern.permute.xlu0 7
        %3041 = vperm.xlu0 %3040, %v993
        %v3042 = vpop.permute.xlu0 %3041
        %3044 = vset.pattern.permute.xlu0 7
        %3045 = vperm.xlu0 %3044, %v994
        %v3046 = vpop.permute.xlu0 %3045
        %3048 = vset.pattern.permute.xlu0 7
        %3049 = vperm.xlu0 %3048, %v995
        %v3050 = vpop.permute.xlu0 %3049
        %3052 = vset.pattern.permute.xlu0 7
        %3053 = vperm.xlu0 %3052, %v996
        %v3054 = vpop.permute.xlu0 %3053
        %3056 = vset.pattern.permute.xlu0 7
        %3057 = vperm.xlu0 %3056, %v997
        %v3058 = vpop.permute.xlu0 %3057
        %3060 = vset.pattern.permute.xlu0 7
        %3061 = vperm.xlu0 %3060, %v998
        %v3062 = vpop.permute.xlu0 %3061
        %3064 = vset.pattern.permute.xlu0 7
        %3065 = vperm.xlu0 %3064, %v999
        %v3066 = vpop.permute.xlu0 %3065
        %v3068 = vsel %vm531, %v3006, %v3038
        %v3069 = vsel %vm531, %v3010, %v3042
        %v3070 = vsel %vm531, %v3014, %v3046
        %v3071 = vsel %vm531, %v3018, %v3050
        %v3072 = vsel %vm531, %v3022, %v3054
        %v3073 = vsel %vm531, %v3026, %v3058
        %v3074 = vsel %vm531, %v3030, %v3062
        %v3075 = vsel %vm531, %v3034, %v3066
        %v3077 = vrot.slane %v2793, 7
        %v3079 = vmul.f32 %v544, %v3077
        %v3080 = vperm.slane %v539, 7
        %v3081 = vmul.f32 %v2829, %v3080
        %v3082 = vmul.f32 %v2830, %v3080
        %v3083 = vmul.f32 %v2831, %v3080
        %v3084 = vmul.f32 %v2832, %v3080
        %v3085 = vmul.f32 %v2833, %v3080
        %v3086 = vmul.f32 %v2834, %v3080
        %v3087 = vmul.f32 %v2835, %v3080
        %v3088 = vmul.f32 %v2836, %v3080
        %v3089 = vperm.slane %v3079, 7
        %v3090 = vmul.f32 %v2924, %v3089
        %v3091 = vmul.f32 %v2925, %v3089
        %v3092 = vmul.f32 %v2926, %v3089
        %v3093 = vmul.f32 %v2927, %v3089
        %v3094 = vmul.f32 %v2928, %v3089
        %v3095 = vmul.f32 %v2929, %v3089
        %v3096 = vmul.f32 %v2930, %v3089
        %v3097 = vmul.f32 %v2931, %v3089
        %v3098 = vadd.f32 %v3081, %v3090
        %v3099 = vadd.f32 %v3082, %v3091
        %v3100 = vadd.f32 %v3083, %v3092
        %v3101 = vadd.f32 %v3084, %v3093
        %v3102 = vadd.f32 %v3085, %v3094
        %v3103 = vadd.f32 %v3086, %v3095
        %v3104 = vadd.f32 %v3087, %v3096
        %v3105 = vadd.f32 %v3088, %v3097
        %v3106 = vperm.slane %v541, 7
        %v3107 = vmul.f32 %v2996, %v3106
        %v3108 = vmul.f32 %v2997, %v3106
        %v3109 = vmul.f32 %v2998, %v3106
        %v3110 = vmul.f32 %v2999, %v3106
        %v3111 = vmul.f32 %v3000, %v3106
        %v3112 = vmul.f32 %v3001, %v3106
        %v3113 = vmul.f32 %v3002, %v3106
        %v3114 = vmul.f32 %v3003, %v3106
        %v3115 = vadd.f32 %v3098, %v3107
        %v3116 = vadd.f32 %v3099, %v3108
        %v3117 = vadd.f32 %v3100, %v3109
        %v3118 = vadd.f32 %v3101, %v3110
        %v3119 = vadd.f32 %v3102, %v3111
        %v3120 = vadd.f32 %v3103, %v3112
        %v3121 = vadd.f32 %v3104, %v3113
        %v3122 = vadd.f32 %v3105, %v3114
        %v3123 = vmul.f32 %v3115, %v3068
        %v3124 = vmul.f32 %v3116, %v3069
        %v3125 = vmul.f32 %v3117, %v3070
        %v3126 = vmul.f32 %v3118, %v3071
        %v3127 = vmul.f32 %v3119, %v3072
        %v3128 = vmul.f32 %v3120, %v3073
        %v3129 = vmul.f32 %v3121, %v3074
        %v3130 = vmul.f32 %v3122, %v3075
        %v3131 = vadd.f32 %v3123, %v3124
        %v3132 = vadd.f32 %v3131, %v3125
        %v3133 = vadd.f32 %v3132, %v3126
        %v3134 = vadd.f32 %v3133, %v3127
        %v3135 = vadd.f32 %v3134, %v3128
        %v3136 = vadd.f32 %v3135, %v3129
        %v3137 = vadd.f32 %v3136, %v3130
        %v3138 = vrot.slane %v3137, 4
        %v3139 = vadd.f32 %v3137, %v3138
        %v3140 = vrot.slane %v3139, 2
        %v3141 = vadd.f32 %v3139, %v3140
        %v3142 = vrot.slane %v3141, 1
        %v3143 = vadd.f32 %v3141, %v3142
        %vm3144 = vcmp.eq.s32.totalorder %v533, 7
        %v3145 = vsel %vm3144, %v3143, %v2859
        %3146 = vst [vmem:[#allocation2] sm:$0xff] %v3115
        %3147 = vst [vmem:[#allocation2 + $0x8] sm:$0xff] %v3116
        %3148 = vst [vmem:[#allocation2 + $0x10] sm:$0xff] %v3117
        %3149 = vst [vmem:[#allocation2 + $0x18] sm:$0xff] %v3118
        %3150 = vst [vmem:[#allocation2 + $0x20] sm:$0xff] %v3119
        %3151 = vst [vmem:[#allocation2 + $0x28] sm:$0xff] %v3120
        %3152 = vst [vmem:[#allocation2 + $0x30] sm:$0xff] %v3121
        %3153 = vst [vmem:[#allocation2 + $0x38] sm:$0xff] %v3122
        %3154 = vst [vmem:[%s516] sm:$0xff] %v3145
        %s3155 = sand.u32 %s243, 1
        %s3156 = scalar_lea.sflag [#allocation8], %s3155
        %s3157 = sand.u32 %s243, 1
        %s3158 = smul.addr %s3157, 8
        %s3159 = scalar_lea.vmem [#allocation17], %s3158
        // Predicated region
        $region73: #{tpu_custom_call.1} parent=43 // pred_check
          %p3160 = pneg %p253
        $region74: #{tpu_custom_call.1} parent=43 // pred_check_branch
          %3162 = sbr.rel (%p3160) target = $region76
        $region75: #{tpu_custom_call.1} parent=43 // pred_region
          %3164 = vsyncadd %s3156, 0
          %s3165 = sadd.s32 %s38, %s39
          %s3166 = sadd.s32 %s3165, %s37
          %s3167 = smul.addr %s3166, 8
          %s3168 = scalar_lea.hbm %s6, %s3167
          %s3170 = sshll.u32 %s3159, 4
          %s3171 = int_to_ptr.vmem [resolvable:$true] %s3170
          %s3172 = sshll.u32 %s3168, 4
          %s3173 = int_to_ptr.hbm [resolvable:$true] %s3172
          %3175 = dma.vmem_to_hbm [thread:$0]  %s3171, 128, %s3173, %s3156
        $region76: #{tpu_custom_call.1} parent=43 // pred_fallthru
          _
      $region44: #{tpu_custom_call.1} parent=5 // pred_fallthru
        _
      %p3176 = scmp.le.s32.totalorder 2, %s27
      // Predicated region
      $region77: #{tpu_custom_call.1} parent=5 // pred_check
        %p3177 = pneg %p3176
      $region78: #{tpu_custom_call.1} parent=5 // pred_check_branch
        %3179 = sbr.rel (%p3177) target = $region80
      $region79: #{tpu_custom_call.1} parent=5 // pred_region
        %s3180 = ssub.s32 %s27, 2
        // Predicated region
        $region81: #{tpu_custom_call.1} parent=79 // pred_check
          %p3181 = pneg %p259
        $region82: #{tpu_custom_call.1} parent=79 // pred_check_branch
          %3183 = sbr.rel (%p3181) target = $region84
        $region83: #{tpu_custom_call.1} parent=79 // pred_region
          %s3184 = sand.u32 %s244, 1
          %s3185 = scalar_lea.sflag [#allocation8], %s3184
          %s3186 = sand.u32 %s244, 1
          %s3187 = smul.addr %s3186, 8
          %s3188 = scalar_lea.vmem [#allocation17], %s3187
          %3190 = dma.done %s3185, 128
        $region84: #{tpu_custom_call.1} parent=79 // pred_fallthru
          _
      $region80: #{tpu_custom_call.1} parent=5 // pred_fallthru
        _
    $region6: #{tpu_custom_call.1} parent=1 // loop_footer
      %s31 = sadd.s32 1, %s27
    $region7: #{tpu_custom_call.1} parent=1 // loop_footer_branch
      %26 = sbr.rel target = $region3
    $region8: #{tpu_custom_call.1} parent=1 // loop_exit
      _
    %3191 = vsyncpa [#allocation7], 1
    %s3192 = scalar_lea.sflag [#allocation7], 1
    %3193 = vsyncpa %s3192, 1
    %3194 = vsyncpa [#allocation10], 1
    %s3195 = scalar_lea.sflag [#allocation10], 1
    %3196 = vsyncpa %s3195, 1
    %3197 = vsyncpa [#allocation13], 1
    %s3198 = scalar_lea.sflag [#allocation13], 1
    %3199 = vsyncpa %s3198, 1
    %3200 = vsyncpa [#allocation16], 1
    %s3201 = scalar_lea.sflag [#allocation16], 1
    %3202 = vsyncpa %s3201, 1
    %3203 = vsyncpa [#allocation8], 1
    %s3204 = scalar_lea.sflag [#allocation8], 1
    %3205 = vsyncpa %s3204, 1

</llo_original>
